<compile_context>
chip_gen: v7x
topology: tpu7x:2x2x1
jax: 0.10.0
libtpu: 0.0.40
codegen_flags: <defaults>
</compile_context>

<pallas_src>
import functools

import jax
import jax.numpy as jnp
from jax.experimental import pallas as pl
from jax.experimental.pallas import tpu as pltpu

EPS = 1e-6  # norm_layer = partial(nn.LayerNorm, eps=1e-6)


# ----------------------------------------------------------------------------
# helpers
# ----------------------------------------------------------------------------
def _ln(x, g, b):
    """LayerNorm over the last axis (biased variance, like torch)."""
    mu = jnp.mean(x, axis=-1, keepdims=True)
    xc = x - mu
    var = jnp.mean(xc * xc, axis=-1, keepdims=True)
    return xc * jax.lax.rsqrt(var + EPS) * g + b


def _full_spec(shape):
    n = len(shape)
    return pl.BlockSpec(shape, lambda *_: (0,) * n)


def _round_up(x, m):
    return (x + m - 1) // m * m


def _compiler_params(dimension_semantics):
    kwargs = dict(dimension_semantics=dimension_semantics)
    try:
        # Derive the scoped-VMEM limit per generation (v7x physical VMEM is only
        # 64 MiB); leave ~25% headroom. Fall back to the default if unavailable.
        cap = int(pltpu.get_tpu_info().vmem_capacity_bytes)
        kwargs["vmem_limit_bytes"] = (3 * cap) // 4
    except Exception:
        pass
    return pltpu.CompilerParams(**kwargs)


# ----------------------------------------------------------------------------
# K1: fused patch-embed matmul + cls (at end) + positional embed + ln_pre
# ----------------------------------------------------------------------------
def _make_embed_kernel(n_tok, n_pad, D):
    pad_rows = n_pad - 1 - n_tok

    def kernel(patch_ref, wconv_ref, cls_ref, pe_ref, g_ref, b_ref, o_ref):
        # patch embedding as a bf16 MXU matmul (f32 accumulation)
        tok = jnp.dot(patch_ref[0], wconv_ref[...],
                      preferred_element_type=jnp.float32)          # (n_tok, D)
        parts = [tok, cls_ref[...]]                                # cls at the end
        if pad_rows > 0:
            parts.append(jnp.zeros((pad_rows, D), jnp.float32))
        xf = jnp.concatenate(parts, axis=0) + pe_ref[...]          # (n_pad, D)
        o_ref[0] = _ln(xf, g_ref[...], b_ref[...]).astype(jnp.bfloat16)

    return kernel


def embed_pallas(patches, wconv, cls, pe, g, b, *, n_pad):
    B, n_tok, P = patches.shape
    D = wconv.shape[1]
    return pl.pallas_call(
        _make_embed_kernel(n_tok, n_pad, D),
        out_shape=jax.ShapeDtypeStruct((B, n_pad, D), jnp.bfloat16),
        grid=(B,),
        in_specs=[
            pl.BlockSpec((1, n_tok, P), lambda i: (i, 0, 0)),
            _full_spec(wconv.shape),
            _full_spec(cls.shape),
            _full_spec(pe.shape),
            _full_spec(g.shape),
            _full_spec(b.shape),
        ],
        out_specs=pl.BlockSpec((1, n_pad, D), lambda i: (i, 0, 0)),
        compiler_params=_compiler_params(("parallel",)),
    )(patches, wconv, cls, pe, g, b)


# ----------------------------------------------------------------------------
# K2: all transformer blocks + fused ln_post, grid = (B, depth)
#     residual stream lives in the resident output block across the depth axis
# ----------------------------------------------------------------------------
def _make_blocks_kernel(num_heads, head_dim, D, n_valid, n_pad):
    scale = head_dim ** -0.5

    def kernel(x_ref, ln1g, ln1b, wqkv, bqkv, wo, bo, ln2g, ln2b,
               w1, b1, w2, b2, lnpg, lnpb, o_ref):
        layer = pl.program_id(1)
        last = pl.num_programs(1) - 1

        # load the bf16 embedding into the resident residual (output block)
        @pl.when(layer == 0)
        def _():
            o_ref[0] = x_ref[0].astype(jnp.float32)

        x = o_ref[0]                                               # (n_pad, D) f32

        # ---- attention branch ----
        h = _ln(x, ln1g[0], ln1b[0]).astype(jnp.bfloat16)
        qkv = (jnp.dot(h, wqkv[0], preferred_element_type=jnp.float32)
               + bqkv[0]).astype(jnp.bfloat16)                     # (n_pad, 3D) bf16

        # masks: padded tokens are excluded as keys, and padded q/k/v ROWS are
        # zeroed so a stray inf/NaN in a padded row can never reach valid rows.
        col = jax.lax.broadcasted_iota(jnp.int32, (1, n_pad), 1)
        key_bias = jnp.where(col < n_valid, 0.0, -1e30).astype(jnp.float32)
        row = jax.lax.broadcasted_iota(jnp.int32, (n_pad, 1), 0)
        qkv = qkv * (row < n_valid).astype(jnp.bfloat16)

        head_outs = []
        for hd in range(num_heads):
            lo = hd * head_dim
            qh = qkv[:, lo:lo + head_dim]
            kh = qkv[:, D + lo:D + lo + head_dim]
            vh = qkv[:, 2 * D + lo:2 * D + lo + head_dim]
            s = jax.lax.dot_general(qh, kh, (((1,), (1,)), ((), ())),
                                    preferred_element_type=jnp.float32)
            s = s * scale + key_bias
            s = s - jnp.max(s, axis=-1, keepdims=True)
            e = jnp.exp(s)  # f32 exp (v5e-safe); masked keys underflow to exact 0
            p = (e * pl.reciprocal(jnp.sum(e, axis=-1, keepdims=True),
                                   approx=True)).astype(jnp.bfloat16)
            head_outs.append(jnp.dot(p, vh, preferred_element_type=jnp.float32))
        # register-level concat of per-head PV outputs: one cast, one wo matmul,
        # no slab scratch / masked lane stores.
        attn_in = jnp.concatenate(head_outs, axis=-1).astype(jnp.bfloat16)
        x = x + jnp.dot(attn_in, wo[0], preferred_element_type=jnp.float32) + bo[0]

        # ---- MLP branch ----
        h2 = _ln(x, ln2g[0], ln2b[0]).astype(jnp.bfloat16)
        f = jnp.dot(h2, w1[0], preferred_element_type=jnp.float32) + b1[0]
        f = jax.nn.gelu(f, approximate=True).astype(jnp.bfloat16)
        x = x + jnp.dot(f, w2[0], preferred_element_type=jnp.float32) + b2[0]

        @pl.when(layer < last)
        def _():
            o_ref[0] = x                                           # residual carry

        @pl.when(layer == last)
        def _():
            # fused ln_post; cls (last valid row) and pad rows are sliced off
            # in the wrapper.
            o_ref[0] = _ln(x, lnpg[...], lnpb[...])

    return kernel


def transformer_blocks_pallas(x, ln1g, ln1b, wqkv, bqkv, wo, bo, ln2g, ln2b,
                              w1, b1, w2, b2, lnpg, lnpb, *, num_heads, n_valid):
    B, n_pad, D = x.shape
    L = wqkv.shape[0]
    Dm = w1.shape[2]
    head_dim = D // num_heads

    def xmap(b, l):
        return (b, 0, 0)

    def wmap(b, l):
        return (l, 0, 0)

    in_specs = [
        pl.BlockSpec((1, n_pad, D), xmap),      # x (bf16 embedding)
        pl.BlockSpec((1, 1, D), wmap),          # ln1g
        pl.BlockSpec((1, 1, D), wmap),          # ln1b
        pl.BlockSpec((1, D, 3 * D), wmap),      # wqkv (bf16)
        pl.BlockSpec((1, 1, 3 * D), wmap),      # bqkv
        pl.BlockSpec((1, D, D), wmap),          # wo (bf16)
        pl.BlockSpec((1, 1, D), wmap),          # bo
        pl.BlockSpec((1, 1, D), wmap),          # ln2g
        pl.BlockSpec((1, 1, D), wmap),          # ln2b
        pl.BlockSpec((1, D, Dm), wmap),         # w1 (bf16)
        pl.BlockSpec((1, 1, Dm), wmap),         # b1
        pl.BlockSpec((1, Dm, D), wmap),         # w2 (bf16)
        pl.BlockSpec((1, 1, D), wmap),          # b2
        _full_spec(lnpg.shape),                 # ln_post gamma
        _full_spec(lnpb.shape),                 # ln_post beta
    ]

    return pl.pallas_call(
        _make_blocks_kernel(num_heads, head_dim, D, n_valid, n_pad),
        out_shape=jax.ShapeDtypeStruct((B, n_pad, D), jnp.float32),
        grid=(B, L),
        in_specs=in_specs,
        out_specs=pl.BlockSpec((1, n_pad, D), xmap),   # resident accumulator
        compiler_params=_compiler_params(("parallel", "arbitrary")),
    )(x, ln1g, ln1b, wqkv, bqkv, wo, bo, ln2g, ln2b, w1, b1, w2, b2, lnpg, lnpb)


# ----------------------------------------------------------------------------
# full forward (layout glue in plain JAX, hot paths in Pallas)
# ----------------------------------------------------------------------------
def feature_vit_forward(x, params, *, patch_size, num_heads):
    B, C, T, H, W = x.shape
    p = patch_size
    hh, ww = H // p, W // p
    Np = hh * ww
    Ntok = T * Np
    D = params["w_conv"].shape[0]
    n_valid = Ntok + 1                  # patch tokens + cls (cls moved to the end)
    n_pad = _round_up(n_valid, 8)       # sublane-only padding; padded keys masked

    # patchify:  b c t (hh p) (ww p) -> b (t hh ww) (c p p)            [glue]
    xt = jnp.transpose(x, (0, 2, 1, 3, 4))                 # B,T,C,H,W
    xt = xt.reshape(B, T, C, hh, p, ww, p)
    xt = jnp.transpose(xt, (0, 1, 3, 5, 2, 4, 6))          # B,T,hh,ww,C,p,p
    patches = xt.reshape(B, Ntok, C * p * p).astype(jnp.bfloat16)

    wconv = params["w_conv"].reshape(D, C * p * p).T.astype(jnp.bfloat16)

    # positional embedding with cls at the END (matches the token order above)
    tile_pos = jnp.tile(params["pos"][1:], (T, 1))
    tile_temp = jnp.repeat(params["temporal"], Np, axis=0)
    total_pe = jnp.concatenate([tile_pos + tile_temp, params["pos"][0:1]], axis=0)
    total_pe = jnp.pad(total_pe, ((0, n_pad - n_valid), (0, 0)))

    # K1: fused patch-embed + cls + pos add + ln_pre   (bf16 handoff to K2)
    xemb = embed_pallas(patches, wconv, params["cls"].reshape(1, D), total_pe,
                        params["ln_pre_g"].reshape(1, D),
                        params["ln_pre_b"].reshape(1, D), n_pad=n_pad)

    # stack per-layer weights (leading depth axis); matmul weights -> bf16
    blocks = params["blocks"]

    def stk(name, dt=jnp.float32):
        return jnp.stack([bp[name] for bp in blocks]).astype(dt)

    out_full = transformer_blocks_pallas(
        xemb,
        stk("ln1g")[:, None, :], stk("ln1b")[:, None, :],
        stk("wqkv", jnp.bfloat16), stk("bqkv")[:, None, :],
        stk("wo", jnp.bfloat16), stk("bo")[:, None, :],
        stk("ln2g")[:, None, :], stk("ln2b")[:, None, :],
        stk("w1", jnp.bfloat16), stk("b1")[:, None, :],
        stk("w2", jnp.bfloat16), stk("b2")[:, None, :],
        params["ln_post_g"].reshape(1, D), params["ln_post_b"].reshape(1, D),
        num_heads=num_heads, n_valid=n_valid)

    # drop cls (last valid row) and padding: final ln_post already fused in K2
    return out_full[:, :Ntok, :]


# ----------------------------------------------------------------------------
# pure-JAX f32 reference (same math, cls at the front as in PyTorch)
# ----------------------------------------------------------------------------
def _block_ref(x, bp, num_heads):
    B, N, D = x.shape
    Dh = D // num_heads
    h = _ln(x, bp["ln1g"], bp["ln1b"])
    qkv = h @ bp["wqkv"] + bp["bqkv"]
    qkv = qkv.reshape(B, N, 3, num_heads, Dh).transpose(2, 0, 3, 1, 4)
    q, k, v = qkv[0] * (Dh ** -0.5), qkv[1], qkv[2]
    attn = jax.nn.softmax(jnp.einsum("bhqd,bhkd->bhqk", q, k), axis=-1)
    out = jnp.einsum("bhqk,bhkd->bhqd", attn, v)
    out = out.transpose(0, 2, 1, 3).reshape(B, N, D) @ bp["wo"] + bp["bo"]
    x = x + out
    h2 = _ln(x, bp["ln2g"], bp["ln2b"])
    f = jax.nn.gelu(h2 @ bp["w1"] + bp["b1"], approximate=True) @ bp["w2"] + bp["b2"]
    return x + f


def feature_vit_forward_ref(x, params, *, patch_size, num_heads):
    B, C, T, H, W = x.shape
    p = patch_size
    hh, ww = H // p, W // p
    Np = hh * ww
    D = params["w_conv"].shape[0]

    xt = jnp.transpose(x, (0, 2, 1, 3, 4)).reshape(B, T, C, hh, p, ww, p)
    xt = jnp.transpose(xt, (0, 1, 3, 5, 2, 4, 6)).reshape(B * T * Np, C * p * p)
    tok = (xt @ params["w_conv"].reshape(D, C * p * p).T).reshape(B, T * Np, D)

    cls = jnp.broadcast_to(params["cls"][None, None, :], (B, 1, D))
    xtok = jnp.concatenate([cls, tok], axis=1)
    cls_pe = params["pos"][0:1]
    total_pe = jnp.concatenate(
        [cls_pe, jnp.tile(params["pos"][1:], (T, 1))
         + jnp.repeat(params["temporal"], Np, axis=0)], axis=0)
    xtok = xtok + total_pe[None]

    xtok = _ln(xtok, params["ln_pre_g"], params["ln_pre_b"])
    for bp in params["blocks"]:
        xtok = _block_ref(xtok, bp, num_heads)
    xtok = xtok[:, 1:, :]
    return _ln(xtok, params["ln_post_g"], params["ln_post_b"])


# ----------------------------------------------------------------------------
# deterministic parameter init (synthetic; no checkpoint)
# ----------------------------------------------------------------------------
def init_params(key, *, C, patch, D, depth, mlp_ratio, T, img):
    Np = (img // patch) ** 2
    Dm = int(D * mlp_ratio)
    std = 0.02
    keys = jax.random.split(key, 4 + depth)
    params = {
        "w_conv": jax.random.normal(keys[0], (D, C, patch, patch), jnp.float32) * std,
        "cls": jax.random.normal(keys[1], (D,), jnp.float32) * std,
        "pos": jax.random.normal(keys[2], (1 + Np, D), jnp.float32) * std,
        "temporal": jax.random.normal(keys[3], (T, D), jnp.float32) * std,
        "ln_pre_g": jnp.ones((D,), jnp.float32),
        "ln_pre_b": jnp.zeros((D,), jnp.float32),
        "ln_post_g": jnp.ones((D,), jnp.float32),
        "ln_post_b": jnp.zeros((D,), jnp.float32),
        "blocks": [],
    }
    for i in range(depth):
        bk = jax.random.split(keys[4 + i], 8)
        params["blocks"].append({
            "ln1g": jnp.ones((D,), jnp.float32), "ln1b": jnp.zeros((D,), jnp.float32),
            "wqkv": jax.random.normal(bk[0], (D, 3 * D), jnp.float32) * std,
            "bqkv": jax.random.normal(bk[1], (3 * D,), jnp.float32) * std,
            "wo": jax.random.normal(bk[2], (D, D), jnp.float32) * std,
            "bo": jax.random.normal(bk[3], (D,), jnp.float32) * std,
            "ln2g": jnp.ones((D,), jnp.float32), "ln2b": jnp.zeros((D,), jnp.float32),
            "w1": jax.random.normal(bk[4], (D, Dm), jnp.float32) * std,
            "b1": jax.random.normal(bk[5], (Dm,), jnp.float32) * std,
            "w2": jax.random.normal(bk[6], (Dm, D), jnp.float32) * std,
            "b2": jax.random.normal(bk[7], (D,), jnp.float32) * std,
        })
    return params


# ----------------------------------------------------------------------------
if __name__ == "__main__":
    # small config: img=32, patch=16 -> 2x2=4 patches/frame, T=2 frames,
    # width=128, 4 heads, 2 layers, mlp_ratio=4.  Tokens: 8 patch + 1 cls = 9,
    # padded (sublane) to 16.
    IMG, PATCH, WIDTH, DEPTH, HEADS, MLP_RATIO, T, B, C = 32, 16, 128, 2, 4, 4, 2, 2, 3

    root = jax.random.PRNGKey(0)
    k_x, k_p = jax.random.split(root)
    x = jax.random.normal(k_x, (B, C, T, IMG, IMG), jnp.float32)
    params = init_params(k_p, C=C, patch=PATCH, D=WIDTH, depth=DEPTH,
                         mlp_ratio=MLP_RATIO, T=T, img=IMG)

    fwd = jax.jit(functools.partial(feature_vit_forward,
                                    patch_size=PATCH, num_heads=HEADS))
    out = jax.block_until_ready(fwd(x, params))
    assert out.shape == (B, T * (IMG // PATCH) ** 2, WIDTH)

    ref = jax.block_until_ready(
        feature_vit_forward_ref(x, params, patch_size=PATCH, num_heads=HEADS))
    assert jnp.all(jnp.isfinite(out))
    # tolerance loosened vs f32: kernel runs bf16 MXU matmuls (f32 accumulation),
    # a bf16 embedding handoff, and an approx-reciprocal softmax denominator.
    assert jnp.allclose(out, ref, atol=1e-1, rtol=1e-1), \
        float(jnp.max(jnp.abs(out - ref)))

    print("KERNEL_OK")
</pallas_src>

<mosaic_0001>
module attributes {stable_mosaic.version = 11 : i64} {
  func.func @kernel(%arg0: i32, %arg1: memref<1x8x768xbf16, #tpu.memory_space<vmem>>, %arg2: memref<768x128xbf16, #tpu.memory_space<vmem>>, %arg3: memref<1x128xf32, #tpu.memory_space<vmem>>, %arg4: memref<16x128xf32, #tpu.memory_space<vmem>>, %arg5: memref<1x128xf32, #tpu.memory_space<vmem>>, %arg6: memref<1x128xf32, #tpu.memory_space<vmem>>, %arg7: memref<1x16x128xbf16, #tpu.memory_space<vmem>>) attributes {dimension_semantics = [#tpu.dimension_semantics<parallel>], iteration_bounds = array<i64: 2>, scalar_prefetch = 0 : i64, scratch_operands = 0 : i64, tpu.core_type = #tpu.core_type<tc>, window_params = [{transform_indices = @transform_0, window_bounds = array<i64: 1, 8, 768>}, {pipeline_mode = #tpu.pipeline_mode<synchronous>, transform_indices = @transform_1, window_bounds = array<i64: 768, 128>}, {pipeline_mode = #tpu.pipeline_mode<synchronous>, transform_indices = @transform_2, window_bounds = array<i64: 1, 128>}, {pipeline_mode = #tpu.pipeline_mode<synchronous>, transform_indices = @transform_3, window_bounds = array<i64: 16, 128>}, {pipeline_mode = #tpu.pipeline_mode<synchronous>, transform_indices = @transform_4, window_bounds = array<i64: 1, 128>}, {pipeline_mode = #tpu.pipeline_mode<synchronous>, transform_indices = @transform_5, window_bounds = array<i64: 1, 128>}, {transform_indices = @transform_6, window_bounds = array<i64: 1, 16, 128>}]} {
    %c0 = arith.constant 0 : index
    %c0_0 = arith.constant 0 : index
    %c0_1 = arith.constant 0 : index
    %0 = vector.load %arg1[%c0, %c0_0, %c0_1] : memref<1x8x768xbf16, #tpu.memory_space<vmem>>, vector<1x8x768xbf16>
    %1 = vector.shape_cast %0 : vector<1x8x768xbf16> to vector<8x768xbf16>
    %c0_2 = arith.constant 0 : index
    %c0_3 = arith.constant 0 : index
    %2 = vector.load %arg2[%c0_2, %c0_3] : memref<768x128xbf16, #tpu.memory_space<vmem>>, vector<768x128xbf16>
    %cst = arith.constant dense<0.000000e+00> : vector<8x128xf32>
    %3 = tpu.matmul %1, %2, %cst {dimension_numbers = #tpu.dot_dimension_numbers<[1], [0], [0], [1], [0, 0, 1, 1], [], []>} : vector<8x768xbf16>, vector<768x128xbf16>, vector<8x128xf32> -> vector<8x128xf32>
    %c0_4 = arith.constant 0 : index
    %c0_5 = arith.constant 0 : index
    %4 = vector.load %arg3[%c0_4, %c0_5] : memref<1x128xf32, #tpu.memory_space<vmem>>, vector<1x128xf32>
    %cst_6 = arith.constant 0.000000e+00 : f32
    %5 = vector.broadcast %cst_6 : f32 to vector<7x128xf32>
    %6 = tpu.concatenate %3, %4, %5 in 0 : vector<8x128xf32>, vector<1x128xf32>, vector<7x128xf32> -> vector<16x128xf32>
    %c0_7 = arith.constant 0 : index
    %c0_8 = arith.constant 0 : index
    %7 = vector.load %arg4[%c0_7, %c0_8] : memref<16x128xf32, #tpu.memory_space<vmem>>, vector<16x128xf32>
    %8 = arith.addf %6, %7 : vector<16x128xf32>
    %c0_9 = arith.constant 0 : index
    %c0_10 = arith.constant 0 : index
    %9 = vector.load %arg5[%c0_9, %c0_10] : memref<1x128xf32, #tpu.memory_space<vmem>>, vector<1x128xf32>
    %c0_11 = arith.constant 0 : index
    %c0_12 = arith.constant 0 : index
    %10 = vector.load %arg6[%c0_11, %c0_12] : memref<1x128xf32, #tpu.memory_space<vmem>>, vector<1x128xf32>
    %cst_13 = arith.constant dense<0.000000e+00> : vector<16xf32>
    %11 = vector.multi_reduction <add>, %8, %cst_13 [1] : vector<16x128xf32> to vector<16xf32>
    %12 = vector.shape_cast %11 : vector<16xf32> to vector<16x1xf32>
    %cst_14 = arith.constant 1.280000e+02 : f32
    %13 = vector.broadcast %cst_14 : f32 to vector<16x1xf32>
    %14 = arith.divf %12, %13 : vector<16x1xf32>
    %15 = vector.broadcast %14 : vector<16x1xf32> to vector<16x128xf32>
    %16 = arith.subf %8, %15 : vector<16x128xf32>
    %17 = arith.mulf %16, %16 : vector<16x128xf32>
    %cst_15 = arith.constant dense<0.000000e+00> : vector<16xf32>
    %18 = vector.multi_reduction <add>, %17, %cst_15 [1] : vector<16x128xf32> to vector<16xf32>
    %19 = vector.shape_cast %18 : vector<16xf32> to vector<16x1xf32>
    %cst_16 = arith.constant 1.280000e+02 : f32
    %20 = vector.broadcast %cst_16 : f32 to vector<16x1xf32>
    %21 = arith.divf %19, %20 : vector<16x1xf32>
    %cst_17 = arith.constant 9.99999997E-7 : f32
    %22 = vector.broadcast %cst_17 : f32 to vector<16x1xf32>
    %23 = arith.addf %21, %22 : vector<16x1xf32>
    %24 = math.rsqrt %23 : vector<16x1xf32>
    %25 = vector.broadcast %24 : vector<16x1xf32> to vector<16x128xf32>
    %26 = arith.mulf %16, %25 : vector<16x128xf32>
    %27 = vector.broadcast %9 : vector<1x128xf32> to vector<16x128xf32>
    %28 = arith.mulf %26, %27 : vector<16x128xf32>
    %29 = vector.broadcast %10 : vector<1x128xf32> to vector<16x128xf32>
    %30 = arith.addf %28, %29 : vector<16x128xf32>
    %31 = arith.truncf %30 : vector<16x128xf32> to vector<16x128xbf16>
    %c0_18 = arith.constant 0 : index
    %c0_19 = arith.constant 0 : index
    %c0_20 = arith.constant 0 : index
    %32 = vector.load %arg7[%c0_18, %c0_19, %c0_20] : memref<1x16x128xbf16, #tpu.memory_space<vmem>>, vector<1x16x128xbf16>
    %33 = vector.shape_cast %32 : vector<1x16x128xbf16> to vector<16x128xbf16>
    %34 = vector.shape_cast %31 : vector<16x128xbf16> to vector<1x16x128xbf16>
    tpu.vector_store %arg7[%c0_18, %c0_19, %c0_20], %34 {strides = array<i32>} : memref<1x16x128xbf16, #tpu.memory_space<vmem>>, vector<1x16x128xbf16>,
    return
  }
  func.func @transform_0(%arg0: i32) -> (i32, i32, i32) {
    %c0_i32 = arith.constant 0 : i32
    %c0_i32_0 = arith.constant 0 : i32
    %c0_i32_1 = arith.constant 0 : i32
    return %arg0, %c0_i32, %c0_i32_0 : i32, i32, i32
  }
  func.func @transform_1(%arg0: i32) -> (i32, i32) {
    %c0_i32 = arith.constant 0 : i32
    %c0_i32_0 = arith.constant 0 : i32
    %c0_i32_1 = arith.constant 0 : i32
    return %c0_i32, %c0_i32_0 : i32, i32
  }
  func.func @transform_2(%arg0: i32) -> (i32, i32) {
    %c0_i32 = arith.constant 0 : i32
    %c0_i32_0 = arith.constant 0 : i32
    %c0_i32_1 = arith.constant 0 : i32
    return %c0_i32, %c0_i32_0 : i32, i32
  }
  func.func @transform_3(%arg0: i32) -> (i32, i32) {
    %c0_i32 = arith.constant 0 : i32
    %c0_i32_0 = arith.constant 0 : i32
    %c0_i32_1 = arith.constant 0 : i32
    return %c0_i32, %c0_i32_0 : i32, i32
  }
  func.func @transform_4(%arg0: i32) -> (i32, i32) {
    %c0_i32 = arith.constant 0 : i32
    %c0_i32_0 = arith.constant 0 : i32
    %c0_i32_1 = arith.constant 0 : i32
    return %c0_i32, %c0_i32_0 : i32, i32
  }
  func.func @transform_5(%arg0: i32) -> (i32, i32) {
    %c0_i32 = arith.constant 0 : i32
    %c0_i32_0 = arith.constant 0 : i32
    %c0_i32_1 = arith.constant 0 : i32
    return %c0_i32, %c0_i32_0 : i32, i32
  }
  func.func @transform_6(%arg0: i32) -> (i32, i32, i32) {
    %c0_i32 = arith.constant 0 : i32
    %c0_i32_0 = arith.constant 0 : i32
    %c0_i32_1 = arith.constant 0 : i32
    return %arg0, %c0_i32, %c0_i32_0 : i32, i32, i32
  }
}

module attributes {stable_mosaic.version = 11 : i64} {
  func.func @kernel(%arg0: i32, %arg1: i32, %arg2: memref<1x16x128xbf16, #tpu.memory_space<vmem>>, %arg3: memref<1x1x128xf32, #tpu.memory_space<vmem>>, %arg4: memref<1x1x128xf32, #tpu.memory_space<vmem>>, %arg5: memref<1x128x384xbf16, #tpu.memory_space<vmem>>, %arg6: memref<1x1x384xf32, #tpu.memory_space<vmem>>, %arg7: memref<1x128x128xbf16, #tpu.memory_space<vmem>>, %arg8: memref<1x1x128xf32, #tpu.memory_space<vmem>>, %arg9: memref<1x1x128xf32, #tpu.memory_space<vmem>>, %arg10: memref<1x1x128xf32, #tpu.memory_space<vmem>>, %arg11: memref<1x128x512xbf16, #tpu.memory_space<vmem>>, %arg12: memref<1x1x512xf32, #tpu.memory_space<vmem>>, %arg13: memref<1x512x128xbf16, #tpu.memory_space<vmem>>, %arg14: memref<1x1x128xf32, #tpu.memory_space<vmem>>, %arg15: memref<1x128xf32, #tpu.memory_space<vmem>>, %arg16: memref<1x128xf32, #tpu.memory_space<vmem>>, %arg17: memref<1x16x128xf32, #tpu.memory_space<vmem>>) attributes {dimension_semantics = [#tpu.dimension_semantics<parallel>, #tpu.dimension_semantics<arbitrary>], iteration_bounds = array<i64: 2, 2>, scalar_prefetch = 0 : i64, scratch_operands = 0 : i64, tpu.core_type = #tpu.core_type<tc>, window_params = [{transform_indices = @transform_0, window_bounds = array<i64: 1, 16, 128>}, {transform_indices = @transform_1, window_bounds = array<i64: 1, 1, 128>}, {transform_indices = @transform_2, window_bounds = array<i64: 1, 1, 128>}, {transform_indices = @transform_3, window_bounds = array<i64: 1, 128, 384>}, {transform_indices = @transform_4, window_bounds = array<i64: 1, 1, 384>}, {transform_indices = @transform_5, window_bounds = array<i64: 1, 128, 128>}, {transform_indices = @transform_6, window_bounds = array<i64: 1, 1, 128>}, {transform_indices = @transform_7, window_bounds = array<i64: 1, 1, 128>}, {transform_indices = @transform_8, window_bounds = array<i64: 1, 1, 128>}, {transform_indices = @transform_9, window_bounds = array<i64: 1, 128, 512>}, {transform_indices = @transform_10, window_bounds = array<i64: 1, 1, 512>}, {transform_indices = @transform_11, window_bounds = array<i64: 1, 512, 128>}, {transform_indices = @transform_12, window_bounds = array<i64: 1, 1, 128>}, {pipeline_mode = #tpu.pipeline_mode<synchronous>, transform_indices = @transform_13, window_bounds = array<i64: 1, 128>}, {pipeline_mode = #tpu.pipeline_mode<synchronous>, transform_indices = @transform_14, window_bounds = array<i64: 1, 128>}, {transform_indices = @transform_15, window_bounds = array<i64: 1, 16, 128>}]} {
    %c0_i32 = arith.constant 0 : i32
    %0 = arith.cmpi eq, %arg1, %c0_i32 : i32
    %1 = arith.extui %0 : i1 to i32
    %c0_i32_0 = arith.constant 0 : i32
    %2 = arith.cmpi ne, %1, %c0_i32_0 : i32
    scf.if %2 {
      %c0_82 = arith.constant 0 : index
      %c0_83 = arith.constant 0 : index
      %c0_84 = arith.constant 0 : index
      %202 = vector.load %arg2[%c0_82, %c0_83, %c0_84] : memref<1x16x128xbf16, #tpu.memory_space<vmem>>, vector<1x16x128xbf16>
      %203 = vector.shape_cast %202 : vector<1x16x128xbf16> to vector<16x128xbf16>
      %204 = arith.extf %203 : vector<16x128xbf16> to vector<16x128xf32>
      %c0_85 = arith.constant 0 : index
      %c0_86 = arith.constant 0 : index
      %c0_87 = arith.constant 0 : index
      %205 = vector.load %arg17[%c0_85, %c0_86, %c0_87] : memref<1x16x128xf32, #tpu.memory_space<vmem>>, vector<1x16x128xf32>
      %206 = vector.shape_cast %205 : vector<1x16x128xf32> to vector<16x128xf32>
      %207 = vector.shape_cast %204 : vector<16x128xf32> to vector<1x16x128xf32>
      tpu.vector_store %arg17[%c0_85, %c0_86, %c0_87], %207 {strides = array<i32>} : memref<1x16x128xf32, #tpu.memory_space<vmem>>, vector<1x16x128xf32>,
    } else {
    }
    %c0 = arith.constant 0 : index
    %c0_1 = arith.constant 0 : index
    %c0_2 = arith.constant 0 : index
    %3 = vector.load %arg17[%c0, %c0_1, %c0_2] : memref<1x16x128xf32, #tpu.memory_space<vmem>>, vector<1x16x128xf32>
    %4 = vector.shape_cast %3 : vector<1x16x128xf32> to vector<16x128xf32>
    %c0_3 = arith.constant 0 : index
    %c0_4 = arith.constant 0 : index
    %c0_5 = arith.constant 0 : index
    %5 = vector.load %arg3[%c0_3, %c0_4, %c0_5] : memref<1x1x128xf32, #tpu.memory_space<vmem>>, vector<1x1x128xf32>
    %6 = vector.shape_cast %5 : vector<1x1x128xf32> to vector<1x128xf32>
    %c0_6 = arith.constant 0 : index
    %c0_7 = arith.constant 0 : index
    %c0_8 = arith.constant 0 : index
    %7 = vector.load %arg4[%c0_6, %c0_7, %c0_8] : memref<1x1x128xf32, #tpu.memory_space<vmem>>, vector<1x1x128xf32>
    %8 = vector.shape_cast %7 : vector<1x1x128xf32> to vector<1x128xf32>
    %cst = arith.constant dense<0.000000e+00> : vector<16xf32>
    %9 = vector.multi_reduction <add>, %4, %cst [1] : vector<16x128xf32> to vector<16xf32>
    %10 = vector.shape_cast %9 : vector<16xf32> to vector<16x1xf32>
    %cst_9 = arith.constant 1.280000e+02 : f32
    %11 = vector.broadcast %cst_9 : f32 to vector<16x1xf32>
    %12 = arith.divf %10, %11 : vector<16x1xf32>
    %13 = vector.broadcast %12 : vector<16x1xf32> to vector<16x128xf32>
    %14 = arith.subf %4, %13 : vector<16x128xf32>
    %15 = arith.mulf %14, %14 : vector<16x128xf32>
    %cst_10 = arith.constant dense<0.000000e+00> : vector<16xf32>
    %16 = vector.multi_reduction <add>, %15, %cst_10 [1] : vector<16x128xf32> to vector<16xf32>
    %17 = vector.shape_cast %16 : vector<16xf32> to vector<16x1xf32>
    %cst_11 = arith.constant 1.280000e+02 : f32
    %18 = vector.broadcast %cst_11 : f32 to vector<16x1xf32>
    %19 = arith.divf %17, %18 : vector<16x1xf32>
    %cst_12 = arith.constant 9.99999997E-7 : f32
    %20 = vector.broadcast %cst_12 : f32 to vector<16x1xf32>
    %21 = arith.addf %19, %20 : vector<16x1xf32>
    %22 = math.rsqrt %21 : vector<16x1xf32>
    %23 = vector.broadcast %22 : vector<16x1xf32> to vector<16x128xf32>
    %24 = arith.mulf %14, %23 : vector<16x128xf32>
    %25 = vector.broadcast %6 : vector<1x128xf32> to vector<16x128xf32>
    %26 = arith.mulf %24, %25 : vector<16x128xf32>
    %27 = vector.broadcast %8 : vector<1x128xf32> to vector<16x128xf32>
    %28 = arith.addf %26, %27 : vector<16x128xf32>
    %29 = arith.truncf %28 : vector<16x128xf32> to vector<16x128xbf16>
    %c0_13 = arith.constant 0 : index
    %c0_14 = arith.constant 0 : index
    %c0_15 = arith.constant 0 : index
    %30 = vector.load %arg5[%c0_13, %c0_14, %c0_15] : memref<1x128x384xbf16, #tpu.memory_space<vmem>>, vector<1x128x384xbf16>
    %31 = vector.shape_cast %30 : vector<1x128x384xbf16> to vector<128x384xbf16>
    %cst_16 = arith.constant dense<0.000000e+00> : vector<16x384xf32>
    %32 = tpu.matmul %29, %31, %cst_16 {dimension_numbers = #tpu.dot_dimension_numbers<[1], [0], [0], [1], [0, 0, 1, 1], [], []>} : vector<16x128xbf16>, vector<128x384xbf16>, vector<16x384xf32> -> vector<16x384xf32>
    %c0_17 = arith.constant 0 : index
    %c0_18 = arith.constant 0 : index
    %c0_19 = arith.constant 0 : index
    %33 = vector.load %arg6[%c0_17, %c0_18, %c0_19] : memref<1x1x384xf32, #tpu.memory_space<vmem>>, vector<1x1x384xf32>
    %34 = vector.shape_cast %33 : vector<1x1x384xf32> to vector<1x384xf32>
    %35 = vector.broadcast %34 : vector<1x384xf32> to vector<16x384xf32>
    %36 = arith.addf %32, %35 : vector<16x384xf32>
    %37 = arith.truncf %36 : vector<16x384xf32> to vector<16x384xbf16>
    %38 = tpu.iota {dimensions = array<i32: 1>} : vector<1x16xi32>
    %c9_i32 = arith.constant 9 : i32
    %39 = vector.broadcast %c9_i32 : i32 to vector<1x16xi32>
    %40 = arith.cmpi slt, %38, %39 : vector<1x16xi32>
    %cst_20 = arith.constant 0.000000e+00 : f32
    %cst_21 = arith.constant -1.000000e+30 : f32
    %41 = vector.broadcast %cst_20 : f32 to vector<1x16xf32>
    %42 = vector.broadcast %cst_21 : f32 to vector<1x16xf32>
    %43 = arith.select %40, %41, %42 : vector<1x16xi1>, vector<1x16xf32>
    %44 = tpu.iota {dimensions = array<i32: 0>} : vector<16x1xi32>
    %c9_i32_22 = arith.constant 9 : i32
    %45 = vector.broadcast %c9_i32_22 : i32 to vector<16x1xi32>
    %46 = arith.cmpi slt, %44, %45 : vector<16x1xi32>
    %47 = arith.extui %46 : vector<16x1xi1> to vector<16x1xi32>
    %48 = arith.sitofp %47 : vector<16x1xi32> to vector<16x1xf32>
    %49 = arith.truncf %48 : vector<16x1xf32> to vector<16x1xbf16>
    %50 = vector.broadcast %49 : vector<16x1xbf16> to vector<16x384xbf16>
    %51 = arith.mulf %37, %50 : vector<16x384xbf16>
    %52 = vector.extract_strided_slice %51 {offsets = [0, 0], sizes = [16, 32], strides = [1, 1]} : vector<16x384xbf16> to vector<16x32xbf16>
    %53 = vector.extract_strided_slice %51 {offsets = [0, 128], sizes = [16, 32], strides = [1, 1]} : vector<16x384xbf16> to vector<16x32xbf16>
    %54 = vector.extract_strided_slice %51 {offsets = [0, 256], sizes = [16, 32], strides = [1, 1]} : vector<16x384xbf16> to vector<16x32xbf16>
    %cst_23 = arith.constant dense<0.000000e+00> : vector<16x16xf32>
    %55 = tpu.matmul %52, %53, %cst_23 {dimension_numbers = #tpu.dot_dimension_numbers<[1], [1], [0], [0], [0, 0, 1, 0], [], []>} : vector<16x32xbf16>, vector<16x32xbf16>, vector<16x16xf32> -> vector<16x16xf32>
    %cst_24 = arith.constant 0.176776692 : f32
    %56 = vector.broadcast %cst_24 : f32 to vector<16x16xf32>
    %57 = arith.mulf %55, %56 : vector<16x16xf32>
    %58 = vector.broadcast %43 : vector<1x16xf32> to vector<16x16xf32>
    %59 = arith.addf %57, %58 : vector<16x16xf32>
    %cst_25 = arith.constant dense<0xFF800000> : vector<16xf32>
    %60 = vector.multi_reduction <maximumf>, %59, %cst_25 [1] : vector<16x16xf32> to vector<16xf32>
    %61 = vector.shape_cast %60 : vector<16xf32> to vector<16x1xf32>
    %62 = vector.broadcast %61 : vector<16x1xf32> to vector<16x16xf32>
    %63 = arith.subf %59, %62 : vector<16x16xf32>
    %64 = math.exp %63 : vector<16x16xf32>
    %cst_26 = arith.constant dense<0.000000e+00> : vector<16xf32>
    %65 = vector.multi_reduction <add>, %64, %cst_26 [1] : vector<16x16xf32> to vector<16xf32>
    %66 = vector.shape_cast %65 : vector<16xf32> to vector<16x1xf32>
    %67 = tpu.reciprocal %66 {approx = true} : vector<16x1xf32> -> vector<16x1xf32>
    %68 = vector.broadcast %67 : vector<16x1xf32> to vector<16x16xf32>
    %69 = arith.mulf %64, %68 : vector<16x16xf32>
    %70 = arith.truncf %69 : vector<16x16xf32> to vector<16x16xbf16>
    %cst_27 = arith.constant dense<0.000000e+00> : vector<16x32xf32>
    %71 = tpu.matmul %70, %54, %cst_27 {dimension_numbers = #tpu.dot_dimension_numbers<[1], [0], [0], [1], [0, 0, 1, 1], [], []>} : vector<16x16xbf16>, vector<16x32xbf16>, vector<16x32xf32> -> vector<16x32xf32>
    %72 = vector.extract_strided_slice %51 {offsets = [0, 32], sizes = [16, 32], strides = [1, 1]} : vector<16x384xbf16> to vector<16x32xbf16>
    %73 = vector.extract_strided_slice %51 {offsets = [0, 160], sizes = [16, 32], strides = [1, 1]} : vector<16x384xbf16> to vector<16x32xbf16>
    %74 = vector.extract_strided_slice %51 {offsets = [0, 288], sizes = [16, 32], strides = [1, 1]} : vector<16x384xbf16> to vector<16x32xbf16>
    %cst_28 = arith.constant dense<0.000000e+00> : vector<16x16xf32>
    %75 = tpu.matmul %72, %73, %cst_28 {dimension_numbers = #tpu.dot_dimension_numbers<[1], [1], [0], [0], [0, 0, 1, 0], [], []>} : vector<16x32xbf16>, vector<16x32xbf16>, vector<16x16xf32> -> vector<16x16xf32>
    %cst_29 = arith.constant 0.176776692 : f32
    %76 = vector.broadcast %cst_29 : f32 to vector<16x16xf32>
    %77 = arith.mulf %75, %76 : vector<16x16xf32>
    %78 = vector.broadcast %43 : vector<1x16xf32> to vector<16x16xf32>
    %79 = arith.addf %77, %78 : vector<16x16xf32>
    %cst_30 = arith.constant dense<0xFF800000> : vector<16xf32>
    %80 = vector.multi_reduction <maximumf>, %79, %cst_30 [1] : vector<16x16xf32> to vector<16xf32>
    %81 = vector.shape_cast %80 : vector<16xf32> to vector<16x1xf32>
    %82 = vector.broadcast %81 : vector<16x1xf32> to vector<16x16xf32>
    %83 = arith.subf %79, %82 : vector<16x16xf32>
    %84 = math.exp %83 : vector<16x16xf32>
    %cst_31 = arith.constant dense<0.000000e+00> : vector<16xf32>
    %85 = vector.multi_reduction <add>, %84, %cst_31 [1] : vector<16x16xf32> to vector<16xf32>
    %86 = vector.shape_cast %85 : vector<16xf32> to vector<16x1xf32>
    %87 = tpu.reciprocal %86 {approx = true} : vector<16x1xf32> -> vector<16x1xf32>
    %88 = vector.broadcast %87 : vector<16x1xf32> to vector<16x16xf32>
    %89 = arith.mulf %84, %88 : vector<16x16xf32>
    %90 = arith.truncf %89 : vector<16x16xf32> to vector<16x16xbf16>
    %cst_32 = arith.constant dense<0.000000e+00> : vector<16x32xf32>
    %91 = tpu.matmul %90, %74, %cst_32 {dimension_numbers = #tpu.dot_dimension_numbers<[1], [0], [0], [1], [0, 0, 1, 1], [], []>} : vector<16x16xbf16>, vector<16x32xbf16>, vector<16x32xf32> -> vector<16x32xf32>
    %92 = vector.extract_strided_slice %51 {offsets = [0, 64], sizes = [16, 32], strides = [1, 1]} : vector<16x384xbf16> to vector<16x32xbf16>
    %93 = vector.extract_strided_slice %51 {offsets = [0, 192], sizes = [16, 32], strides = [1, 1]} : vector<16x384xbf16> to vector<16x32xbf16>
    %94 = vector.extract_strided_slice %51 {offsets = [0, 320], sizes = [16, 32], strides = [1, 1]} : vector<16x384xbf16> to vector<16x32xbf16>
    %cst_33 = arith.constant dense<0.000000e+00> : vector<16x16xf32>
    %95 = tpu.matmul %92, %93, %cst_33 {dimension_numbers = #tpu.dot_dimension_numbers<[1], [1], [0], [0], [0, 0, 1, 0], [], []>} : vector<16x32xbf16>, vector<16x32xbf16>, vector<16x16xf32> -> vector<16x16xf32>
    %cst_34 = arith.constant 0.176776692 : f32
    %96 = vector.broadcast %cst_34 : f32 to vector<16x16xf32>
    %97 = arith.mulf %95, %96 : vector<16x16xf32>
    %98 = vector.broadcast %43 : vector<1x16xf32> to vector<16x16xf32>
    %99 = arith.addf %97, %98 : vector<16x16xf32>
    %cst_35 = arith.constant dense<0xFF800000> : vector<16xf32>
    %100 = vector.multi_reduction <maximumf>, %99, %cst_35 [1] : vector<16x16xf32> to vector<16xf32>
    %101 = vector.shape_cast %100 : vector<16xf32> to vector<16x1xf32>
    %102 = vector.broadcast %101 : vector<16x1xf32> to vector<16x16xf32>
    %103 = arith.subf %99, %102 : vector<16x16xf32>
    %104 = math.exp %103 : vector<16x16xf32>
    %cst_36 = arith.constant dense<0.000000e+00> : vector<16xf32>
    %105 = vector.multi_reduction <add>, %104, %cst_36 [1] : vector<16x16xf32> to vector<16xf32>
    %106 = vector.shape_cast %105 : vector<16xf32> to vector<16x1xf32>
    %107 = tpu.reciprocal %106 {approx = true} : vector<16x1xf32> -> vector<16x1xf32>
    %108 = vector.broadcast %107 : vector<16x1xf32> to vector<16x16xf32>
    %109 = arith.mulf %104, %108 : vector<16x16xf32>
    %110 = arith.truncf %109 : vector<16x16xf32> to vector<16x16xbf16>
    %cst_37 = arith.constant dense<0.000000e+00> : vector<16x32xf32>
    %111 = tpu.matmul %110, %94, %cst_37 {dimension_numbers = #tpu.dot_dimension_numbers<[1], [0], [0], [1], [0, 0, 1, 1], [], []>} : vector<16x16xbf16>, vector<16x32xbf16>, vector<16x32xf32> -> vector<16x32xf32>
    %112 = vector.extract_strided_slice %51 {offsets = [0, 96], sizes = [16, 32], strides = [1, 1]} : vector<16x384xbf16> to vector<16x32xbf16>
    %113 = vector.extract_strided_slice %51 {offsets = [0, 224], sizes = [16, 32], strides = [1, 1]} : vector<16x384xbf16> to vector<16x32xbf16>
    %114 = vector.extract_strided_slice %51 {offsets = [0, 352], sizes = [16, 32], strides = [1, 1]} : vector<16x384xbf16> to vector<16x32xbf16>
    %cst_38 = arith.constant dense<0.000000e+00> : vector<16x16xf32>
    %115 = tpu.matmul %112, %113, %cst_38 {dimension_numbers = #tpu.dot_dimension_numbers<[1], [1], [0], [0], [0, 0, 1, 0], [], []>} : vector<16x32xbf16>, vector<16x32xbf16>, vector<16x16xf32> -> vector<16x16xf32>
    %cst_39 = arith.constant 0.176776692 : f32
    %116 = vector.broadcast %cst_39 : f32 to vector<16x16xf32>
    %117 = arith.mulf %115, %116 : vector<16x16xf32>
    %118 = vector.broadcast %43 : vector<1x16xf32> to vector<16x16xf32>
    %119 = arith.addf %117, %118 : vector<16x16xf32>
    %cst_40 = arith.constant dense<0xFF800000> : vector<16xf32>
    %120 = vector.multi_reduction <maximumf>, %119, %cst_40 [1] : vector<16x16xf32> to vector<16xf32>
    %121 = vector.shape_cast %120 : vector<16xf32> to vector<16x1xf32>
    %122 = vector.broadcast %121 : vector<16x1xf32> to vector<16x16xf32>
    %123 = arith.subf %119, %122 : vector<16x16xf32>
    %124 = math.exp %123 : vector<16x16xf32>
    %cst_41 = arith.constant dense<0.000000e+00> : vector<16xf32>
    %125 = vector.multi_reduction <add>, %124, %cst_41 [1] : vector<16x16xf32> to vector<16xf32>
    %126 = vector.shape_cast %125 : vector<16xf32> to vector<16x1xf32>
    %127 = tpu.reciprocal %126 {approx = true} : vector<16x1xf32> -> vector<16x1xf32>
    %128 = vector.broadcast %127 : vector<16x1xf32> to vector<16x16xf32>
    %129 = arith.mulf %124, %128 : vector<16x16xf32>
    %130 = arith.truncf %129 : vector<16x16xf32> to vector<16x16xbf16>
    %cst_42 = arith.constant dense<0.000000e+00> : vector<16x32xf32>
    %131 = tpu.matmul %130, %114, %cst_42 {dimension_numbers = #tpu.dot_dimension_numbers<[1], [0], [0], [1], [0, 0, 1, 1], [], []>} : vector<16x16xbf16>, vector<16x32xbf16>, vector<16x32xf32> -> vector<16x32xf32>
    %132 = tpu.concatenate %71, %91, %111, %131 in 1 : vector<16x32xf32>, vector<16x32xf32>, vector<16x32xf32>, vector<16x32xf32> -> vector<16x128xf32>
    %133 = arith.truncf %132 : vector<16x128xf32> to vector<16x128xbf16>
    %c0_43 = arith.constant 0 : index
    %c0_44 = arith.constant 0 : index
    %c0_45 = arith.constant 0 : index
    %134 = vector.load %arg7[%c0_43, %c0_44, %c0_45] : memref<1x128x128xbf16, #tpu.memory_space<vmem>>, vector<1x128x128xbf16>
    %135 = vector.shape_cast %134 : vector<1x128x128xbf16> to vector<128x128xbf16>
    %cst_46 = arith.constant dense<0.000000e+00> : vector<16x128xf32>
    %136 = tpu.matmul %133, %135, %cst_46 {dimension_numbers = #tpu.dot_dimension_numbers<[1], [0], [0], [1], [0, 0, 1, 1], [], []>} : vector<16x128xbf16>, vector<128x128xbf16>, vector<16x128xf32> -> vector<16x128xf32>
    %137 = arith.addf %4, %136 : vector<16x128xf32>
    %c0_47 = arith.constant 0 : index
    %c0_48 = arith.constant 0 : index
    %c0_49 = arith.constant 0 : index
    %138 = vector.load %arg8[%c0_47, %c0_48, %c0_49] : memref<1x1x128xf32, #tpu.memory_space<vmem>>, vector<1x1x128xf32>
    %139 = vector.shape_cast %138 : vector<1x1x128xf32> to vector<1x128xf32>
    %140 = vector.broadcast %139 : vector<1x128xf32> to vector<16x128xf32>
    %141 = arith.addf %137, %140 : vector<16x128xf32>
    %c0_50 = arith.constant 0 : index
    %c0_51 = arith.constant 0 : index
    %c0_52 = arith.constant 0 : index
    %142 = vector.load %arg9[%c0_50, %c0_51, %c0_52] : memref<1x1x128xf32, #tpu.memory_space<vmem>>, vector<1x1x128xf32>
    %143 = vector.shape_cast %142 : vector<1x1x128xf32> to vector<1x128xf32>
    %c0_53 = arith.constant 0 : index
    %c0_54 = arith.constant 0 : index
    %c0_55 = arith.constant 0 : index
    %144 = vector.load %arg10[%c0_53, %c0_54, %c0_55] : memref<1x1x128xf32, #tpu.memory_space<vmem>>, vector<1x1x128xf32>
    %145 = vector.shape_cast %144 : vector<1x1x128xf32> to vector<1x128xf32>
    %cst_56 = arith.constant dense<0.000000e+00> : vector<16xf32>
    %146 = vector.multi_reduction <add>, %141, %cst_56 [1] : vector<16x128xf32> to vector<16xf32>
    %147 = vector.shape_cast %146 : vector<16xf32> to vector<16x1xf32>
    %cst_57 = arith.constant 1.280000e+02 : f32
    %148 = vector.broadcast %cst_57 : f32 to vector<16x1xf32>
    %149 = arith.divf %147, %148 : vector<16x1xf32>
    %150 = vector.broadcast %149 : vector<16x1xf32> to vector<16x128xf32>
    %151 = arith.subf %141, %150 : vector<16x128xf32>
    %152 = arith.mulf %151, %151 : vector<16x128xf32>
    %cst_58 = arith.constant dense<0.000000e+00> : vector<16xf32>
    %153 = vector.multi_reduction <add>, %152, %cst_58 [1] : vector<16x128xf32> to vector<16xf32>
    %154 = vector.shape_cast %153 : vector<16xf32> to vector<16x1xf32>
    %cst_59 = arith.constant 1.280000e+02 : f32
    %155 = vector.broadcast %cst_59 : f32 to vector<16x1xf32>
    %156 = arith.divf %154, %155 : vector<16x1xf32>
    %cst_60 = arith.constant 9.99999997E-7 : f32
    %157 = vector.broadcast %cst_60 : f32 to vector<16x1xf32>
    %158 = arith.addf %156, %157 : vector<16x1xf32>
    %159 = math.rsqrt %158 : vector<16x1xf32>
    %160 = vector.broadcast %159 : vector<16x1xf32> to vector<16x128xf32>
    %161 = arith.mulf %151, %160 : vector<16x128xf32>
    %162 = vector.broadcast %143 : vector<1x128xf32> to vector<16x128xf32>
    %163 = arith.mulf %161, %162 : vector<16x128xf32>
    %164 = vector.broadcast %145 : vector<1x128xf32> to vector<16x128xf32>
    %165 = arith.addf %163, %164 : vector<16x128xf32>
    %166 = arith.truncf %165 : vector<16x128xf32> to vector<16x128xbf16>
    %c0_61 = arith.constant 0 : index
    %c0_62 = arith.constant 0 : index
    %c0_63 = arith.constant 0 : index
    %167 = vector.load %arg11[%c0_61, %c0_62, %c0_63] : memref<1x128x512xbf16, #tpu.memory_space<vmem>>, vector<1x128x512xbf16>
    %168 = vector.shape_cast %167 : vector<1x128x512xbf16> to vector<128x512xbf16>
    %cst_64 = arith.constant dense<0.000000e+00> : vector<16x512xf32>
    %169 = tpu.matmul %166, %168, %cst_64 {dimension_numbers = #tpu.dot_dimension_numbers<[1], [0], [0], [1], [0, 0, 1, 1], [], []>} : vector<16x128xbf16>, vector<128x512xbf16>, vector<16x512xf32> -> vector<16x512xf32>
    %c0_65 = arith.constant 0 : index
    %c0_66 = arith.constant 0 : index
    %c0_67 = arith.constant 0 : index
    %170 = vector.load %arg12[%c0_65, %c0_66, %c0_67] : memref<1x1x512xf32, #tpu.memory_space<vmem>>, vector<1x1x512xf32>
    %171 = vector.shape_cast %170 : vector<1x1x512xf32> to vector<1x512xf32>
    %172 = vector.broadcast %171 : vector<1x512xf32> to vector<16x512xf32>
    %173 = arith.addf %169, %172 : vector<16x512xf32>
    %174 = arith.mulf %173, %173 : vector<16x512xf32>
    %175 = arith.mulf %173, %174 : vector<16x512xf32>
    %cst_68 = arith.constant 4.471500e-02 : f32
    %176 = vector.broadcast %cst_68 : f32 to vector<16x512xf32>
    %177 = arith.mulf %176, %175 : vector<16x512xf32>
    %178 = arith.addf %173, %177 : vector<16x512xf32>
    %cst_69 = arith.constant 0.797884583 : f32
    %179 = vector.broadcast %cst_69 : f32 to vector<16x512xf32>
    %180 = arith.mulf %179, %178 : vector<16x512xf32>
    %181 = math.tanh %180 : vector<16x512xf32>
    %cst_70 = arith.constant 1.000000e+00 : f32
    %182 = vector.broadcast %cst_70 : f32 to vector<16x512xf32>
    %183 = arith.addf %182, %181 : vector<16x512xf32>
    %cst_71 = arith.constant 5.000000e-01 : f32
    %184 = vector.broadcast %cst_71 : f32 to vector<16x512xf32>
    %185 = arith.mulf %184, %183 : vector<16x512xf32>
    %186 = arith.mulf %173, %185 : vector<16x512xf32>
    %187 = arith.truncf %186 : vector<16x512xf32> to vector<16x512xbf16>
    %c0_72 = arith.constant 0 : index
    %c0_73 = arith.constant 0 : index
    %c0_74 = arith.constant 0 : index
    %188 = vector.load %arg13[%c0_72, %c0_73, %c0_74] : memref<1x512x128xbf16, #tpu.memory_space<vmem>>, vector<1x512x128xbf16>
    %189 = vector.shape_cast %188 : vector<1x512x128xbf16> to vector<512x128xbf16>
    %cst_75 = arith.constant dense<0.000000e+00> : vector<16x128xf32>
    %190 = tpu.matmul %187, %189, %cst_75 {dimension_numbers = #tpu.dot_dimension_numbers<[1], [0], [0], [1], [0, 0, 1, 1], [], []>} : vector<16x512xbf16>, vector<512x128xbf16>, vector<16x128xf32> -> vector<16x128xf32>
    %191 = arith.addf %141, %190 : vector<16x128xf32>
    %c0_76 = arith.constant 0 : index
    %c0_77 = arith.constant 0 : index
    %c0_78 = arith.constant 0 : index
    %192 = vector.load %arg14[%c0_76, %c0_77, %c0_78] : memref<1x1x128xf32, #tpu.memory_space<vmem>>, vector<1x1x128xf32>
    %193 = vector.shape_cast %192 : vector<1x1x128xf32> to vector<1x128xf32>
    %194 = vector.broadcast %193 : vector<1x128xf32> to vector<16x128xf32>
    %195 = arith.addf %191, %194 : vector<16x128xf32>
    %c1_i32 = arith.constant 1 : i32
    %196 = arith.cmpi slt, %arg1, %c1_i32 : i32
    %197 = arith.extui %196 : i1 to i32
    %c0_i32_79 = arith.constant 0 : i32
    %198 = arith.cmpi ne, %197, %c0_i32_79 : i32
    scf.if %198 {
      %c0_82 = arith.constant 0 : index
      %c0_83 = arith.constant 0 : index
      %c0_84 = arith.constant 0 : index
      %202 = vector.load %arg17[%c0_82, %c0_83, %c0_84] : memref<1x16x128xf32, #tpu.memory_space<vmem>>, vector<1x16x128xf32>
      %203 = vector.shape_cast %202 : vector<1x16x128xf32> to vector<16x128xf32>
      %204 = vector.shape_cast %195 : vector<16x128xf32> to vector<1x16x128xf32>
      tpu.vector_store %arg17[%c0_82, %c0_83, %c0_84], %204 {strides = array<i32>} : memref<1x16x128xf32, #tpu.memory_space<vmem>>, vector<1x16x128xf32>,
    } else {
    }
    %c1_i32_80 = arith.constant 1 : i32
    %199 = arith.cmpi eq, %arg1, %c1_i32_80 : i32
    %200 = arith.extui %199 : i1 to i32
    %c0_i32_81 = arith.constant 0 : i32
    %201 = arith.cmpi ne, %200, %c0_i32_81 : i32
    scf.if %201 {
      %c0_82 = arith.constant 0 : index
      %c0_83 = arith.constant 0 : index
      %202 = vector.load %arg15[%c0_82, %c0_83] : memref<1x128xf32, #tpu.memory_space<vmem>>, vector<1x128xf32>
      %c0_84 = arith.constant 0 : index
      %c0_85 = arith.constant 0 : index
      %203 = vector.load %arg16[%c0_84, %c0_85] : memref<1x128xf32, #tpu.memory_space<vmem>>, vector<1x128xf32>
      %cst_86 = arith.constant dense<0.000000e+00> : vector<16xf32>
      %204 = vector.multi_reduction <add>, %195, %cst_86 [1] : vector<16x128xf32> to vector<16xf32>
      %205 = vector.shape_cast %204 : vector<16xf32> to vector<16x1xf32>
      %cst_87 = arith.constant 1.280000e+02 : f32
      %206 = vector.broadcast %cst_87 : f32 to vector<16x1xf32>
      %207 = arith.divf %205, %206 : vector<16x1xf32>
      %208 = vector.broadcast %207 : vector<16x1xf32> to vector<16x128xf32>
      %209 = arith.subf %195, %208 : vector<16x128xf32>
      %210 = arith.mulf %209, %209 : vector<16x128xf32>
      %cst_88 = arith.constant dense<0.000000e+00> : vector<16xf32>
      %211 = vector.multi_reduction <add>, %210, %cst_88 [1] : vector<16x128xf32> to vector<16xf32>
      %212 = vector.shape_cast %211 : vector<16xf32> to vector<16x1xf32>
      %cst_89 = arith.constant 1.280000e+02 : f32
      %213 = vector.broadcast %cst_89 : f32 to vector<16x1xf32>
      %214 = arith.divf %212, %213 : vector<16x1xf32>
      %cst_90 = arith.constant 9.99999997E-7 : f32
      %215 = vector.broadcast %cst_90 : f32 to vector<16x1xf32>
      %216 = arith.addf %214, %215 : vector<16x1xf32>
      %217 = math.rsqrt %216 : vector<16x1xf32>
      %218 = vector.broadcast %217 : vector<16x1xf32> to vector<16x128xf32>
      %219 = arith.mulf %209, %218 : vector<16x128xf32>
      %220 = vector.broadcast %202 : vector<1x128xf32> to vector<16x128xf32>
      %221 = arith.mulf %219, %220 : vector<16x128xf32>
      %222 = vector.broadcast %203 : vector<1x128xf32> to vector<16x128xf32>
      %223 = arith.addf %221, %222 : vector<16x128xf32>
      %c0_91 = arith.constant 0 : index
      %c0_92 = arith.constant 0 : index
      %c0_93 = arith.constant 0 : index
      %224 = vector.load %arg17[%c0_91, %c0_92, %c0_93] : memref<1x16x128xf32, #tpu.memory_space<vmem>>, vector<1x16x128xf32>
      %225 = vector.shape_cast %224 : vector<1x16x128xf32> to vector<16x128xf32>
      %226 = vector.shape_cast %223 : vector<16x128xf32> to vector<1x16x128xf32>
      tpu.vector_store %arg17[%c0_91, %c0_92, %c0_93], %226 {strides = array<i32>} : memref<1x16x128xf32, #tpu.memory_space<vmem>>, vector<1x16x128xf32>,
    } else {
    }
    return
  }
  func.func @transform_0(%arg0: i32, %arg1: i32) -> (i32, i32, i32) {
    %c0_i32 = arith.constant 0 : i32
    %c0_i32_0 = arith.constant 0 : i32
    %c0_i32_1 = arith.constant 0 : i32
    return %arg0, %c0_i32, %c0_i32_0 : i32, i32, i32
  }
  func.func @transform_1(%arg0: i32, %arg1: i32) -> (i32, i32, i32) {
    %c0_i32 = arith.constant 0 : i32
    %c0_i32_0 = arith.constant 0 : i32
    %c0_i32_1 = arith.constant 0 : i32
    return %arg1, %c0_i32, %c0_i32_0 : i32, i32, i32
  }
  func.func @transform_2(%arg0: i32, %arg1: i32) -> (i32, i32, i32) {
    %c0_i32 = arith.constant 0 : i32
    %c0_i32_0 = arith.constant 0 : i32
    %c0_i32_1 = arith.constant 0 : i32
    return %arg1, %c0_i32, %c0_i32_0 : i32, i32, i32
  }
  func.func @transform_3(%arg0: i32, %arg1: i32) -> (i32, i32, i32) {
    %c0_i32 = arith.constant 0 : i32
    %c0_i32_0 = arith.constant 0 : i32
    %c0_i32_1 = arith.constant 0 : i32
    return %arg1, %c0_i32, %c0_i32_0 : i32, i32, i32
  }
  func.func @transform_4(%arg0: i32, %arg1: i32) -> (i32, i32, i32) {
    %c0_i32 = arith.constant 0 : i32
    %c0_i32_0 = arith.constant 0 : i32
    %c0_i32_1 = arith.constant 0 : i32
    return %arg1, %c0_i32, %c0_i32_0 : i32, i32, i32
  }
  func.func @transform_5(%arg0: i32, %arg1: i32) -> (i32, i32, i32) {
    %c0_i32 = arith.constant 0 : i32
    %c0_i32_0 = arith.constant 0 : i32
    %c0_i32_1 = arith.constant 0 : i32
    return %arg1, %c0_i32, %c0_i32_0 : i32, i32, i32
  }
  func.func @transform_6(%arg0: i32, %arg1: i32) -> (i32, i32, i32) {
    %c0_i32 = arith.constant 0 : i32
    %c0_i32_0 = arith.constant 0 : i32
    %c0_i32_1 = arith.constant 0 : i32
    return %arg1, %c0_i32, %c0_i32_0 : i32, i32, i32
  }
  func.func @transform_7(%arg0: i32, %arg1: i32) -> (i32, i32, i32) {
    %c0_i32 = arith.constant 0 : i32
    %c0_i32_0 = arith.constant 0 : i32
    %c0_i32_1 = arith.constant 0 : i32
    return %arg1, %c0_i32, %c0_i32_0 : i32, i32, i32
  }
  func.func @transform_8(%arg0: i32, %arg1: i32) -> (i32, i32, i32) {
    %c0_i32 = arith.constant 0 : i32
    %c0_i32_0 = arith.constant 0 : i32
    %c0_i32_1 = arith.constant 0 : i32
    return %arg1, %c0_i32, %c0_i32_0 : i32, i32, i32
  }
  func.func @transform_9(%arg0: i32, %arg1: i32) -> (i32, i32, i32) {
    %c0_i32 = arith.constant 0 : i32
    %c0_i32_0 = arith.constant 0 : i32
    %c0_i32_1 = arith.constant 0 : i32
    return %arg1, %c0_i32, %c0_i32_0 : i32, i32, i32
  }
  func.func @transform_10(%arg0: i32, %arg1: i32) -> (i32, i32, i32) {
    %c0_i32 = arith.constant 0 : i32
    %c0_i32_0 = arith.constant 0 : i32
    %c0_i32_1 = arith.constant 0 : i32
    return %arg1, %c0_i32, %c0_i32_0 : i32, i32, i32
  }
  func.func @transform_11(%arg0: i32, %arg1: i32) -> (i32, i32, i32) {
    %c0_i32 = arith.constant 0 : i32
    %c0_i32_0 = arith.constant 0 : i32
    %c0_i32_1 = arith.constant 0 : i32
    return %arg1, %c0_i32, %c0_i32_0 : i32, i32, i32
  }
  func.func @transform_12(%arg0: i32, %arg1: i32) -> (i32, i32, i32) {
    %c0_i32 = arith.constant 0 : i32
    %c0_i32_0 = arith.constant 0 : i32
    %c0_i32_1 = arith.constant 0 : i32
    return %arg1, %c0_i32, %c0_i32_0 : i32, i32, i32
  }
  func.func @transform_13(%arg0: i32, %arg1: i32) -> (i32, i32) {
    %c0_i32 = arith.constant 0 : i32
    %c0_i32_0 = arith.constant 0 : i32
    %c0_i32_1 = arith.constant 0 : i32
    return %c0_i32, %c0_i32_0 : i32, i32
  }
  func.func @transform_14(%arg0: i32, %arg1: i32) -> (i32, i32) {
    %c0_i32 = arith.constant 0 : i32
    %c0_i32_0 = arith.constant 0 : i32
    %c0_i32_1 = arith.constant 0 : i32
    return %c0_i32, %c0_i32_0 : i32, i32
  }
  func.func @transform_15(%arg0: i32, %arg1: i32) -> (i32, i32, i32) {
    %c0_i32 = arith.constant 0 : i32
    %c0_i32_0 = arith.constant 0 : i32
    %c0_i32_1 = arith.constant 0 : i32
    return %arg0, %c0_i32, %c0_i32_0 : i32, i32, i32
  }
}

</mosaic_0001>

<llo_original>
// kernel: feature_vit_forward.2
$region0: #{feature_vit_forward.2}
  #allocation0 [shape = 'u32[]', space=smem, size = 0x4, offset = 0x4, fixed_abs, tag = 'smem constant byte address 0x4 - core index']
  #allocation1 [shape = 'u32[144,128]{1,0:T(1,128)}', space=vmem, size = 0x12000, scoped, tag = 'internal scratch']
  %s0 = inlined_call_operand.vmem [shape: bf16[2,8,768], index: 0, kind: input, shape index: {}]
  %s1 = inlined_call_operand.vmem [shape: bf16[768,128], index: 1, kind: input, shape index: {}]
  %s2 = inlined_call_operand.vmem [shape: f32[1,128], index: 2, kind: input, shape index: {}]
  %s3 = inlined_call_operand.vmem [shape: f32[16,128], index: 3, kind: input, shape index: {}]
  %s4 = inlined_call_operand.vmem [shape: f32[1,128], index: 4, kind: input, shape index: {}]
  %s5 = inlined_call_operand.vmem [shape: f32[1,128], index: 5, kind: input, shape index: {}]
  %s6 = inlined_call_operand.vmem [shape: bf16[2,16,128], index: 6, kind: output, shape index: {}]
  %s7 = sld [smem:[#allocation0]]
  $region57: #{feature_vit_forward.2} parent=0
    _
  %s9 = ssub.s32 1, %s7
  %s10 = scalar_select 0, %s9, %s7
  loop: start=0, step=1, limit=4
  $region2: #{feature_vit_forward.2} parent=0 // loop_pre_header
    _
  $region3: #{feature_vit_forward.2} parent=0 // loop_header
    %s12 = sphi 0, %s16
    %p13 = scmp.ge.s32.totalorder %s12, 4
    %s22 = sphi 0, %s24
    %s25 = sphi 0, %s22
    %s26 = sphi 0, %s25
    %s42 = sphi 0, %s26
    %s46 = sphi 0, %s46
    %s48 = sphi 0, %s46
    %s49 = sphi 0, %s48
    %s63 = sphi 0, %s49
    %s67 = sphi 0, %s67
    %s69 = sphi 0, %s67
    %s70 = sphi 0, %s69
    %s84 = sphi 0, %s70
    %s88 = sphi 0, %s88
    %s90 = sphi 0, %s88
    %s91 = sphi 0, %s90
    %s105 = sphi 0, %s91
    %s109 = sphi 0, %s109
    %s111 = sphi 0, %s109
    %s112 = sphi 0, %s111
    %s126 = sphi 0, %s112
    %s130 = sphi 0, %s130
    %s132 = sphi 0, %s130
    %s133 = sphi 0, %s132
    %s147 = sphi 0, %s133
    %s153 = sphi 0, %s155
    %s156 = sphi 0, %s153
    %s157 = sphi 0, %s156
    %s173 = sphi 0, %s157
  $region4: #{feature_vit_forward.2} parent=0 // loop_header_branch
    %15 = sbr.rel (%p13) target = $region8
  $region5: #{feature_vit_forward.2} parent=0 // loop_body
    %s17 = ssub.s32 %s12, 1
    %s18 = ssub.s32 %s12, 2
    %s19 = sadd.s32 %s12, 1
    %s20 = ssub.s32 %s12, %s19
    %p21 = scmp.eq.s32.totalorder %s20, 0
    %s23 = sadd.s32 %s22, 1
    %s24 = scalar_select %p21, %s22, %s23
    %p27 = pneg %p21
    %p28 = scmp.eq.s32.totalorder %s12, 1
    %p29 = por %p27, %p28
    %p30 = scmp.ne.s32.totalorder %s22, %s25
    %p31 = scmp.eq.s32.totalorder %s12, 0
    %p32 = por %p30, %p31
    %p33 = scmp.ne.s32.totalorder %s22, %s25
    %p34 = scmp.eq.s32.totalorder %s17, 1
    %p35 = por %p33, %p34
    %p36 = scmp.ne.s32.totalorder %s25, %s26
    %p37 = scmp.eq.s32.totalorder %s17, 0
    %p38 = por %p36, %p37
    %p39 = scmp.ne.s32.totalorder %s25, %s26
    %p40 = scmp.eq.s32.totalorder %s18, 1
    %p41 = por %p39, %p40
    %p43 = scmp.ne.s32.totalorder %s26, %s42
    %p44 = scmp.eq.s32.totalorder %s18, 0
    %p45 = por %p43, %p44
    %s47 = sadd.s32 %s46, 1
    %p50 = scmp.eq.s32.totalorder %s12, 1
    %p51 = scmp.ne.s32.totalorder %s46, %s48
    %p52 = scmp.eq.s32.totalorder %s12, 0
    %p53 = por %p51, %p52
    %p54 = scmp.ne.s32.totalorder %s46, %s48
    %p55 = scmp.eq.s32.totalorder %s17, 1
    %p56 = por %p54, %p55
    %p57 = scmp.ne.s32.totalorder %s48, %s49
    %p58 = scmp.eq.s32.totalorder %s17, 0
    %p59 = por %p57, %p58
    %p60 = scmp.ne.s32.totalorder %s48, %s49
    %p61 = scmp.eq.s32.totalorder %s18, 1
    %p62 = por %p60, %p61
    %p64 = scmp.ne.s32.totalorder %s49, %s63
    %p65 = scmp.eq.s32.totalorder %s18, 0
    %p66 = por %p64, %p65
    %s68 = sadd.s32 %s67, 1
    %p71 = scmp.eq.s32.totalorder %s12, 1
    %p72 = scmp.ne.s32.totalorder %s67, %s69
    %p73 = scmp.eq.s32.totalorder %s12, 0
    %p74 = por %p72, %p73
    %p75 = scmp.ne.s32.totalorder %s67, %s69
    %p76 = scmp.eq.s32.totalorder %s17, 1
    %p77 = por %p75, %p76
    %p78 = scmp.ne.s32.totalorder %s69, %s70
    %p79 = scmp.eq.s32.totalorder %s17, 0
    %p80 = por %p78, %p79
    %p81 = scmp.ne.s32.totalorder %s69, %s70
    %p82 = scmp.eq.s32.totalorder %s18, 1
    %p83 = por %p81, %p82
    %p85 = scmp.ne.s32.totalorder %s70, %s84
    %p86 = scmp.eq.s32.totalorder %s18, 0
    %p87 = por %p85, %p86
    %s89 = sadd.s32 %s88, 1
    %p92 = scmp.eq.s32.totalorder %s12, 1
    %p93 = scmp.ne.s32.totalorder %s88, %s90
    %p94 = scmp.eq.s32.totalorder %s12, 0
    %p95 = por %p93, %p94
    %p96 = scmp.ne.s32.totalorder %s88, %s90
    %p97 = scmp.eq.s32.totalorder %s17, 1
    %p98 = por %p96, %p97
    %p99 = scmp.ne.s32.totalorder %s90, %s91
    %p100 = scmp.eq.s32.totalorder %s17, 0
    %p101 = por %p99, %p100
    %p102 = scmp.ne.s32.totalorder %s90, %s91
    %p103 = scmp.eq.s32.totalorder %s18, 1
    %p104 = por %p102, %p103
    %p106 = scmp.ne.s32.totalorder %s91, %s105
    %p107 = scmp.eq.s32.totalorder %s18, 0
    %p108 = por %p106, %p107
    %s110 = sadd.s32 %s109, 1
    %p113 = scmp.eq.s32.totalorder %s12, 1
    %p114 = scmp.ne.s32.totalorder %s109, %s111
    %p115 = scmp.eq.s32.totalorder %s12, 0
    %p116 = por %p114, %p115
    %p117 = scmp.ne.s32.totalorder %s109, %s111
    %p118 = scmp.eq.s32.totalorder %s17, 1
    %p119 = por %p117, %p118
    %p120 = scmp.ne.s32.totalorder %s111, %s112
    %p121 = scmp.eq.s32.totalorder %s17, 0
    %p122 = por %p120, %p121
    %p123 = scmp.ne.s32.totalorder %s111, %s112
    %p124 = scmp.eq.s32.totalorder %s18, 1
    %p125 = por %p123, %p124
    %p127 = scmp.ne.s32.totalorder %s112, %s126
    %p128 = scmp.eq.s32.totalorder %s18, 0
    %p129 = por %p127, %p128
    %s131 = sadd.s32 %s130, 1
    %p134 = scmp.eq.s32.totalorder %s12, 1
    %p135 = scmp.ne.s32.totalorder %s130, %s132
    %p136 = scmp.eq.s32.totalorder %s12, 0
    %p137 = por %p135, %p136
    %p138 = scmp.ne.s32.totalorder %s130, %s132
    %p139 = scmp.eq.s32.totalorder %s17, 1
    %p140 = por %p138, %p139
    %p141 = scmp.ne.s32.totalorder %s132, %s133
    %p142 = scmp.eq.s32.totalorder %s17, 0
    %p143 = por %p141, %p142
    %p144 = scmp.ne.s32.totalorder %s132, %s133
    %p145 = scmp.eq.s32.totalorder %s18, 1
    %p146 = por %p144, %p145
    %p148 = scmp.ne.s32.totalorder %s133, %s147
    %p149 = scmp.eq.s32.totalorder %s18, 0
    %p150 = por %p148, %p149
    %s151 = ssub.s32 %s12, %s19
    %p152 = scmp.eq.s32.totalorder %s151, 0
    %s154 = sadd.s32 %s153, 1
    %s155 = scalar_select %p152, %s153, %s154
    %p158 = pneg %p152
    %p159 = scmp.eq.s32.totalorder %s12, 1
    %p160 = por %p158, %p159
    %p161 = scmp.ne.s32.totalorder %s153, %s156
    %p162 = scmp.eq.s32.totalorder %s12, 0
    %p163 = por %p161, %p162
    %p164 = scmp.ne.s32.totalorder %s153, %s156
    %p165 = scmp.eq.s32.totalorder %s17, 1
    %p166 = por %p164, %p165
    %p167 = scmp.ne.s32.totalorder %s156, %s157
    %p168 = scmp.eq.s32.totalorder %s17, 0
    %p169 = por %p167, %p168
    %p170 = scmp.ne.s32.totalorder %s156, %s157
    %p171 = scmp.eq.s32.totalorder %s18, 1
    %p172 = por %p170, %p171
    %p174 = scmp.ne.s32.totalorder %s157, %s173
    %p175 = scmp.eq.s32.totalorder %s18, 0
    %p176 = por %p174, %p175
    %p177 = scmp.le.s32.totalorder 1, %s12
    %p178 = scmp.lt.s32.totalorder %s12, 3
    %p179 = pnand %p177, %p178
    %p180 = pneg %p179
    // Predicated region
    $region9: #{feature_vit_forward.2} parent=5 // pred_check
      _
    $region10: #{feature_vit_forward.2} parent=5 // pred_check_branch
      %182 = sbr.rel (%p179) target = $region12
    $region11: #{feature_vit_forward.2} parent=5 // pred_region
      %s183 = ssub.s32 %s12, 1
      // Predicated region
      $region13: #{feature_vit_forward.2} parent=11 // pred_check
        %p184 = pneg %p59
      $region14: #{feature_vit_forward.2} parent=11 // pred_check_branch
        %186 = sbr.rel (%p184) target = $region16
      $region15: #{feature_vit_forward.2} parent=11 // pred_region
        _
      $region16: #{feature_vit_forward.2} parent=11 // pred_fallthru
        _
      // Predicated region
      $region17: #{feature_vit_forward.2} parent=11 // pred_check
        %p187 = pneg %p80
      $region18: #{feature_vit_forward.2} parent=11 // pred_check_branch
        %189 = sbr.rel (%p187) target = $region20
      $region19: #{feature_vit_forward.2} parent=11 // pred_region
        _
      $region20: #{feature_vit_forward.2} parent=11 // pred_fallthru
        _
      // Predicated region
      $region21: #{feature_vit_forward.2} parent=11 // pred_check
        %p190 = pneg %p101
      $region22: #{feature_vit_forward.2} parent=11 // pred_check_branch
        %192 = sbr.rel (%p190) target = $region24
      $region23: #{feature_vit_forward.2} parent=11 // pred_region
        _
      $region24: #{feature_vit_forward.2} parent=11 // pred_fallthru
        _
      // Predicated region
      $region25: #{feature_vit_forward.2} parent=11 // pred_check
        %p193 = pneg %p122
      $region26: #{feature_vit_forward.2} parent=11 // pred_check_branch
        %195 = sbr.rel (%p193) target = $region28
      $region27: #{feature_vit_forward.2} parent=11 // pred_region
        _
      $region28: #{feature_vit_forward.2} parent=11 // pred_fallthru
        _
      // Predicated region
      $region29: #{feature_vit_forward.2} parent=11 // pred_check
        %p196 = pneg %p143
      $region30: #{feature_vit_forward.2} parent=11 // pred_check_branch
        %198 = sbr.rel (%p196) target = $region32
      $region31: #{feature_vit_forward.2} parent=11 // pred_region
        _
      $region32: #{feature_vit_forward.2} parent=11 // pred_fallthru
        _
    $region12: #{feature_vit_forward.2} parent=5 // pred_fallthru
      _
    %p199 = scmp.lt.s32.totalorder %s12, 2
    // Predicated region
    $region33: #{feature_vit_forward.2} parent=5 // pred_check
      %p200 = pneg %p199
    $region34: #{feature_vit_forward.2} parent=5 // pred_check_branch
      %202 = sbr.rel (%p200) target = $region36
    $region35: #{feature_vit_forward.2} parent=5 // pred_region
      // Predicated region
      $region37: #{feature_vit_forward.2} parent=35 // pred_check
        %p203 = pneg %p32
      $region38: #{feature_vit_forward.2} parent=35 // pred_check_branch
        %205 = sbr.rel (%p203) target = $region40
      $region39: #{feature_vit_forward.2} parent=35 // pred_region
        %p206 = scmp.lt.s32.totalorder %s12, 1
        %s207 = scalar_select %p206, %s12, 1
        %s208 = smul.addr %s207, 6
        %s209 = smul.addr %s208, 4
        %s210 = scalar_lea.vmem %s0, %s209
      $region40: #{feature_vit_forward.2} parent=35 // pred_fallthru
        _
    $region36: #{feature_vit_forward.2} parent=5 // pred_fallthru
      _
    %p211 = scmp.le.s32.totalorder 1, %s12
    %p212 = scmp.lt.s32.totalorder %s12, 3
    %p213 = pnand %p211, %p212
    %p214 = pneg %p213
    // Predicated region
    $region41: #{feature_vit_forward.2} parent=5 // pred_check
      _
    $region42: #{feature_vit_forward.2} parent=5 // pred_check_branch
      %216 = sbr.rel (%p213) target = $region44
    $region43: #{feature_vit_forward.2} parent=5 // pred_region
      %s217 = ssub.s32 %s12, 1
      %p218 = scmp.lt.s32.totalorder %s17, 1
      %s219 = scalar_select %p218, %s17, 1
      %s220 = smul.addr %s219, 6
      %s221 = smul.addr %s220, 4
      %s222 = scalar_lea.vmem %s0, %s221
      %p223 = pneg %p38
      %p224 = pneg %p35
      %p225 = pneg %p59
      %p226 = pneg %p56
      %p227 = pneg %p80
      %p228 = pneg %p77
      %p229 = pneg %p101
      %p230 = pneg %p98
      %p231 = pneg %p122
      %p232 = pneg %p119
      %p233 = pneg %p143
      %p234 = pneg %p140
      %p235 = pneg %p169
      %p236 = pneg %p166
      %p237 = scmp.lt.s32.totalorder %s17, 1
      %s238 = scalar_select %p237, %s17, 1
      %s239 = smul.addr %s238, 2
      %s240 = smul.addr %s239, 4
      %s241 = scalar_lea.vmem %s6, %s240
      %p242 = scmp.lt.s32.totalorder %s17, 1
      %s243 = scalar_select %p242, %s17, 1
      %s244 = smul.addr %s243, 6
      %s245 = smul.addr %s244, 4
      %s246 = scalar_lea.vmem %s0, %s245
      %p247 = scmp.lt.s32.totalorder %s17, 1
      %s248 = scalar_select %p247, %s17, 1
      %s249 = smul.addr %s248, 2
      %s250 = smul.addr %s249, 4
      %s251 = scalar_lea.vmem %s6, %s250
      %v253 = vld [vmem:[%s246] sm:$0xff]
      %v254 = vld [vmem:[%s246 + $0x8] sm:$0xff]
      %v255 = vld [vmem:[%s246 + $0x10] sm:$0xff]
      %v256 = vld [vmem:[%s1] sm:$0xf]
      %v257 = vld [vmem:[%s1 + $0x4] sm:$0xf]
      %v258 = vld [vmem:[%s1 + $0x8] sm:$0xf]
      %v259 = vld [vmem:[%s1 + $0xc] sm:$0xf]
      %v260 = vld [vmem:[%s1 + $0x10] sm:$0xf]
      %v261 = vld [vmem:[%s1 + $0x14] sm:$0xf]
      %v262 = vld [vmem:[%s1 + $0x18] sm:$0xf]
      %v263 = vld [vmem:[%s1 + $0x1c] sm:$0xf]
      %v264 = vld [vmem:[%s1 + $0x20] sm:$0xf]
      %v265 = vld [vmem:[%s1 + $0x24] sm:$0xf]
      %v266 = vld [vmem:[%s1 + $0x28] sm:$0xf]
      %v267 = vld [vmem:[%s1 + $0x2c] sm:$0xf]
      %v268 = vld [vmem:[%s1 + $0x30] sm:$0xf]
      %v269 = vld [vmem:[%s1 + $0x34] sm:$0xf]
      %v270 = vld [vmem:[%s1 + $0x38] sm:$0xf]
      %v271 = vld [vmem:[%s1 + $0x3c] sm:$0xf]
      %v272 = vld [vmem:[%s1 + $0x40] sm:$0xf]
      %v273 = vld [vmem:[%s1 + $0x44] sm:$0xf]
      %v274 = vld [vmem:[%s1 + $0x48] sm:$0xf]
      %v275 = vld [vmem:[%s1 + $0x4c] sm:$0xf]
      %v276 = vld [vmem:[%s1 + $0x50] sm:$0xf]
      %v277 = vld [vmem:[%s1 + $0x54] sm:$0xf]
      %v278 = vld [vmem:[%s1 + $0x58] sm:$0xf]
      %v279 = vld [vmem:[%s1 + $0x5c] sm:$0xf]
      %v280 = vld [vmem:[%s1 + $0x60] sm:$0xf]
      %v281 = vld [vmem:[%s1 + $0x64] sm:$0xf]
      %v282 = vld [vmem:[%s1 + $0x68] sm:$0xf]
      %v283 = vld [vmem:[%s1 + $0x6c] sm:$0xf]
      %v284 = vld [vmem:[%s1 + $0x70] sm:$0xf]
      %v285 = vld [vmem:[%s1 + $0x74] sm:$0xf]
      %v286 = vld [vmem:[%s1 + $0x78] sm:$0xf]
      %v287 = vld [vmem:[%s1 + $0x7c] sm:$0xf]
      %v288 = vld [vmem:[%s1 + $0x80] sm:$0xf]
      %v289 = vld [vmem:[%s1 + $0x84] sm:$0xf]
      %v290 = vld [vmem:[%s1 + $0x88] sm:$0xf]
      %v291 = vld [vmem:[%s1 + $0x8c] sm:$0xf]
      %v292 = vld [vmem:[%s1 + $0x90] sm:$0xf]
      %v293 = vld [vmem:[%s1 + $0x94] sm:$0xf]
      %v294 = vld [vmem:[%s1 + $0x98] sm:$0xf]
      %v295 = vld [vmem:[%s1 + $0x9c] sm:$0xf]
      %v296 = vld [vmem:[%s1 + $0xa0] sm:$0xf]
      %v297 = vld [vmem:[%s1 + $0xa4] sm:$0xf]
      %v298 = vld [vmem:[%s1 + $0xa8] sm:$0xf]
      %v299 = vld [vmem:[%s1 + $0xac] sm:$0xf]
      %v300 = vld [vmem:[%s1 + $0xb0] sm:$0xf]
      %v301 = vld [vmem:[%s1 + $0xb4] sm:$0xf]
      %v302 = vld [vmem:[%s1 + $0xb8] sm:$0xf]
      %v303 = vld [vmem:[%s1 + $0xbc] sm:$0xf]
      %v304 = vld [vmem:[%s1 + $0xc0] sm:$0xf]
      %v305 = vld [vmem:[%s1 + $0xc4] sm:$0xf]
      %v306 = vld [vmem:[%s1 + $0xc8] sm:$0xf]
      %v307 = vld [vmem:[%s1 + $0xcc] sm:$0xf]
      %v308 = vld [vmem:[%s1 + $0xd0] sm:$0xf]
      %v309 = vld [vmem:[%s1 + $0xd4] sm:$0xf]
      %v310 = vld [vmem:[%s1 + $0xd8] sm:$0xf]
      %v311 = vld [vmem:[%s1 + $0xdc] sm:$0xf]
      %v312 = vld [vmem:[%s1 + $0xe0] sm:$0xf]
      %v313 = vld [vmem:[%s1 + $0xe4] sm:$0xf]
      %v314 = vld [vmem:[%s1 + $0xe8] sm:$0xf]
      %v315 = vld [vmem:[%s1 + $0xec] sm:$0xf]
      %v316 = vld [vmem:[%s1 + $0xf0] sm:$0xf]
      %v317 = vld [vmem:[%s1 + $0xf4] sm:$0xf]
      %v318 = vld [vmem:[%s1 + $0xf8] sm:$0xf]
      %v319 = vld [vmem:[%s1 + $0xfc] sm:$0xf]
      %v320 = vld [vmem:[%s1 + $0x100] sm:$0xf]
      %v321 = vld [vmem:[%s1 + $0x104] sm:$0xf]
      %v322 = vld [vmem:[%s1 + $0x108] sm:$0xf]
      %v323 = vld [vmem:[%s1 + $0x10c] sm:$0xf]
      %v324 = vld [vmem:[%s1 + $0x110] sm:$0xf]
      %v325 = vld [vmem:[%s1 + $0x114] sm:$0xf]
      %v326 = vld [vmem:[%s1 + $0x118] sm:$0xf]
      %v327 = vld [vmem:[%s1 + $0x11c] sm:$0xf]
      %v328 = vld [vmem:[%s1 + $0x120] sm:$0xf]
      %v329 = vld [vmem:[%s1 + $0x124] sm:$0xf]
      %v330 = vld [vmem:[%s1 + $0x128] sm:$0xf]
      %v331 = vld [vmem:[%s1 + $0x12c] sm:$0xf]
      %v332 = vld [vmem:[%s1 + $0x130] sm:$0xf]
      %v333 = vld [vmem:[%s1 + $0x134] sm:$0xf]
      %v334 = vld [vmem:[%s1 + $0x138] sm:$0xf]
      %v335 = vld [vmem:[%s1 + $0x13c] sm:$0xf]
      %v336 = vld [vmem:[%s1 + $0x140] sm:$0xf]
      %v337 = vld [vmem:[%s1 + $0x144] sm:$0xf]
      %v338 = vld [vmem:[%s1 + $0x148] sm:$0xf]
      %v339 = vld [vmem:[%s1 + $0x14c] sm:$0xf]
      %v340 = vld [vmem:[%s1 + $0x150] sm:$0xf]
      %v341 = vld [vmem:[%s1 + $0x154] sm:$0xf]
      %v342 = vld [vmem:[%s1 + $0x158] sm:$0xf]
      %v343 = vld [vmem:[%s1 + $0x15c] sm:$0xf]
      %v344 = vld [vmem:[%s1 + $0x160] sm:$0xf]
      %v345 = vld [vmem:[%s1 + $0x164] sm:$0xf]
      %v346 = vld [vmem:[%s1 + $0x168] sm:$0xf]
      %v347 = vld [vmem:[%s1 + $0x16c] sm:$0xf]
      %v348 = vld [vmem:[%s1 + $0x170] sm:$0xf]
      %v349 = vld [vmem:[%s1 + $0x174] sm:$0xf]
      %v350 = vld [vmem:[%s1 + $0x178] sm:$0xf]
      %v351 = vld [vmem:[%s1 + $0x17c] sm:$0xf]
      %v355 = vunpack.c.l.b16 %v253
      %v356 = vunpack.c.h.b16 %v253
      %v357 = vunpack.c.l.b16 %v254
      %v358 = vunpack.c.h.b16 %v254
      %v359 = vunpack.c.l.b16 %v255
      %v360 = vunpack.c.h.b16 %v255
      %v361 = vpack.c.b16 %v355, %v355
      %v362 = vpack.c.b16 %v356, %v356
      %v363 = vpack.c.b16 %v357, %v357
      %v364 = vpack.c.b16 %v358, %v358
      %v365 = vpack.c.b16 %v359, %v359
      %v366 = vpack.c.b16 %v360, %v360
      %v469 = vunpack.c.l.b16 %v256
      %v470 = vunpack.c.l.b16 %v257
      %v471 = vunpack.c.l.b16 %v258
      %v472 = vunpack.c.l.b16 %v259
      %v473 = vunpack.c.l.b16 %v260
      %v474 = vunpack.c.l.b16 %v261
      %v475 = vunpack.c.l.b16 %v262
      %v476 = vunpack.c.l.b16 %v263
      %v477 = vunpack.c.l.b16 %v264
      %v478 = vunpack.c.l.b16 %v265
      %v479 = vunpack.c.l.b16 %v266
      %v480 = vunpack.c.l.b16 %v267
      %v481 = vunpack.c.l.b16 %v268
      %v482 = vunpack.c.l.b16 %v269
      %v483 = vunpack.c.l.b16 %v270
      %v484 = vunpack.c.l.b16 %v271
      %v485 = vunpack.c.l.b16 %v272
      %v486 = vunpack.c.l.b16 %v273
      %v487 = vunpack.c.l.b16 %v274
      %v488 = vunpack.c.l.b16 %v275
      %v489 = vunpack.c.l.b16 %v276
      %v490 = vunpack.c.l.b16 %v277
      %v491 = vunpack.c.l.b16 %v278
      %v492 = vunpack.c.l.b16 %v279
      %v493 = vunpack.c.l.b16 %v280
      %v494 = vunpack.c.l.b16 %v281
      %v495 = vunpack.c.l.b16 %v282
      %v496 = vunpack.c.l.b16 %v283
      %v497 = vunpack.c.l.b16 %v284
      %v498 = vunpack.c.l.b16 %v285
      %v499 = vunpack.c.l.b16 %v286
      %v500 = vunpack.c.l.b16 %v287
      %v501 = vunpack.c.l.b16 %v288
      %v502 = vunpack.c.l.b16 %v289
      %v503 = vunpack.c.l.b16 %v290
      %v504 = vunpack.c.l.b16 %v291
      %v505 = vunpack.c.l.b16 %v292
      %v506 = vunpack.c.l.b16 %v293
      %v507 = vunpack.c.l.b16 %v294
      %v508 = vunpack.c.l.b16 %v295
      %v509 = vunpack.c.l.b16 %v296
      %v510 = vunpack.c.l.b16 %v297
      %v511 = vunpack.c.l.b16 %v298
      %v512 = vunpack.c.l.b16 %v299
      %v513 = vunpack.c.l.b16 %v300
      %v514 = vunpack.c.l.b16 %v301
      %v515 = vunpack.c.l.b16 %v302
      %v516 = vunpack.c.l.b16 %v303
      %v517 = vunpack.c.l.b16 %v304
      %v518 = vunpack.c.l.b16 %v305
      %v519 = vunpack.c.l.b16 %v306
      %v520 = vunpack.c.l.b16 %v307
      %v521 = vunpack.c.l.b16 %v308
      %v522 = vunpack.c.l.b16 %v309
      %v523 = vunpack.c.l.b16 %v310
      %v524 = vunpack.c.l.b16 %v311
      %v525 = vunpack.c.l.b16 %v312
      %v526 = vunpack.c.l.b16 %v313
      %v527 = vunpack.c.l.b16 %v314
      %v528 = vunpack.c.l.b16 %v315
      %v529 = vunpack.c.l.b16 %v316
      %v530 = vunpack.c.l.b16 %v317
      %v531 = vunpack.c.l.b16 %v318
      %v532 = vunpack.c.l.b16 %v319
      %v533 = vunpack.c.l.b16 %v320
      %v534 = vunpack.c.l.b16 %v321
      %v535 = vunpack.c.l.b16 %v322
      %v536 = vunpack.c.l.b16 %v323
      %v537 = vunpack.c.l.b16 %v324
      %v538 = vunpack.c.l.b16 %v325
      %v539 = vunpack.c.l.b16 %v326
      %v540 = vunpack.c.l.b16 %v327
      %v541 = vunpack.c.l.b16 %v328
      %v542 = vunpack.c.l.b16 %v329
      %v543 = vunpack.c.l.b16 %v330
      %v544 = vunpack.c.l.b16 %v331
      %v545 = vunpack.c.l.b16 %v332
      %v546 = vunpack.c.l.b16 %v333
      %v547 = vunpack.c.l.b16 %v334
      %v548 = vunpack.c.l.b16 %v335
      %v549 = vunpack.c.l.b16 %v336
      %v550 = vunpack.c.l.b16 %v337
      %v551 = vunpack.c.l.b16 %v338
      %v552 = vunpack.c.l.b16 %v339
      %v553 = vunpack.c.l.b16 %v340
      %v554 = vunpack.c.l.b16 %v341
      %v555 = vunpack.c.l.b16 %v342
      %v556 = vunpack.c.l.b16 %v343
      %v557 = vunpack.c.l.b16 %v344
      %v558 = vunpack.c.l.b16 %v345
      %v559 = vunpack.c.l.b16 %v346
      %v560 = vunpack.c.l.b16 %v347
      %v561 = vunpack.c.l.b16 %v348
      %v562 = vunpack.c.l.b16 %v349
      %v563 = vunpack.c.l.b16 %v350
      %v564 = vunpack.c.l.b16 %v351
      %v565 = vpack.c.b16 %v470, %v469
      %v566 = vpack.c.b16 %v472, %v471
      %v567 = vpack.c.b16 %v474, %v473
      %v568 = vpack.c.b16 %v476, %v475
      %v569 = vpack.c.b16 %v478, %v477
      %v570 = vpack.c.b16 %v480, %v479
      %v571 = vpack.c.b16 %v482, %v481
      %v572 = vpack.c.b16 %v484, %v483
      %v573 = vpack.c.b16 %v486, %v485
      %v574 = vpack.c.b16 %v488, %v487
      %v575 = vpack.c.b16 %v490, %v489
      %v576 = vpack.c.b16 %v492, %v491
      %v577 = vpack.c.b16 %v494, %v493
      %v578 = vpack.c.b16 %v496, %v495
      %v579 = vpack.c.b16 %v498, %v497
      %v580 = vpack.c.b16 %v500, %v499
      %v581 = vpack.c.b16 %v502, %v501
      %v582 = vpack.c.b16 %v504, %v503
      %v583 = vpack.c.b16 %v506, %v505
      %v584 = vpack.c.b16 %v508, %v507
      %v585 = vpack.c.b16 %v510, %v509
      %v586 = vpack.c.b16 %v512, %v511
      %v587 = vpack.c.b16 %v514, %v513
      %v588 = vpack.c.b16 %v516, %v515
      %v589 = vpack.c.b16 %v518, %v517
      %v590 = vpack.c.b16 %v520, %v519
      %v591 = vpack.c.b16 %v522, %v521
      %v592 = vpack.c.b16 %v524, %v523
      %v593 = vpack.c.b16 %v526, %v525
      %v594 = vpack.c.b16 %v528, %v527
      %v595 = vpack.c.b16 %v530, %v529
      %v596 = vpack.c.b16 %v532, %v531
      %v597 = vpack.c.b16 %v534, %v533
      %v598 = vpack.c.b16 %v536, %v535
      %v599 = vpack.c.b16 %v538, %v537
      %v600 = vpack.c.b16 %v540, %v539
      %v601 = vpack.c.b16 %v542, %v541
      %v602 = vpack.c.b16 %v544, %v543
      %v603 = vpack.c.b16 %v546, %v545
      %v604 = vpack.c.b16 %v548, %v547
      %v605 = vpack.c.b16 %v550, %v549
      %v606 = vpack.c.b16 %v552, %v551
      %v607 = vpack.c.b16 %v554, %v553
      %v608 = vpack.c.b16 %v556, %v555
      %v609 = vpack.c.b16 %v558, %v557
      %v610 = vpack.c.b16 %v560, %v559
      %v611 = vpack.c.b16 %v562, %v561
      %v612 = vpack.c.b16 %v564, %v563
      %661 = vmatprep.subr.bf16.mxu0 0
      %662 = vmatpush1.bf16.msra.mxu0 %v565
      %663 = vmatprep.subr.bf16.mxu0 0
      %664 = vmatpush1.bf16.msra.mxu0 %v566
      %665 = vmatprep.subr.bf16.mxu0 0
      %666 = vmatpush1.bf16.msra.mxu0 %v567
      %667 = vmatprep.subr.bf16.mxu0 0
      %668 = vmatpush1.bf16.msra.mxu0 %v568
      %669 = vmatprep.subr.bf16.mxu0 0
      %670 = vmatpush1.bf16.msra.mxu0 %v569
      %671 = vmatprep.subr.bf16.mxu0 0
      %672 = vmatpush1.bf16.msra.mxu0 %v570
      %673 = vmatprep.subr.bf16.mxu0 0
      %674 = vmatpush1.bf16.msra.mxu0 %v571
      %675 = vmatprep.subr.bf16.mxu0 0
      %676 = vmatpush1.bf16.msra.mxu0 %v572
      %677 = vmatprep.subr.bf16.mxu0 0
      %678 = vmatpush1.bf16.msra.mxu0 %v573
      %679 = vmatprep.subr.bf16.mxu0 0
      %680 = vmatpush1.bf16.msra.mxu0 %v574
      %681 = vmatprep.subr.bf16.mxu0 0
      %682 = vmatpush1.bf16.msra.mxu0 %v575
      %683 = vmatprep.subr.bf16.mxu0 0
      %684 = vmatpush1.bf16.msra.mxu0 %v576
      %685 = vmatprep.subr.bf16.mxu0 0
      %686 = vmatpush1.bf16.msra.mxu0 %v577
      %687 = vmatprep.subr.bf16.mxu0 0
      %688 = vmatpush1.bf16.msra.mxu0 %v578
      %689 = vmatprep.subr.bf16.mxu0 0
      %690 = vmatpush1.bf16.msra.mxu0 %v579
      %691 = vmatprep.subr.bf16.mxu0 0
      %692 = vmatpush1.bf16.msra.mxu0 %v580
      %693 = vmatprep.mubr.bf16.mxu0 %v362
      %694 = vmatmul.mubr.bf16.gmra.mrb[0].mxu0 %v361
      %v695 = vpop.f32.mrb[0].mxu0
      %v696 = vadd.f32 0.0, %v695
      %v697 = vpop.f32.mrb[0].mxu0
      %v698 = vpop.f32.mrb[0].mxu0
      %v699 = vpop.f32.mrb[0].mxu0
      %700 = vdwg.mxu0
      %701 = vmatprep.subr.bf16.mxu0 0
      %702 = vmatpush1.bf16.msra.mxu0 %v581
      %703 = vmatprep.subr.bf16.mxu0 0
      %704 = vmatpush1.bf16.msra.mxu0 %v582
      %705 = vmatprep.subr.bf16.mxu0 0
      %706 = vmatpush1.bf16.msra.mxu0 %v583
      %707 = vmatprep.subr.bf16.mxu0 0
      %708 = vmatpush1.bf16.msra.mxu0 %v584
      %709 = vmatprep.subr.bf16.mxu0 0
      %710 = vmatpush1.bf16.msra.mxu0 %v585
      %711 = vmatprep.subr.bf16.mxu0 0
      %712 = vmatpush1.bf16.msra.mxu0 %v586
      %713 = vmatprep.subr.bf16.mxu0 0
      %714 = vmatpush1.bf16.msra.mxu0 %v587
      %715 = vmatprep.subr.bf16.mxu0 0
      %716 = vmatpush1.bf16.msra.mxu0 %v588
      %717 = vmatprep.subr.bf16.mxu0 0
      %718 = vmatpush1.bf16.msra.mxu0 %v589
      %719 = vmatprep.subr.bf16.mxu0 0
      %720 = vmatpush1.bf16.msra.mxu0 %v590
      %721 = vmatprep.subr.bf16.mxu0 0
      %722 = vmatpush1.bf16.msra.mxu0 %v591
      %723 = vmatprep.subr.bf16.mxu0 0
      %724 = vmatpush1.bf16.msra.mxu0 %v592
      %725 = vmatprep.subr.bf16.mxu0 0
      %726 = vmatpush1.bf16.msra.mxu0 %v593
      %727 = vmatprep.subr.bf16.mxu0 0
      %728 = vmatpush1.bf16.msra.mxu0 %v594
      %729 = vmatprep.subr.bf16.mxu0 0
      %730 = vmatpush1.bf16.msra.mxu0 %v595
      %731 = vmatprep.subr.bf16.mxu0 0
      %732 = vmatpush1.bf16.msra.mxu0 %v596
      %733 = vmatprep.mubr.bf16.mxu0 %v364
      %734 = vmatmul.mubr.bf16.gmra.mrb[0].mxu0 %v363
      %v735 = vpop.f32.mrb[0].mxu0
      %v736 = vadd.f32 %v696, %v735
      %v737 = vpop.f32.mrb[0].mxu0
      %v738 = vpop.f32.mrb[0].mxu0
      %v739 = vpop.f32.mrb[0].mxu0
      %740 = vdwg.mxu0
      %741 = vmatprep.subr.bf16.mxu0 0
      %742 = vmatpush1.bf16.msra.mxu0 %v597
      %743 = vmatprep.subr.bf16.mxu0 0
      %744 = vmatpush1.bf16.msra.mxu0 %v598
      %745 = vmatprep.subr.bf16.mxu0 0
      %746 = vmatpush1.bf16.msra.mxu0 %v599
      %747 = vmatprep.subr.bf16.mxu0 0
      %748 = vmatpush1.bf16.msra.mxu0 %v600
      %749 = vmatprep.subr.bf16.mxu0 0
      %750 = vmatpush1.bf16.msra.mxu0 %v601
      %751 = vmatprep.subr.bf16.mxu0 0
      %752 = vmatpush1.bf16.msra.mxu0 %v602
      %753 = vmatprep.subr.bf16.mxu0 0
      %754 = vmatpush1.bf16.msra.mxu0 %v603
      %755 = vmatprep.subr.bf16.mxu0 0
      %756 = vmatpush1.bf16.msra.mxu0 %v604
      %757 = vmatprep.subr.bf16.mxu0 0
      %758 = vmatpush1.bf16.msra.mxu0 %v605
      %759 = vmatprep.subr.bf16.mxu0 0
      %760 = vmatpush1.bf16.msra.mxu0 %v606
      %761 = vmatprep.subr.bf16.mxu0 0
      %762 = vmatpush1.bf16.msra.mxu0 %v607
      %763 = vmatprep.subr.bf16.mxu0 0
      %764 = vmatpush1.bf16.msra.mxu0 %v608
      %765 = vmatprep.subr.bf16.mxu0 0
      %766 = vmatpush1.bf16.msra.mxu0 %v609
      %767 = vmatprep.subr.bf16.mxu0 0
      %768 = vmatpush1.bf16.msra.mxu0 %v610
      %769 = vmatprep.subr.bf16.mxu0 0
      %770 = vmatpush1.bf16.msra.mxu0 %v611
      %771 = vmatprep.subr.bf16.mxu0 0
      %772 = vmatpush1.bf16.msra.mxu0 %v612
      %773 = vmatprep.mubr.bf16.mxu0 %v366
      %774 = vmatmul.mubr.bf16.gmra.mrb[0].mxu0 %v365
      %v775 = vpop.f32.mrb[0].mxu0
      %v776 = vadd.f32 %v736, %v775
      %v777 = vpop.f32.mrb[0].mxu0
      %v778 = vpop.f32.mrb[0].mxu0
      %v779 = vpop.f32.mrb[0].mxu0
      %780 = vdwg.mxu0
      %v781 = vld [vmem:[%s2] sm:$0x1]
      %vm782 = vcmask 1040384
      %v783 = vsel %vm782, %v781, 0.0
      %v784 = vld [vmem:[%s3] sm:$0xff]
      %v785 = vld [vmem:[%s3 + $0x8] sm:$0xff]
      %v786 = vadd.f32 %v776, %v784
      %v787 = vadd.f32 %v783, %v785
      %v788 = vld [vmem:[%s4] sm:$0x1]
      %v789 = vld [vmem:[%s5] sm:$0x1]
      %790 = vadd.xlane.f32.xlu0 %v786
      %v791 = vpop.xlane.xlu0 %790
      %792 = vadd.xlane.f32.xlu0 %v787
      %v793 = vpop.xlane.xlu0 %792
      %v794 = vrcp.pop 128.0
      %v795 = vmul.f32 %v791, %v794
      %v796 = vmul.f32 %v793, %v794
      %v797 = vsub.f32 %v786, %v795
      %v798 = vsub.f32 %v787, %v796
      %v799 = vmul.f32 %v797, %v797
      %v800 = vmul.f32 %v798, %v798
      %801 = vadd.xlane.f32.xlu0 %v799
      %v802 = vpop.xlane.xlu0 %801
      %803 = vadd.xlane.f32.xlu0 %v800
      %v804 = vpop.xlane.xlu0 %803
      %v805 = vmul.f32 %v802, %v794
      %v806 = vmul.f32 %v804, %v794
      %v807 = vadd.f32 %v805, 1e-06
      %v808 = vadd.f32 %v806, 1e-06
      %v809 = vrsqrt.pop %v807
      %v810 = vrsqrt.pop %v808
      %v811 = vmul.f32 %v797, %v809
      %v812 = vmul.f32 %v798, %v810
      %v814 = vlaneseq
      %v815 = vshrl.u32 %v814, 7
      %v816 = vsub.s32 0, %v815
      %v817 = vrot.slane %v788, %v816
      %v819 = vmul.f32 %v811, %v817
      %v820 = vmul.f32 %v812, %v817
      %v822 = vlaneseq
      %v823 = vshrl.u32 %v822, 7
      %v824 = vsub.s32 0, %v823
      %v825 = vrot.slane %v789, %v824
      %v827 = vadd.f32 %v819, %v825
      %v828 = vadd.f32 %v820, %v825
      %v829 = vpack.c.bf16 %v828, %v827
      %v831 = vunpack.c.l.b16 %v829
      %v832 = vunpack.c.h.b16 %v829
      %v833 = vpack.c.b16 %v831, %v831
      %v834 = vpack.c.b16 %v832, %v832
      %837 = vst [vmem:[%s251] sm:$0xf] %v833
      %838 = vst [vmem:[%s251 + $0x4] sm:$0xf] %v834
      %p839 = scmp.lt.s32.totalorder %s17, 1
      %s840 = scalar_select %p839, %s17, 1
      %s841 = smul.addr %s840, 2
      %s842 = smul.addr %s841, 4
      %s843 = scalar_lea.vmem %s6, %s842
      // Predicated region
      $region45: #{feature_vit_forward.2} parent=43 // pred_check
        %p844 = pneg %p166
      $region46: #{feature_vit_forward.2} parent=43 // pred_check_branch
        %846 = sbr.rel (%p844) target = $region48
      $region47: #{feature_vit_forward.2} parent=43 // pred_region
        _
      $region48: #{feature_vit_forward.2} parent=43 // pred_fallthru
        _
    $region44: #{feature_vit_forward.2} parent=5 // pred_fallthru
      _
    %p847 = scmp.le.s32.totalorder 2, %s12
    // Predicated region
    $region49: #{feature_vit_forward.2} parent=5 // pred_check
      %p848 = pneg %p847
    $region50: #{feature_vit_forward.2} parent=5 // pred_check_branch
      %850 = sbr.rel (%p848) target = $region52
    $region51: #{feature_vit_forward.2} parent=5 // pred_region
      %s851 = ssub.s32 %s12, 2
      // Predicated region
      $region53: #{feature_vit_forward.2} parent=51 // pred_check
        %p852 = pneg %p172
      $region54: #{feature_vit_forward.2} parent=51 // pred_check_branch
        %854 = sbr.rel (%p852) target = $region56
      $region55: #{feature_vit_forward.2} parent=51 // pred_region
        %p855 = scmp.lt.s32.totalorder %s18, 1
        %s856 = scalar_select %p855, %s18, 1
        %s857 = smul.addr %s856, 2
        %s858 = smul.addr %s857, 4
        %s859 = scalar_lea.vmem %s6, %s858
      $region56: #{feature_vit_forward.2} parent=51 // pred_fallthru
        _
    $region52: #{feature_vit_forward.2} parent=5 // pred_fallthru
      _
  $region6: #{feature_vit_forward.2} parent=0 // loop_footer
    %s16 = sadd.s32 1, %s12
  $region7: #{feature_vit_forward.2} parent=0 // loop_footer_branch
    %11 = sbr.rel target = $region3
  $region8: #{feature_vit_forward.2} parent=0 // loop_exit
    _

// kernel: feature_vit_forward.3
$region0: #{feature_vit_forward.3}
  #allocation0 [shape = 'u32[]', space=smem, size = 0x4, offset = 0x4, fixed_abs, tag = 'smem constant byte address 0x4 - core index']
  #allocation1 [shape = 'u32[144,128]{1,0:T(1,128)}', space=vmem, size = 0x12000, scoped, tag = 'internal scratch']
  %s0 = inlined_call_operand.vmem [shape: bf16[2,16,128], index: 0, kind: input, shape index: {}]
  %s1 = inlined_call_operand.vmem [shape: f32[2,1,128], index: 1, kind: input, shape index: {}]
  %s2 = inlined_call_operand.vmem [shape: f32[2,1,128], index: 2, kind: input, shape index: {}]
  %s3 = inlined_call_operand.vmem [shape: bf16[2,128,384], index: 3, kind: input, shape index: {}]
  %s4 = inlined_call_operand.vmem [shape: f32[2,1,384], index: 4, kind: input, shape index: {}]
  %s5 = inlined_call_operand.vmem [shape: bf16[2,128,128], index: 5, kind: input, shape index: {}]
  %s6 = inlined_call_operand.vmem [shape: f32[2,1,128], index: 6, kind: input, shape index: {}]
  %s7 = inlined_call_operand.vmem [shape: f32[2,1,128], index: 7, kind: input, shape index: {}]
  %s8 = inlined_call_operand.vmem [shape: f32[2,1,128], index: 8, kind: input, shape index: {}]
  %s9 = inlined_call_operand.vmem [shape: bf16[2,128,512], index: 9, kind: input, shape index: {}]
  %s10 = inlined_call_operand.vmem [shape: f32[2,1,512], index: 10, kind: input, shape index: {}]
  %s11 = inlined_call_operand.vmem [shape: bf16[2,512,128], index: 11, kind: input, shape index: {}]
  %s12 = inlined_call_operand.vmem [shape: f32[2,1,128], index: 12, kind: input, shape index: {}]
  %s13 = inlined_call_operand.vmem [shape: f32[1,128], index: 13, kind: input, shape index: {}]
  %s14 = inlined_call_operand.vmem [shape: f32[1,128], index: 14, kind: input, shape index: {}]
  %s15 = inlined_call_operand.vmem [shape: f32[2,16,128], index: 15, kind: output, shape index: {}]
  %s16 = sld [smem:[#allocation0]]
  $region105: #{feature_vit_forward.3} parent=0
    _
  %s18 = ssub.s32 1, %s16
  %s19 = scalar_select 0, %s18, %s16
  loop: start=0, step=1, limit=6
  $region2: #{feature_vit_forward.3} parent=0 // loop_pre_header
    _
  $region3: #{feature_vit_forward.3} parent=0 // loop_header
    %s21 = sphi 0, %s25
    %p22 = scmp.ge.s32.totalorder %s21, 6
    %s28 = sphi 0, %s40
    %s29 = sphi 0, %s36
    %s30 = sphi 0, %s28
    %s31 = sphi 0, %s29
    %s32 = sphi 0, %s30
    %s33 = sphi 0, %s31
    %s43 = sphi 0, %s45
    %s46 = sphi 0, %s43
    %s47 = sphi 0, %s46
    %s63 = sphi 0, %s47
    %s69 = sphi 0, %s71
    %s72 = sphi 0, %s69
    %s73 = sphi 0, %s72
    %s89 = sphi 0, %s73
    %s95 = sphi 0, %s97
    %s98 = sphi 0, %s95
    %s99 = sphi 0, %s98
    %s115 = sphi 0, %s99
    %s121 = sphi 0, %s123
    %s124 = sphi 0, %s121
    %s125 = sphi 0, %s124
    %s141 = sphi 0, %s125
    %s147 = sphi 0, %s149
    %s150 = sphi 0, %s147
    %s151 = sphi 0, %s150
    %s167 = sphi 0, %s151
    %s173 = sphi 0, %s175
    %s176 = sphi 0, %s173
    %s177 = sphi 0, %s176
    %s193 = sphi 0, %s177
    %s199 = sphi 0, %s201
    %s202 = sphi 0, %s199
    %s203 = sphi 0, %s202
    %s219 = sphi 0, %s203
    %s225 = sphi 0, %s227
    %s228 = sphi 0, %s225
    %s229 = sphi 0, %s228
    %s245 = sphi 0, %s229
    %s251 = sphi 0, %s253
    %s254 = sphi 0, %s251
    %s255 = sphi 0, %s254
    %s271 = sphi 0, %s255
    %s277 = sphi 0, %s279
    %s280 = sphi 0, %s277
    %s281 = sphi 0, %s280
    %s297 = sphi 0, %s281
    %s303 = sphi 0, %s305
    %s306 = sphi 0, %s303
    %s307 = sphi 0, %s306
    %s323 = sphi 0, %s307
    %s329 = sphi 0, %s331
    %s332 = sphi 0, %s329
    %s333 = sphi 0, %s332
    %s349 = sphi 0, %s333
    %s355 = sphi 0, %s357
    %s358 = sphi 0, %s355
    %s359 = sphi 0, %s358
    %s375 = sphi 0, %s359
    %s379 = sphi 0, %s379
    %s381 = sphi 0, %s379
    %s382 = sphi 0, %s381
    %s396 = sphi 0, %s382
    %s400 = sphi 0, %s400
    %s402 = sphi 0, %s400
    %s403 = sphi 0, %s402
    %s417 = sphi 0, %s403
    %s423 = sphi 0, %s425
    %s426 = sphi 0, %s423
    %s427 = sphi 0, %s426
    %s443 = sphi 0, %s427
  $region4: #{feature_vit_forward.3} parent=0 // loop_header_branch
    %24 = sbr.rel (%p22) target = $region8
  $region5: #{feature_vit_forward.3} parent=0 // loop_body
    %s26 = ssub.s32 %s21, 1
    %s27 = ssub.s32 %s21, 2
    %s34 = sadd.s32 1, %s29
    %p35 = scmp.ge.s32.totalorder %s34, 2
    %s36 = scalar_select %p35, 0, %s34
    %s37 = sadd.s32 1, %s28
    %s38 = scalar_select %p35, %s37, %s28
    %p39 = scmp.ge.s32.totalorder %s38, 2
    %s40 = scalar_select %p39, 0, %s38
    %s41 = ssub.s32 %s28, %s40
    %p42 = scmp.eq.s32.totalorder %s41, 0
    %s44 = sadd.s32 %s43, 1
    %s45 = scalar_select %p42, %s43, %s44
    %p48 = pneg %p42
    %p49 = scmp.eq.s32.totalorder %s21, 3
    %p50 = por %p48, %p49
    %p51 = scmp.ne.s32.totalorder %s43, %s46
    %p52 = scmp.eq.s32.totalorder %s21, 0
    %p53 = por %p51, %p52
    %p54 = scmp.ne.s32.totalorder %s43, %s46
    %p55 = scmp.eq.s32.totalorder %s26, 3
    %p56 = por %p54, %p55
    %p57 = scmp.ne.s32.totalorder %s46, %s47
    %p58 = scmp.eq.s32.totalorder %s26, 0
    %p59 = por %p57, %p58
    %p60 = scmp.ne.s32.totalorder %s46, %s47
    %p61 = scmp.eq.s32.totalorder %s27, 3
    %p62 = por %p60, %p61
    %p64 = scmp.ne.s32.totalorder %s47, %s63
    %p65 = scmp.eq.s32.totalorder %s27, 0
    %p66 = por %p64, %p65
    %s67 = ssub.s32 %s29, %s36
    %p68 = scmp.eq.s32.totalorder %s67, 0
    %s70 = sadd.s32 %s69, 1
    %s71 = scalar_select %p68, %s69, %s70
    %p74 = pneg %p68
    %p75 = scmp.eq.s32.totalorder %s21, 3
    %p76 = por %p74, %p75
    %p77 = scmp.ne.s32.totalorder %s69, %s72
    %p78 = scmp.eq.s32.totalorder %s21, 0
    %p79 = por %p77, %p78
    %p80 = scmp.ne.s32.totalorder %s69, %s72
    %p81 = scmp.eq.s32.totalorder %s26, 3
    %p82 = por %p80, %p81
    %p83 = scmp.ne.s32.totalorder %s72, %s73
    %p84 = scmp.eq.s32.totalorder %s26, 0
    %p85 = por %p83, %p84
    %p86 = scmp.ne.s32.totalorder %s72, %s73
    %p87 = scmp.eq.s32.totalorder %s27, 3
    %p88 = por %p86, %p87
    %p90 = scmp.ne.s32.totalorder %s73, %s89
    %p91 = scmp.eq.s32.totalorder %s27, 0
    %p92 = por %p90, %p91
    %s93 = ssub.s32 %s29, %s36
    %p94 = scmp.eq.s32.totalorder %s93, 0
    %s96 = sadd.s32 %s95, 1
    %s97 = scalar_select %p94, %s95, %s96
    %p100 = pneg %p94
    %p101 = scmp.eq.s32.totalorder %s21, 3
    %p102 = por %p100, %p101
    %p103 = scmp.ne.s32.totalorder %s95, %s98
    %p104 = scmp.eq.s32.totalorder %s21, 0
    %p105 = por %p103, %p104
    %p106 = scmp.ne.s32.totalorder %s95, %s98
    %p107 = scmp.eq.s32.totalorder %s26, 3
    %p108 = por %p106, %p107
    %p109 = scmp.ne.s32.totalorder %s98, %s99
    %p110 = scmp.eq.s32.totalorder %s26, 0
    %p111 = por %p109, %p110
    %p112 = scmp.ne.s32.totalorder %s98, %s99
    %p113 = scmp.eq.s32.totalorder %s27, 3
    %p114 = por %p112, %p113
    %p116 = scmp.ne.s32.totalorder %s99, %s115
    %p117 = scmp.eq.s32.totalorder %s27, 0
    %p118 = por %p116, %p117
    %s119 = ssub.s32 %s29, %s36
    %p120 = scmp.eq.s32.totalorder %s119, 0
    %s122 = sadd.s32 %s121, 1
    %s123 = scalar_select %p120, %s121, %s122
    %p126 = pneg %p120
    %p127 = scmp.eq.s32.totalorder %s21, 3
    %p128 = por %p126, %p127
    %p129 = scmp.ne.s32.totalorder %s121, %s124
    %p130 = scmp.eq.s32.totalorder %s21, 0
    %p131 = por %p129, %p130
    %p132 = scmp.ne.s32.totalorder %s121, %s124
    %p133 = scmp.eq.s32.totalorder %s26, 3
    %p134 = por %p132, %p133
    %p135 = scmp.ne.s32.totalorder %s124, %s125
    %p136 = scmp.eq.s32.totalorder %s26, 0
    %p137 = por %p135, %p136
    %p138 = scmp.ne.s32.totalorder %s124, %s125
    %p139 = scmp.eq.s32.totalorder %s27, 3
    %p140 = por %p138, %p139
    %p142 = scmp.ne.s32.totalorder %s125, %s141
    %p143 = scmp.eq.s32.totalorder %s27, 0
    %p144 = por %p142, %p143
    %s145 = ssub.s32 %s29, %s36
    %p146 = scmp.eq.s32.totalorder %s145, 0
    %s148 = sadd.s32 %s147, 1
    %s149 = scalar_select %p146, %s147, %s148
    %p152 = pneg %p146
    %p153 = scmp.eq.s32.totalorder %s21, 3
    %p154 = por %p152, %p153
    %p155 = scmp.ne.s32.totalorder %s147, %s150
    %p156 = scmp.eq.s32.totalorder %s21, 0
    %p157 = por %p155, %p156
    %p158 = scmp.ne.s32.totalorder %s147, %s150
    %p159 = scmp.eq.s32.totalorder %s26, 3
    %p160 = por %p158, %p159
    %p161 = scmp.ne.s32.totalorder %s150, %s151
    %p162 = scmp.eq.s32.totalorder %s26, 0
    %p163 = por %p161, %p162
    %p164 = scmp.ne.s32.totalorder %s150, %s151
    %p165 = scmp.eq.s32.totalorder %s27, 3
    %p166 = por %p164, %p165
    %p168 = scmp.ne.s32.totalorder %s151, %s167
    %p169 = scmp.eq.s32.totalorder %s27, 0
    %p170 = por %p168, %p169
    %s171 = ssub.s32 %s29, %s36
    %p172 = scmp.eq.s32.totalorder %s171, 0
    %s174 = sadd.s32 %s173, 1
    %s175 = scalar_select %p172, %s173, %s174
    %p178 = pneg %p172
    %p179 = scmp.eq.s32.totalorder %s21, 3
    %p180 = por %p178, %p179
    %p181 = scmp.ne.s32.totalorder %s173, %s176
    %p182 = scmp.eq.s32.totalorder %s21, 0
    %p183 = por %p181, %p182
    %p184 = scmp.ne.s32.totalorder %s173, %s176
    %p185 = scmp.eq.s32.totalorder %s26, 3
    %p186 = por %p184, %p185
    %p187 = scmp.ne.s32.totalorder %s176, %s177
    %p188 = scmp.eq.s32.totalorder %s26, 0
    %p189 = por %p187, %p188
    %p190 = scmp.ne.s32.totalorder %s176, %s177
    %p191 = scmp.eq.s32.totalorder %s27, 3
    %p192 = por %p190, %p191
    %p194 = scmp.ne.s32.totalorder %s177, %s193
    %p195 = scmp.eq.s32.totalorder %s27, 0
    %p196 = por %p194, %p195
    %s197 = ssub.s32 %s29, %s36
    %p198 = scmp.eq.s32.totalorder %s197, 0
    %s200 = sadd.s32 %s199, 1
    %s201 = scalar_select %p198, %s199, %s200
    %p204 = pneg %p198
    %p205 = scmp.eq.s32.totalorder %s21, 3
    %p206 = por %p204, %p205
    %p207 = scmp.ne.s32.totalorder %s199, %s202
    %p208 = scmp.eq.s32.totalorder %s21, 0
    %p209 = por %p207, %p208
    %p210 = scmp.ne.s32.totalorder %s199, %s202
    %p211 = scmp.eq.s32.totalorder %s26, 3
    %p212 = por %p210, %p211
    %p213 = scmp.ne.s32.totalorder %s202, %s203
    %p214 = scmp.eq.s32.totalorder %s26, 0
    %p215 = por %p213, %p214
    %p216 = scmp.ne.s32.totalorder %s202, %s203
    %p217 = scmp.eq.s32.totalorder %s27, 3
    %p218 = por %p216, %p217
    %p220 = scmp.ne.s32.totalorder %s203, %s219
    %p221 = scmp.eq.s32.totalorder %s27, 0
    %p222 = por %p220, %p221
    %s223 = ssub.s32 %s29, %s36
    %p224 = scmp.eq.s32.totalorder %s223, 0
    %s226 = sadd.s32 %s225, 1
    %s227 = scalar_select %p224, %s225, %s226
    %p230 = pneg %p224
    %p231 = scmp.eq.s32.totalorder %s21, 3
    %p232 = por %p230, %p231
    %p233 = scmp.ne.s32.totalorder %s225, %s228
    %p234 = scmp.eq.s32.totalorder %s21, 0
    %p235 = por %p233, %p234
    %p236 = scmp.ne.s32.totalorder %s225, %s228
    %p237 = scmp.eq.s32.totalorder %s26, 3
    %p238 = por %p236, %p237
    %p239 = scmp.ne.s32.totalorder %s228, %s229
    %p240 = scmp.eq.s32.totalorder %s26, 0
    %p241 = por %p239, %p240
    %p242 = scmp.ne.s32.totalorder %s228, %s229
    %p243 = scmp.eq.s32.totalorder %s27, 3
    %p244 = por %p242, %p243
    %p246 = scmp.ne.s32.totalorder %s229, %s245
    %p247 = scmp.eq.s32.totalorder %s27, 0
    %p248 = por %p246, %p247
    %s249 = ssub.s32 %s29, %s36
    %p250 = scmp.eq.s32.totalorder %s249, 0
    %s252 = sadd.s32 %s251, 1
    %s253 = scalar_select %p250, %s251, %s252
    %p256 = pneg %p250
    %p257 = scmp.eq.s32.totalorder %s21, 3
    %p258 = por %p256, %p257
    %p259 = scmp.ne.s32.totalorder %s251, %s254
    %p260 = scmp.eq.s32.totalorder %s21, 0
    %p261 = por %p259, %p260
    %p262 = scmp.ne.s32.totalorder %s251, %s254
    %p263 = scmp.eq.s32.totalorder %s26, 3
    %p264 = por %p262, %p263
    %p265 = scmp.ne.s32.totalorder %s254, %s255
    %p266 = scmp.eq.s32.totalorder %s26, 0
    %p267 = por %p265, %p266
    %p268 = scmp.ne.s32.totalorder %s254, %s255
    %p269 = scmp.eq.s32.totalorder %s27, 3
    %p270 = por %p268, %p269
    %p272 = scmp.ne.s32.totalorder %s255, %s271
    %p273 = scmp.eq.s32.totalorder %s27, 0
    %p274 = por %p272, %p273
    %s275 = ssub.s32 %s29, %s36
    %p276 = scmp.eq.s32.totalorder %s275, 0
    %s278 = sadd.s32 %s277, 1
    %s279 = scalar_select %p276, %s277, %s278
    %p282 = pneg %p276
    %p283 = scmp.eq.s32.totalorder %s21, 3
    %p284 = por %p282, %p283
    %p285 = scmp.ne.s32.totalorder %s277, %s280
    %p286 = scmp.eq.s32.totalorder %s21, 0
    %p287 = por %p285, %p286
    %p288 = scmp.ne.s32.totalorder %s277, %s280
    %p289 = scmp.eq.s32.totalorder %s26, 3
    %p290 = por %p288, %p289
    %p291 = scmp.ne.s32.totalorder %s280, %s281
    %p292 = scmp.eq.s32.totalorder %s26, 0
    %p293 = por %p291, %p292
    %p294 = scmp.ne.s32.totalorder %s280, %s281
    %p295 = scmp.eq.s32.totalorder %s27, 3
    %p296 = por %p294, %p295
    %p298 = scmp.ne.s32.totalorder %s281, %s297
    %p299 = scmp.eq.s32.totalorder %s27, 0
    %p300 = por %p298, %p299
    %s301 = ssub.s32 %s29, %s36
    %p302 = scmp.eq.s32.totalorder %s301, 0
    %s304 = sadd.s32 %s303, 1
    %s305 = scalar_select %p302, %s303, %s304
    %p308 = pneg %p302
    %p309 = scmp.eq.s32.totalorder %s21, 3
    %p310 = por %p308, %p309
    %p311 = scmp.ne.s32.totalorder %s303, %s306
    %p312 = scmp.eq.s32.totalorder %s21, 0
    %p313 = por %p311, %p312
    %p314 = scmp.ne.s32.totalorder %s303, %s306
    %p315 = scmp.eq.s32.totalorder %s26, 3
    %p316 = por %p314, %p315
    %p317 = scmp.ne.s32.totalorder %s306, %s307
    %p318 = scmp.eq.s32.totalorder %s26, 0
    %p319 = por %p317, %p318
    %p320 = scmp.ne.s32.totalorder %s306, %s307
    %p321 = scmp.eq.s32.totalorder %s27, 3
    %p322 = por %p320, %p321
    %p324 = scmp.ne.s32.totalorder %s307, %s323
    %p325 = scmp.eq.s32.totalorder %s27, 0
    %p326 = por %p324, %p325
    %s327 = ssub.s32 %s29, %s36
    %p328 = scmp.eq.s32.totalorder %s327, 0
    %s330 = sadd.s32 %s329, 1
    %s331 = scalar_select %p328, %s329, %s330
    %p334 = pneg %p328
    %p335 = scmp.eq.s32.totalorder %s21, 3
    %p336 = por %p334, %p335
    %p337 = scmp.ne.s32.totalorder %s329, %s332
    %p338 = scmp.eq.s32.totalorder %s21, 0
    %p339 = por %p337, %p338
    %p340 = scmp.ne.s32.totalorder %s329, %s332
    %p341 = scmp.eq.s32.totalorder %s26, 3
    %p342 = por %p340, %p341
    %p343 = scmp.ne.s32.totalorder %s332, %s333
    %p344 = scmp.eq.s32.totalorder %s26, 0
    %p345 = por %p343, %p344
    %p346 = scmp.ne.s32.totalorder %s332, %s333
    %p347 = scmp.eq.s32.totalorder %s27, 3
    %p348 = por %p346, %p347
    %p350 = scmp.ne.s32.totalorder %s333, %s349
    %p351 = scmp.eq.s32.totalorder %s27, 0
    %p352 = por %p350, %p351
    %s353 = ssub.s32 %s29, %s36
    %p354 = scmp.eq.s32.totalorder %s353, 0
    %s356 = sadd.s32 %s355, 1
    %s357 = scalar_select %p354, %s355, %s356
    %p360 = pneg %p354
    %p361 = scmp.eq.s32.totalorder %s21, 3
    %p362 = por %p360, %p361
    %p363 = scmp.ne.s32.totalorder %s355, %s358
    %p364 = scmp.eq.s32.totalorder %s21, 0
    %p365 = por %p363, %p364
    %p366 = scmp.ne.s32.totalorder %s355, %s358
    %p367 = scmp.eq.s32.totalorder %s26, 3
    %p368 = por %p366, %p367
    %p369 = scmp.ne.s32.totalorder %s358, %s359
    %p370 = scmp.eq.s32.totalorder %s26, 0
    %p371 = por %p369, %p370
    %p372 = scmp.ne.s32.totalorder %s358, %s359
    %p373 = scmp.eq.s32.totalorder %s27, 3
    %p374 = por %p372, %p373
    %p376 = scmp.ne.s32.totalorder %s359, %s375
    %p377 = scmp.eq.s32.totalorder %s27, 0
    %p378 = por %p376, %p377
    %s380 = sadd.s32 %s379, 1
    %p383 = scmp.eq.s32.totalorder %s21, 3
    %p384 = scmp.ne.s32.totalorder %s379, %s381
    %p385 = scmp.eq.s32.totalorder %s21, 0
    %p386 = por %p384, %p385
    %p387 = scmp.ne.s32.totalorder %s379, %s381
    %p388 = scmp.eq.s32.totalorder %s26, 3
    %p389 = por %p387, %p388
    %p390 = scmp.ne.s32.totalorder %s381, %s382
    %p391 = scmp.eq.s32.totalorder %s26, 0
    %p392 = por %p390, %p391
    %p393 = scmp.ne.s32.totalorder %s381, %s382
    %p394 = scmp.eq.s32.totalorder %s27, 3
    %p395 = por %p393, %p394
    %p397 = scmp.ne.s32.totalorder %s382, %s396
    %p398 = scmp.eq.s32.totalorder %s27, 0
    %p399 = por %p397, %p398
    %s401 = sadd.s32 %s400, 1
    %p404 = scmp.eq.s32.totalorder %s21, 3
    %p405 = scmp.ne.s32.totalorder %s400, %s402
    %p406 = scmp.eq.s32.totalorder %s21, 0
    %p407 = por %p405, %p406
    %p408 = scmp.ne.s32.totalorder %s400, %s402
    %p409 = scmp.eq.s32.totalorder %s26, 3
    %p410 = por %p408, %p409
    %p411 = scmp.ne.s32.totalorder %s402, %s403
    %p412 = scmp.eq.s32.totalorder %s26, 0
    %p413 = por %p411, %p412
    %p414 = scmp.ne.s32.totalorder %s402, %s403
    %p415 = scmp.eq.s32.totalorder %s27, 3
    %p416 = por %p414, %p415
    %p418 = scmp.ne.s32.totalorder %s403, %s417
    %p419 = scmp.eq.s32.totalorder %s27, 0
    %p420 = por %p418, %p419
    %s421 = ssub.s32 %s28, %s40
    %p422 = scmp.eq.s32.totalorder %s421, 0
    %s424 = sadd.s32 %s423, 1
    %s425 = scalar_select %p422, %s423, %s424
    %p428 = pneg %p422
    %p429 = scmp.eq.s32.totalorder %s21, 3
    %p430 = por %p428, %p429
    %p431 = scmp.ne.s32.totalorder %s423, %s426
    %p432 = scmp.eq.s32.totalorder %s21, 0
    %p433 = por %p431, %p432
    %p434 = scmp.ne.s32.totalorder %s423, %s426
    %p435 = scmp.eq.s32.totalorder %s26, 3
    %p436 = por %p434, %p435
    %p437 = scmp.ne.s32.totalorder %s426, %s427
    %p438 = scmp.eq.s32.totalorder %s26, 0
    %p439 = por %p437, %p438
    %p440 = scmp.ne.s32.totalorder %s426, %s427
    %p441 = scmp.eq.s32.totalorder %s27, 3
    %p442 = por %p440, %p441
    %p444 = scmp.ne.s32.totalorder %s427, %s443
    %p445 = scmp.eq.s32.totalorder %s27, 0
    %p446 = por %p444, %p445
    %p447 = scmp.le.s32.totalorder 1, %s21
    %p448 = scmp.lt.s32.totalorder %s21, 5
    %p449 = pnand %p447, %p448
    %p450 = pneg %p449
    // Predicated region
    $region9: #{feature_vit_forward.3} parent=5 // pred_check
      _
    $region10: #{feature_vit_forward.3} parent=5 // pred_check_branch
      %452 = sbr.rel (%p449) target = $region12
    $region11: #{feature_vit_forward.3} parent=5 // pred_region
      %s453 = ssub.s32 %s21, 1
      // Predicated region
      $region13: #{feature_vit_forward.3} parent=11 // pred_check
        %p454 = pneg %p392
      $region14: #{feature_vit_forward.3} parent=11 // pred_check_branch
        %456 = sbr.rel (%p454) target = $region16
      $region15: #{feature_vit_forward.3} parent=11 // pred_region
        _
      $region16: #{feature_vit_forward.3} parent=11 // pred_fallthru
        _
      // Predicated region
      $region17: #{feature_vit_forward.3} parent=11 // pred_check
        %p457 = pneg %p413
      $region18: #{feature_vit_forward.3} parent=11 // pred_check_branch
        %459 = sbr.rel (%p457) target = $region20
      $region19: #{feature_vit_forward.3} parent=11 // pred_region
        _
      $region20: #{feature_vit_forward.3} parent=11 // pred_fallthru
        _
    $region12: #{feature_vit_forward.3} parent=5 // pred_fallthru
      _
    %p460 = scmp.lt.s32.totalorder %s21, 4
    // Predicated region
    $region21: #{feature_vit_forward.3} parent=5 // pred_check
      %p461 = pneg %p460
    $region22: #{feature_vit_forward.3} parent=5 // pred_check_branch
      %463 = sbr.rel (%p461) target = $region24
    $region23: #{feature_vit_forward.3} parent=5 // pred_region
      // Predicated region
      $region25: #{feature_vit_forward.3} parent=23 // pred_check
        %p464 = pneg %p53
      $region26: #{feature_vit_forward.3} parent=23 // pred_check_branch
        %466 = sbr.rel (%p464) target = $region28
      $region27: #{feature_vit_forward.3} parent=23 // pred_region
        %p467 = scmp.lt.s32.totalorder %s28, 1
        %s468 = scalar_select %p467, %s28, 1
        %s469 = smul.addr %s468, 2
        %s470 = smul.addr %s469, 4
        %s471 = scalar_lea.vmem %s0, %s470
      $region28: #{feature_vit_forward.3} parent=23 // pred_fallthru
        _
      // Predicated region
      $region29: #{feature_vit_forward.3} parent=23 // pred_check
        %p472 = pneg %p79
      $region30: #{feature_vit_forward.3} parent=23 // pred_check_branch
        %474 = sbr.rel (%p472) target = $region32
      $region31: #{feature_vit_forward.3} parent=23 // pred_region
        %p475 = scmp.lt.s32.totalorder %s29, 1
        %s476 = scalar_select %p475, %s29, 1
        %s477 = scalar_lea.vmem %s1, %s476
      $region32: #{feature_vit_forward.3} parent=23 // pred_fallthru
        _
      // Predicated region
      $region33: #{feature_vit_forward.3} parent=23 // pred_check
        %p478 = pneg %p105
      $region34: #{feature_vit_forward.3} parent=23 // pred_check_branch
        %480 = sbr.rel (%p478) target = $region36
      $region35: #{feature_vit_forward.3} parent=23 // pred_region
        %p481 = scmp.lt.s32.totalorder %s29, 1
        %s482 = scalar_select %p481, %s29, 1
        %s483 = scalar_lea.vmem %s2, %s482
      $region36: #{feature_vit_forward.3} parent=23 // pred_fallthru
        _
      // Predicated region
      $region37: #{feature_vit_forward.3} parent=23 // pred_check
        %p484 = pneg %p131
      $region38: #{feature_vit_forward.3} parent=23 // pred_check_branch
        %486 = sbr.rel (%p484) target = $region40
      $region39: #{feature_vit_forward.3} parent=23 // pred_region
        %p487 = scmp.lt.s32.totalorder %s29, 1
        %s488 = scalar_select %p487, %s29, 1
        %s489 = smul.addr %s488, 48
        %s490 = smul.addr %s489, 4
        %s491 = scalar_lea.vmem %s3, %s490
      $region40: #{feature_vit_forward.3} parent=23 // pred_fallthru
        _
      // Predicated region
      $region41: #{feature_vit_forward.3} parent=23 // pred_check
        %p492 = pneg %p157
      $region42: #{feature_vit_forward.3} parent=23 // pred_check_branch
        %494 = sbr.rel (%p492) target = $region44
      $region43: #{feature_vit_forward.3} parent=23 // pred_region
        %p495 = scmp.lt.s32.totalorder %s29, 1
        %s496 = scalar_select %p495, %s29, 1
        %s497 = smul.addr %s496, 3
        %s498 = scalar_lea.vmem %s4, %s497
      $region44: #{feature_vit_forward.3} parent=23 // pred_fallthru
        _
      // Predicated region
      $region45: #{feature_vit_forward.3} parent=23 // pred_check
        %p499 = pneg %p183
      $region46: #{feature_vit_forward.3} parent=23 // pred_check_branch
        %501 = sbr.rel (%p499) target = $region48
      $region47: #{feature_vit_forward.3} parent=23 // pred_region
        %p502 = scmp.lt.s32.totalorder %s29, 1
        %s503 = scalar_select %p502, %s29, 1
        %s504 = smul.addr %s503, 16
        %s505 = smul.addr %s504, 4
        %s506 = scalar_lea.vmem %s5, %s505
      $region48: #{feature_vit_forward.3} parent=23 // pred_fallthru
        _
      // Predicated region
      $region49: #{feature_vit_forward.3} parent=23 // pred_check
        %p507 = pneg %p209
      $region50: #{feature_vit_forward.3} parent=23 // pred_check_branch
        %509 = sbr.rel (%p507) target = $region52
      $region51: #{feature_vit_forward.3} parent=23 // pred_region
        %p510 = scmp.lt.s32.totalorder %s29, 1
        %s511 = scalar_select %p510, %s29, 1
        %s512 = scalar_lea.vmem %s6, %s511
      $region52: #{feature_vit_forward.3} parent=23 // pred_fallthru
        _
      // Predicated region
      $region53: #{feature_vit_forward.3} parent=23 // pred_check
        %p513 = pneg %p235
      $region54: #{feature_vit_forward.3} parent=23 // pred_check_branch
        %515 = sbr.rel (%p513) target = $region56
      $region55: #{feature_vit_forward.3} parent=23 // pred_region
        %p516 = scmp.lt.s32.totalorder %s29, 1
        %s517 = scalar_select %p516, %s29, 1
        %s518 = scalar_lea.vmem %s7, %s517
      $region56: #{feature_vit_forward.3} parent=23 // pred_fallthru
        _
      // Predicated region
      $region57: #{feature_vit_forward.3} parent=23 // pred_check
        %p519 = pneg %p261
      $region58: #{feature_vit_forward.3} parent=23 // pred_check_branch
        %521 = sbr.rel (%p519) target = $region60
      $region59: #{feature_vit_forward.3} parent=23 // pred_region
        %p522 = scmp.lt.s32.totalorder %s29, 1
        %s523 = scalar_select %p522, %s29, 1
        %s524 = scalar_lea.vmem %s8, %s523
      $region60: #{feature_vit_forward.3} parent=23 // pred_fallthru
        _
      // Predicated region
      $region61: #{feature_vit_forward.3} parent=23 // pred_check
        %p525 = pneg %p287
      $region62: #{feature_vit_forward.3} parent=23 // pred_check_branch
        %527 = sbr.rel (%p525) target = $region64
      $region63: #{feature_vit_forward.3} parent=23 // pred_region
        %p528 = scmp.lt.s32.totalorder %s29, 1
        %s529 = scalar_select %p528, %s29, 1
        %s530 = smul.addr %s529, 64
        %s531 = smul.addr %s530, 4
        %s532 = scalar_lea.vmem %s9, %s531
      $region64: #{feature_vit_forward.3} parent=23 // pred_fallthru
        _
      // Predicated region
      $region65: #{feature_vit_forward.3} parent=23 // pred_check
        %p533 = pneg %p313
      $region66: #{feature_vit_forward.3} parent=23 // pred_check_branch
        %535 = sbr.rel (%p533) target = $region68
      $region67: #{feature_vit_forward.3} parent=23 // pred_region
        %p536 = scmp.lt.s32.totalorder %s29, 1
        %s537 = scalar_select %p536, %s29, 1
        %s538 = smul.addr %s537, 4
        %s539 = scalar_lea.vmem %s10, %s538
      $region68: #{feature_vit_forward.3} parent=23 // pred_fallthru
        _
      // Predicated region
      $region69: #{feature_vit_forward.3} parent=23 // pred_check
        %p540 = pneg %p339
      $region70: #{feature_vit_forward.3} parent=23 // pred_check_branch
        %542 = sbr.rel (%p540) target = $region72
      $region71: #{feature_vit_forward.3} parent=23 // pred_region
        %p543 = scmp.lt.s32.totalorder %s29, 1
        %s544 = scalar_select %p543, %s29, 1
        %s545 = smul.addr %s544, 64
        %s546 = smul.addr %s545, 4
        %s547 = scalar_lea.vmem %s11, %s546
      $region72: #{feature_vit_forward.3} parent=23 // pred_fallthru
        _
      // Predicated region
      $region73: #{feature_vit_forward.3} parent=23 // pred_check
        %p548 = pneg %p365
      $region74: #{feature_vit_forward.3} parent=23 // pred_check_branch
        %550 = sbr.rel (%p548) target = $region76
      $region75: #{feature_vit_forward.3} parent=23 // pred_region
        %p551 = scmp.lt.s32.totalorder %s29, 1
        %s552 = scalar_select %p551, %s29, 1
        %s553 = scalar_lea.vmem %s12, %s552
      $region76: #{feature_vit_forward.3} parent=23 // pred_fallthru
        _
    $region24: #{feature_vit_forward.3} parent=5 // pred_fallthru
      _
    %p554 = scmp.le.s32.totalorder 1, %s21
    %p555 = scmp.lt.s32.totalorder %s21, 5
    %p556 = pnand %p554, %p555
    %p557 = pneg %p556
    // Predicated region
    $region77: #{feature_vit_forward.3} parent=5 // pred_check
      _
    $region78: #{feature_vit_forward.3} parent=5 // pred_check_branch
      %559 = sbr.rel (%p556) target = $region80
    $region79: #{feature_vit_forward.3} parent=5 // pred_region
      %s560 = ssub.s32 %s21, 1
      %p561 = scmp.lt.s32.totalorder %s30, 1
      %s562 = scalar_select %p561, %s30, 1
      %s563 = smul.addr %s562, 2
      %s564 = smul.addr %s563, 4
      %s565 = scalar_lea.vmem %s0, %s564
      %p566 = pneg %p59
      %p567 = pneg %p56
      %p568 = scmp.lt.s32.totalorder %s31, 1
      %s569 = scalar_select %p568, %s31, 1
      %s570 = scalar_lea.vmem %s1, %s569
      %p571 = pneg %p85
      %p572 = pneg %p82
      %p573 = scmp.lt.s32.totalorder %s31, 1
      %s574 = scalar_select %p573, %s31, 1
      %s575 = scalar_lea.vmem %s2, %s574
      %p576 = pneg %p111
      %p577 = pneg %p108
      %p578 = scmp.lt.s32.totalorder %s31, 1
      %s579 = scalar_select %p578, %s31, 1
      %s580 = smul.addr %s579, 48
      %s581 = smul.addr %s580, 4
      %s582 = scalar_lea.vmem %s3, %s581
      %p583 = pneg %p137
      %p584 = pneg %p134
      %p585 = scmp.lt.s32.totalorder %s31, 1
      %s586 = scalar_select %p585, %s31, 1
      %s587 = smul.addr %s586, 3
      %s588 = scalar_lea.vmem %s4, %s587
      %p589 = pneg %p163
      %p590 = pneg %p160
      %p591 = scmp.lt.s32.totalorder %s31, 1
      %s592 = scalar_select %p591, %s31, 1
      %s593 = smul.addr %s592, 16
      %s594 = smul.addr %s593, 4
      %s595 = scalar_lea.vmem %s5, %s594
      %p596 = pneg %p189
      %p597 = pneg %p186
      %p598 = scmp.lt.s32.totalorder %s31, 1
      %s599 = scalar_select %p598, %s31, 1
      %s600 = scalar_lea.vmem %s6, %s599
      %p601 = pneg %p215
      %p602 = pneg %p212
      %p603 = scmp.lt.s32.totalorder %s31, 1
      %s604 = scalar_select %p603, %s31, 1
      %s605 = scalar_lea.vmem %s7, %s604
      %p606 = pneg %p241
      %p607 = pneg %p238
      %p608 = scmp.lt.s32.totalorder %s31, 1
      %s609 = scalar_select %p608, %s31, 1
      %s610 = scalar_lea.vmem %s8, %s609
      %p611 = pneg %p267
      %p612 = pneg %p264
      %p613 = scmp.lt.s32.totalorder %s31, 1
      %s614 = scalar_select %p613, %s31, 1
      %s615 = smul.addr %s614, 64
      %s616 = smul.addr %s615, 4
      %s617 = scalar_lea.vmem %s9, %s616
      %p618 = pneg %p293
      %p619 = pneg %p290
      %p620 = scmp.lt.s32.totalorder %s31, 1
      %s621 = scalar_select %p620, %s31, 1
      %s622 = smul.addr %s621, 4
      %s623 = scalar_lea.vmem %s10, %s622
      %p624 = pneg %p319
      %p625 = pneg %p316
      %p626 = scmp.lt.s32.totalorder %s31, 1
      %s627 = scalar_select %p626, %s31, 1
      %s628 = smul.addr %s627, 64
      %s629 = smul.addr %s628, 4
      %s630 = scalar_lea.vmem %s11, %s629
      %p631 = pneg %p345
      %p632 = pneg %p342
      %p633 = scmp.lt.s32.totalorder %s31, 1
      %s634 = scalar_select %p633, %s31, 1
      %s635 = scalar_lea.vmem %s12, %s634
      %p636 = pneg %p371
      %p637 = pneg %p368
      %p638 = pneg %p392
      %p639 = pneg %p389
      %p640 = pneg %p413
      %p641 = pneg %p410
      %p642 = pneg %p439
      %p643 = pneg %p436
      %p644 = scmp.lt.s32.totalorder %s30, 1
      %s645 = scalar_select %p644, %s30, 1
      %s646 = smul.addr %s645, 2
      %s647 = smul.addr %s646, 8
      %s648 = scalar_lea.vmem %s15, %s647
      %p649 = scmp.lt.s32.totalorder %s30, 1
      %s650 = scalar_select %p649, %s30, 1
      %s651 = smul.addr %s650, 2
      %s652 = smul.addr %s651, 4
      %s653 = scalar_lea.vmem %s0, %s652
      %p654 = scmp.lt.s32.totalorder %s31, 1
      %s655 = scalar_select %p654, %s31, 1
      %s656 = scalar_lea.vmem %s1, %s655
      %p657 = scmp.lt.s32.totalorder %s31, 1
      %s658 = scalar_select %p657, %s31, 1
      %s659 = scalar_lea.vmem %s2, %s658
      %p660 = scmp.lt.s32.totalorder %s31, 1
      %s661 = scalar_select %p660, %s31, 1
      %s662 = smul.addr %s661, 48
      %s663 = smul.addr %s662, 4
      %s664 = scalar_lea.vmem %s3, %s663
      %p665 = scmp.lt.s32.totalorder %s31, 1
      %s666 = scalar_select %p665, %s31, 1
      %s667 = smul.addr %s666, 3
      %s668 = scalar_lea.vmem %s4, %s667
      %p669 = scmp.lt.s32.totalorder %s31, 1
      %s670 = scalar_select %p669, %s31, 1
      %s671 = smul.addr %s670, 16
      %s672 = smul.addr %s671, 4
      %s673 = scalar_lea.vmem %s5, %s672
      %p674 = scmp.lt.s32.totalorder %s31, 1
      %s675 = scalar_select %p674, %s31, 1
      %s676 = scalar_lea.vmem %s6, %s675
      %p677 = scmp.lt.s32.totalorder %s31, 1
      %s678 = scalar_select %p677, %s31, 1
      %s679 = scalar_lea.vmem %s7, %s678
      %p680 = scmp.lt.s32.totalorder %s31, 1
      %s681 = scalar_select %p680, %s31, 1
      %s682 = scalar_lea.vmem %s8, %s681
      %p683 = scmp.lt.s32.totalorder %s31, 1
      %s684 = scalar_select %p683, %s31, 1
      %s685 = smul.addr %s684, 64
      %s686 = smul.addr %s685, 4
      %s687 = scalar_lea.vmem %s9, %s686
      %p688 = scmp.lt.s32.totalorder %s31, 1
      %s689 = scalar_select %p688, %s31, 1
      %s690 = smul.addr %s689, 4
      %s691 = scalar_lea.vmem %s10, %s690
      %p692 = scmp.lt.s32.totalorder %s31, 1
      %s693 = scalar_select %p692, %s31, 1
      %s694 = smul.addr %s693, 64
      %s695 = smul.addr %s694, 4
      %s696 = scalar_lea.vmem %s11, %s695
      %p697 = scmp.lt.s32.totalorder %s31, 1
      %s698 = scalar_select %p697, %s31, 1
      %s699 = scalar_lea.vmem %s12, %s698
      %p700 = scmp.lt.s32.totalorder %s30, 1
      %s701 = scalar_select %p700, %s30, 1
      %s702 = smul.addr %s701, 2
      %s703 = smul.addr %s702, 8
      %s704 = scalar_lea.vmem %s15, %s703
      %p706 = scmp.eq.s32.totalorder %s31, 0
      // Predicated region
      $region81: #{feature_vit_forward.3} parent=79 // pred_check
        %p707 = pneg %p706
      $region82: #{feature_vit_forward.3} parent=79 // pred_check_branch
        %709 = sbr.rel (%p707) target = $region84
      $region83: #{feature_vit_forward.3} parent=79 // pred_region
        %v710 = vld [vmem:[%s653] sm:$0xf]
        %v711 = vld [vmem:[%s653 + $0x4] sm:$0xf]
        %v712 = vunpack.c.l.bf16 %v710
        %v713 = vunpack.c.l.bf16 %v711
        %714 = vst [vmem:[%s704] sm:$0xff] %v712
        %715 = vst [vmem:[%s704 + $0x8] sm:$0xff] %v713
      $region84: #{feature_vit_forward.3} parent=79 // pred_fallthru
        _
      %v716 = vld [vmem:[%s704] sm:$0xff]
      %v717 = vld [vmem:[%s704 + $0x8] sm:$0xff]
      %v718 = vld [vmem:[%s656] sm:$0x1]
      %v719 = vld [vmem:[%s659] sm:$0x1]
      %720 = vadd.xlane.f32.xlu0 %v716
      %v721 = vpop.xlane.xlu0 %720
      %722 = vadd.xlane.f32.xlu0 %v717
      %v723 = vpop.xlane.xlu0 %722
      %v724 = vrcp.pop 128.0
      %v725 = vmul.f32 %v721, %v724
      %v726 = vmul.f32 %v723, %v724
      %v727 = vsub.f32 %v716, %v725
      %v728 = vsub.f32 %v717, %v726
      %v729 = vmul.f32 %v727, %v727
      %v730 = vmul.f32 %v728, %v728
      %731 = vadd.xlane.f32.xlu0 %v729
      %v732 = vpop.xlane.xlu0 %731
      %733 = vadd.xlane.f32.xlu0 %v730
      %v734 = vpop.xlane.xlu0 %733
      %v735 = vmul.f32 %v732, %v724
      %v736 = vmul.f32 %v734, %v724
      %v737 = vadd.f32 %v735, 1e-06
      %v738 = vadd.f32 %v736, 1e-06
      %v739 = vrsqrt.pop %v737
      %v740 = vrsqrt.pop %v738
      %v741 = vmul.f32 %v727, %v739
      %v742 = vmul.f32 %v728, %v740
      %v744 = vlaneseq
      %v745 = vshrl.u32 %v744, 7
      %v746 = vsub.s32 0, %v745
      %v747 = vrot.slane %v718, %v746
      %v749 = vmul.f32 %v741, %v747
      %v750 = vmul.f32 %v742, %v747
      %v752 = vlaneseq
      %v753 = vshrl.u32 %v752, 7
      %v754 = vsub.s32 0, %v753
      %v755 = vrot.slane %v719, %v754
      %v757 = vadd.f32 %v749, %v755
      %v758 = vadd.f32 %v750, %v755
      %v759 = vpack.c.bf16 %v758, %v757
      %v760 = vld [vmem:[%s664] sm:$0xff]
      %v761 = vld [vmem:[%s664 + $0x8] sm:$0xf]
      %v762 = vld [vmem:[%s664 + $0xc] sm:$0xff]
      %v763 = vld [vmem:[%s664 + $0x14] sm:$0xf]
      %v764 = vld [vmem:[%s664 + $0x18] sm:$0xff]
      %v765 = vld [vmem:[%s664 + $0x20] sm:$0xf]
      %v766 = vld [vmem:[%s664 + $0x24] sm:$0xff]
      %v767 = vld [vmem:[%s664 + $0x2c] sm:$0xf]
      %v768 = vld [vmem:[%s664 + $0x30] sm:$0xff]
      %v769 = vld [vmem:[%s664 + $0x38] sm:$0xf]
      %v770 = vld [vmem:[%s664 + $0x3c] sm:$0xff]
      %v771 = vld [vmem:[%s664 + $0x44] sm:$0xf]
      %v772 = vld [vmem:[%s664 + $0x48] sm:$0xff]
      %v773 = vld [vmem:[%s664 + $0x50] sm:$0xf]
      %v774 = vld [vmem:[%s664 + $0x54] sm:$0xff]
      %v775 = vld [vmem:[%s664 + $0x5c] sm:$0xf]
      %v776 = vld [vmem:[%s664 + $0x60] sm:$0xff]
      %v777 = vld [vmem:[%s664 + $0x68] sm:$0xf]
      %v778 = vld [vmem:[%s664 + $0x6c] sm:$0xff]
      %v779 = vld [vmem:[%s664 + $0x74] sm:$0xf]
      %v780 = vld [vmem:[%s664 + $0x78] sm:$0xff]
      %v781 = vld [vmem:[%s664 + $0x80] sm:$0xf]
      %v782 = vld [vmem:[%s664 + $0x84] sm:$0xff]
      %v783 = vld [vmem:[%s664 + $0x8c] sm:$0xf]
      %v784 = vld [vmem:[%s664 + $0x90] sm:$0xff]
      %v785 = vld [vmem:[%s664 + $0x98] sm:$0xf]
      %v786 = vld [vmem:[%s664 + $0x9c] sm:$0xff]
      %v787 = vld [vmem:[%s664 + $0xa4] sm:$0xf]
      %v788 = vld [vmem:[%s664 + $0xa8] sm:$0xff]
      %v789 = vld [vmem:[%s664 + $0xb0] sm:$0xf]
      %v790 = vld [vmem:[%s664 + $0xb4] sm:$0xff]
      %v791 = vld [vmem:[%s664 + $0xbc] sm:$0xf]
      %v792 = vld [vmem:[%s668] sm:$0x7]
      %v794 = vlaneseq
      %v795 = vshrl.u32 %v794, 7
      %v796 = vsub.s32 0, %v795
      %v797 = vrot.slane %v792, %v796
      %v798 = vlaneseq
      %v799 = vshrl.u32 %v798, 7
      %v800 = vsub.s32 1, %v799
      %v801 = vrot.slane %v792, %v800
      %v802 = vlaneseq
      %v803 = vshrl.u32 %v802, 7
      %v804 = vsub.s32 2, %v803
      %v805 = vrot.slane %v792, %v804
      %v841 = vunpack.c.l.b16 %v760
      %v842 = vunpack.c.h.b16 %v760
      %v843 = vunpack.c.l.b16 %v761
      %v844 = vunpack.c.l.b16 %v762
      %v845 = vunpack.c.h.b16 %v762
      %v846 = vunpack.c.l.b16 %v763
      %v847 = vunpack.c.l.b16 %v764
      %v848 = vunpack.c.h.b16 %v764
      %v849 = vunpack.c.l.b16 %v765
      %v850 = vunpack.c.l.b16 %v766
      %v851 = vunpack.c.h.b16 %v766
      %v852 = vunpack.c.l.b16 %v767
      %v853 = vunpack.c.l.b16 %v768
      %v854 = vunpack.c.h.b16 %v768
      %v855 = vunpack.c.l.b16 %v769
      %v856 = vunpack.c.l.b16 %v770
      %v857 = vunpack.c.h.b16 %v770
      %v858 = vunpack.c.l.b16 %v771
      %v859 = vunpack.c.l.b16 %v772
      %v860 = vunpack.c.h.b16 %v772
      %v861 = vunpack.c.l.b16 %v773
      %v862 = vunpack.c.l.b16 %v774
      %v863 = vunpack.c.h.b16 %v774
      %v864 = vunpack.c.l.b16 %v775
      %v865 = vunpack.c.l.b16 %v776
      %v866 = vunpack.c.h.b16 %v776
      %v867 = vunpack.c.l.b16 %v777
      %v868 = vunpack.c.l.b16 %v778
      %v869 = vunpack.c.h.b16 %v778
      %v870 = vunpack.c.l.b16 %v779
      %v871 = vunpack.c.l.b16 %v780
      %v872 = vunpack.c.h.b16 %v780
      %v873 = vunpack.c.l.b16 %v781
      %v874 = vunpack.c.l.b16 %v782
      %v875 = vunpack.c.h.b16 %v782
      %v876 = vunpack.c.l.b16 %v783
      %v877 = vunpack.c.l.b16 %v784
      %v878 = vunpack.c.h.b16 %v784
      %v879 = vunpack.c.l.b16 %v785
      %v880 = vunpack.c.l.b16 %v786
      %v881 = vunpack.c.h.b16 %v786
      %v882 = vunpack.c.l.b16 %v787
      %v883 = vunpack.c.l.b16 %v788
      %v884 = vunpack.c.h.b16 %v788
      %v885 = vunpack.c.l.b16 %v789
      %v886 = vunpack.c.l.b16 %v790
      %v887 = vunpack.c.h.b16 %v790
      %v888 = vunpack.c.l.b16 %v791
      %v889 = vpack.c.b16 %v844, %v841
      %v890 = vpack.c.b16 %v845, %v842
      %v891 = vpack.c.b16 %v846, %v843
      %v892 = vpack.c.b16 %v850, %v847
      %v893 = vpack.c.b16 %v851, %v848
      %v894 = vpack.c.b16 %v852, %v849
      %v895 = vpack.c.b16 %v856, %v853
      %v896 = vpack.c.b16 %v857, %v854
      %v897 = vpack.c.b16 %v858, %v855
      %v898 = vpack.c.b16 %v862, %v859
      %v899 = vpack.c.b16 %v863, %v860
      %v900 = vpack.c.b16 %v864, %v861
      %v901 = vpack.c.b16 %v868, %v865
      %v902 = vpack.c.b16 %v869, %v866
      %v903 = vpack.c.b16 %v870, %v867
      %v904 = vpack.c.b16 %v874, %v871
      %v905 = vpack.c.b16 %v875, %v872
      %v906 = vpack.c.b16 %v876, %v873
      %v907 = vpack.c.b16 %v880, %v877
      %v908 = vpack.c.b16 %v881, %v878
      %v909 = vpack.c.b16 %v882, %v879
      %v910 = vpack.c.b16 %v886, %v883
      %v911 = vpack.c.b16 %v887, %v884
      %v912 = vpack.c.b16 %v888, %v885
      %937 = vmatprep.subr.bf16.mxu0 %v890
      %938 = vmatpush1.bf16.msra.mxu0 %v889
      %939 = vmatprep.subr.bf16.mxu0 %v893
      %940 = vmatpush1.bf16.msra.mxu0 %v892
      %941 = vmatprep.subr.bf16.mxu0 %v896
      %942 = vmatpush1.bf16.msra.mxu0 %v895
      %943 = vmatprep.subr.bf16.mxu0 %v899
      %944 = vmatpush1.bf16.msra.mxu0 %v898
      %945 = vmatprep.subr.bf16.mxu0 %v902
      %946 = vmatpush1.bf16.msra.mxu0 %v901
      %947 = vmatprep.subr.bf16.mxu0 %v905
      %948 = vmatpush1.bf16.msra.mxu0 %v904
      %949 = vmatprep.subr.bf16.mxu0 %v908
      %950 = vmatpush1.bf16.msra.mxu0 %v907
      %951 = vmatprep.subr.bf16.mxu0 %v911
      %952 = vmatpush1.bf16.msra.mxu0 %v910
      %953 = vmatprep.subr.bf16.mxu0 0
      %954 = vmatpush1.bf16.msra.mxu0 0
      %955 = vmatprep.subr.bf16.mxu0 0
      %956 = vmatpush1.bf16.msra.mxu0 0
      %957 = vmatprep.subr.bf16.mxu0 0
      %958 = vmatpush1.bf16.msra.mxu0 0
      %959 = vmatprep.subr.bf16.mxu0 0
      %960 = vmatpush1.bf16.msra.mxu0 0
      %961 = vmatprep.subr.bf16.mxu0 0
      %962 = vmatpush1.bf16.msra.mxu0 0
      %963 = vmatprep.subr.bf16.mxu0 0
      %964 = vmatpush1.bf16.msra.mxu0 0
      %965 = vmatprep.subr.bf16.mxu0 0
      %966 = vmatpush1.bf16.msra.mxu0 0
      %967 = vmatprep.subr.bf16.mxu0 0
      %968 = vmatpush1.bf16.msra.mxu0 0
      %969 = vmatprep.mubr.bf16.mxu0 0
      %970 = vmatmul.mubr.bf16.gmra.mrb[0].mxu0 %v759
      %v971 = vpop.f32.mrb[0].mxu0
      %v972 = vadd.f32 %v797, %v971
      %v973 = vpop.f32.mrb[0].mxu0
      %v974 = vadd.f32 %v801, %v973
      %v975 = vpop.f32.mrb[0].mxu0
      %v976 = vadd.f32 %v797, %v975
      %v977 = vpop.f32.mrb[0].mxu0
      %v978 = vadd.f32 %v801, %v977
      %979 = vdwg.mxu0
      %980 = vmatprep.subr.bf16.mxu0 0
      %981 = vmatpush1.bf16.msra.mxu0 %v891
      %982 = vmatprep.subr.bf16.mxu0 0
      %983 = vmatpush1.bf16.msra.mxu0 %v894
      %984 = vmatprep.subr.bf16.mxu0 0
      %985 = vmatpush1.bf16.msra.mxu0 %v897
      %986 = vmatprep.subr.bf16.mxu0 0
      %987 = vmatpush1.bf16.msra.mxu0 %v900
      %988 = vmatprep.subr.bf16.mxu0 0
      %989 = vmatpush1.bf16.msra.mxu0 %v903
      %990 = vmatprep.subr.bf16.mxu0 0
      %991 = vmatpush1.bf16.msra.mxu0 %v906
      %992 = vmatprep.subr.bf16.mxu0 0
      %993 = vmatpush1.bf16.msra.mxu0 %v909
      %994 = vmatprep.subr.bf16.mxu0 0
      %995 = vmatpush1.bf16.msra.mxu0 %v912
      %996 = vmatprep.subr.bf16.mxu0 0
      %997 = vmatpush1.bf16.msra.mxu0 0
      %998 = vmatprep.subr.bf16.mxu0 0
      %999 = vmatpush1.bf16.msra.mxu0 0
      %1000 = vmatprep.subr.bf16.mxu0 0
      %1001 = vmatpush1.bf16.msra.mxu0 0
      %1002 = vmatprep.subr.bf16.mxu0 0
      %1003 = vmatpush1.bf16.msra.mxu0 0
      %1004 = vmatprep.subr.bf16.mxu0 0
      %1005 = vmatpush1.bf16.msra.mxu0 0
      %1006 = vmatprep.subr.bf16.mxu0 0
      %1007 = vmatpush1.bf16.msra.mxu0 0
      %1008 = vmatprep.subr.bf16.mxu0 0
      %1009 = vmatpush1.bf16.msra.mxu0 0
      %1010 = vmatprep.subr.bf16.mxu0 0
      %1011 = vmatpush1.bf16.msra.mxu0 0
      %1012 = vmatprep.mubr.bf16.mxu0 0
      %1013 = vmatmul.mubr.bf16.gmra.mrb[0].mxu0 %v759
      %v1014 = vpop.f32.mrb[0].mxu0
      %v1015 = vadd.f32 %v805, %v1014
      %v1016 = vpop.f32.mrb[0].mxu0
      %v1017 = vpop.f32.mrb[0].mxu0
      %v1018 = vadd.f32 %v805, %v1017
      %v1019 = vpop.f32.mrb[0].mxu0
      %1020 = vdwg.mxu0
      %v1021 = vpack.c.bf16 %v976, %v972
      %v1022 = vpack.c.bf16 %v978, %v974
      %v1023 = vpack.c.bf16 %v1018, %v1015
      %v1024 = vlaneseq
      %v1025 = vand.u32 %v1024, 127
      %vm1026 = vcmp.lt.s32.totalorder %v1025, 9
      %v1027 = vsel %vm1026, 0.0, -1e+30
      %v1028 = vlaneseq
      %v1029 = vshrl.u32 %v1028, 7
      %v1030 = vadd.s32 %v1029, 8
      %vm1031 = vcmp.lt.s32.totalorder %v1029, 9
      %vm1032 = vcmp.lt.s32.totalorder %v1030, 9
      %v1033 = vsel %vm1031, 1, 0
      %v1034 = vsel %vm1032, 1, 0
      %v1035 = vcvt.s32.f32 %v1033
      %v1036 = vcvt.s32.f32 %v1034
      %v1037 = vpack.c.bf16 %v1036, %v1035
      %v1038 = vmul.bf16 %v1021, %v1037
      %v1039 = vmul.bf16 %v1022, %v1037
      %v1040 = vmul.bf16 %v1023, %v1037
      %vm1041 = vcmask 261120
      %v1043 = vsel %vm1041, %v1038, 0
      %v1046 = vsel %vm1041, %v1039, 0
      %1048 = vmatprep.subr.bf16.mxu0 0
      %1049 = vmatpush1.bf16.xpose.msra.mxu0 %v1046
      %1050 = vmatprep.subr.bf16.mxu0 0
      %1051 = vmatpush1.bf16.xpose.msra.mxu0 0
      %1052 = vmatprep.subr.bf16.mxu0 0
      %1053 = vmatpush1.bf16.xpose.msra.mxu0 0
      %1054 = vmatprep.subr.bf16.mxu0 0
      %1055 = vmatpush1.bf16.xpose.msra.mxu0 0
      %1056 = vmatprep.subr.bf16.mxu0 0
      %1057 = vmatpush1.bf16.xpose.msra.mxu0 0
      %1058 = vmatprep.subr.bf16.mxu0 0
      %1059 = vmatpush1.bf16.xpose.msra.mxu0 0
      %1060 = vmatprep.subr.bf16.mxu0 0
      %1061 = vmatpush1.bf16.xpose.msra.mxu0 0
      %1062 = vmatprep.subr.bf16.mxu0 0
      %1063 = vmatpush1.bf16.xpose.msra.mxu0 0
      %1064 = vmatprep.subr.bf16.mxu0 0
      %1065 = vmatpush1.bf16.xpose.msra.mxu0 0
      %1066 = vmatprep.subr.bf16.mxu0 0
      %1067 = vmatpush1.bf16.xpose.msra.mxu0 0
      %1068 = vmatprep.subr.bf16.mxu0 0
      %1069 = vmatpush1.bf16.xpose.msra.mxu0 0
      %1070 = vmatprep.subr.bf16.mxu0 0
      %1071 = vmatpush1.bf16.xpose.msra.mxu0 0
      %1072 = vmatprep.subr.bf16.mxu0 0
      %1073 = vmatpush1.bf16.xpose.msra.mxu0 0
      %1074 = vmatprep.subr.bf16.mxu0 0
      %1075 = vmatpush1.bf16.xpose.msra.mxu0 0
      %1076 = vmatprep.subr.bf16.mxu0 0
      %1077 = vmatpush1.bf16.xpose.msra.mxu0 0
      %1078 = vmatprep.subr.bf16.mxu0 0
      %1079 = vmatpush1.bf16.xpose.msra.mxu0 0
      %1080 = vmatprep.mubr.bf16.mxu0 0
      %1081 = vmatmul.mubr.bf16.gmra.mrb[0].mxu0 %v1043
      %v1082 = vpop.f32.mrb[0].mxu0
      %v1083 = vadd.f32 0.0, %v1082
      %v1084 = vpop.f32.mrb[0].mxu0
      %v1085 = vpop.f32.mrb[0].mxu0
      %v1086 = vadd.f32 0.0, %v1085
      %v1087 = vpop.f32.mrb[0].mxu0
      %1088 = vdwg.mxu0
      %v1089 = vmul.f32 %v1083, 0.17677669
      %v1090 = vmul.f32 %v1086, 0.17677669
      %v1091 = vadd.f32 %v1089, %v1027
      %v1092 = vadd.f32 %v1090, %v1027
      %vm1093 = vcmask 130048
      %v1094 = vsel %vm1093, %v1091, -inf
      %1095 = vmax.xlane.f32.xlu0 %v1094
      %v1096 = vpop.xlane.xlu0 %1095
      %v1097 = vsel %vm1093, %v1092, -inf
      %1098 = vmax.xlane.f32.xlu0 %v1097
      %v1099 = vpop.xlane.xlu0 %1098
      %v1100 = vsub.f32 %v1091, %v1096
      %v1101 = vsub.f32 %v1092, %v1099
      %v1102 = vmul.f32 %v1100, 1.442695
      %v1103 = vpow.pop %v1102
      %v1104 = vmul.f32 %v1101, 1.442695
      %v1105 = vpow.pop %v1104
      %v1106 = vsel %vm1093, %v1103, 0.0
      %1107 = vadd.xlane.f32.xlu0 %v1106
      %v1108 = vpop.xlane.xlu0 %1107
      %v1109 = vsel %vm1093, %v1105, 0.0
      %1110 = vadd.xlane.f32.xlu0 %v1109
      %v1111 = vpop.xlane.xlu0 %1110
      %v1112 = vrcp.pop %v1108
      %v1113 = vrcp.pop %v1111
      %v1114 = vmul.f32 %v1103, %v1112
      %v1115 = vmul.f32 %v1105, %v1113
      %v1116 = vpack.c.bf16 %v1115, %v1114
      %v1118 = vsel %vm1093, %v1116, 0
      %1120 = vmatprep.subr.bf16.mxu0 0
      %1121 = vmatpush1.bf16.msra.mxu0 %v1040
      %1122 = vmatprep.subr.bf16.mxu0 0
      %1123 = vmatpush1.bf16.msra.mxu0 0
      %1124 = vmatprep.subr.bf16.mxu0 0
      %1125 = vmatpush1.bf16.msra.mxu0 0
      %1126 = vmatprep.subr.bf16.mxu0 0
      %1127 = vmatpush1.bf16.msra.mxu0 0
      %1128 = vmatprep.subr.bf16.mxu0 0
      %1129 = vmatpush1.bf16.msra.mxu0 0
      %1130 = vmatprep.subr.bf16.mxu0 0
      %1131 = vmatpush1.bf16.msra.mxu0 0
      %1132 = vmatprep.subr.bf16.mxu0 0
      %1133 = vmatpush1.bf16.msra.mxu0 0
      %1134 = vmatprep.subr.bf16.mxu0 0
      %1135 = vmatpush1.bf16.msra.mxu0 0
      %1136 = vmatprep.subr.bf16.mxu0 0
      %1137 = vmatpush1.bf16.msra.mxu0 0
      %1138 = vmatprep.subr.bf16.mxu0 0
      %1139 = vmatpush1.bf16.msra.mxu0 0
      %1140 = vmatprep.subr.bf16.mxu0 0
      %1141 = vmatpush1.bf16.msra.mxu0 0
      %1142 = vmatprep.subr.bf16.mxu0 0
      %1143 = vmatpush1.bf16.msra.mxu0 0
      %1144 = vmatprep.subr.bf16.mxu0 0
      %1145 = vmatpush1.bf16.msra.mxu0 0
      %1146 = vmatprep.subr.bf16.mxu0 0
      %1147 = vmatpush1.bf16.msra.mxu0 0
      %1148 = vmatprep.subr.bf16.mxu0 0
      %1149 = vmatpush1.bf16.msra.mxu0 0
      %1150 = vmatprep.subr.bf16.mxu0 0
      %1151 = vmatpush1.bf16.msra.mxu0 0
      %1152 = vmatprep.mubr.bf16.mxu0 0
      %1153 = vmatmul.mubr.bf16.gmra.mrb[0].mxu0 %v1118
      %v1154 = vpop.f32.mrb[0].mxu0
      %v1155 = vadd.f32 0.0, %v1154
      %v1156 = vpop.f32.mrb[0].mxu0
      %v1157 = vpop.f32.mrb[0].mxu0
      %v1158 = vadd.f32 0.0, %v1157
      %v1159 = vpop.f32.mrb[0].mxu0
      %1160 = vdwg.mxu0
      %1162 = vrot.lane.b32.xlu0 %v1038, 96
      %v1163 = vpop.permute.xlu0 %1162
      %1165 = vrot.lane.b32.xlu0 %v1039, 96
      %v1166 = vpop.permute.xlu0 %1165
      %v1168 = vsel %vm1041, %v1163, 0
      %v1171 = vsel %vm1041, %v1166, 0
      %1173 = vmatprep.subr.bf16.mxu0 0
      %1174 = vmatpush1.bf16.xpose.msra.mxu0 %v1171
      %1175 = vmatprep.subr.bf16.mxu0 0
      %1176 = vmatpush1.bf16.xpose.msra.mxu0 0
      %1177 = vmatprep.subr.bf16.mxu0 0
      %1178 = vmatpush1.bf16.xpose.msra.mxu0 0
      %1179 = vmatprep.subr.bf16.mxu0 0
      %1180 = vmatpush1.bf16.xpose.msra.mxu0 0
      %1181 = vmatprep.subr.bf16.mxu0 0
      %1182 = vmatpush1.bf16.xpose.msra.mxu0 0
      %1183 = vmatprep.subr.bf16.mxu0 0
      %1184 = vmatpush1.bf16.xpose.msra.mxu0 0
      %1185 = vmatprep.subr.bf16.mxu0 0
      %1186 = vmatpush1.bf16.xpose.msra.mxu0 0
      %1187 = vmatprep.subr.bf16.mxu0 0
      %1188 = vmatpush1.bf16.xpose.msra.mxu0 0
      %1189 = vmatprep.subr.bf16.mxu0 0
      %1190 = vmatpush1.bf16.xpose.msra.mxu0 0
      %1191 = vmatprep.subr.bf16.mxu0 0
      %1192 = vmatpush1.bf16.xpose.msra.mxu0 0
      %1193 = vmatprep.subr.bf16.mxu0 0
      %1194 = vmatpush1.bf16.xpose.msra.mxu0 0
      %1195 = vmatprep.subr.bf16.mxu0 0
      %1196 = vmatpush1.bf16.xpose.msra.mxu0 0
      %1197 = vmatprep.subr.bf16.mxu0 0
      %1198 = vmatpush1.bf16.xpose.msra.mxu0 0
      %1199 = vmatprep.subr.bf16.mxu0 0
      %1200 = vmatpush1.bf16.xpose.msra.mxu0 0
      %1201 = vmatprep.subr.bf16.mxu0 0
      %1202 = vmatpush1.bf16.xpose.msra.mxu0 0
      %1203 = vmatprep.subr.bf16.mxu0 0
      %1204 = vmatpush1.bf16.xpose.msra.mxu0 0
      %1205 = vmatprep.mubr.bf16.mxu0 0
      %1206 = vmatmul.mubr.bf16.gmra.mrb[0].mxu0 %v1168
      %v1207 = vpop.f32.mrb[0].mxu0
      %v1208 = vadd.f32 0.0, %v1207
      %v1209 = vpop.f32.mrb[0].mxu0
      %v1210 = vpop.f32.mrb[0].mxu0
      %v1211 = vadd.f32 0.0, %v1210
      %v1212 = vpop.f32.mrb[0].mxu0
      %1213 = vdwg.mxu0
      %v1214 = vmul.f32 %v1208, 0.17677669
      %v1215 = vmul.f32 %v1211, 0.17677669
      %v1216 = vadd.f32 %v1214, %v1027
      %v1217 = vadd.f32 %v1215, %v1027
      %v1218 = vsel %vm1093, %v1216, -inf
      %1219 = vmax.xlane.f32.xlu0 %v1218
      %v1220 = vpop.xlane.xlu0 %1219
      %v1221 = vsel %vm1093, %v1217, -inf
      %1222 = vmax.xlane.f32.xlu0 %v1221
      %v1223 = vpop.xlane.xlu0 %1222
      %v1224 = vsub.f32 %v1216, %v1220
      %v1225 = vsub.f32 %v1217, %v1223
      %v1226 = vmul.f32 %v1224, 1.442695
      %v1227 = vpow.pop %v1226
      %v1228 = vmul.f32 %v1225, 1.442695
      %v1229 = vpow.pop %v1228
      %v1230 = vsel %vm1093, %v1227, 0.0
      %1231 = vadd.xlane.f32.xlu0 %v1230
      %v1232 = vpop.xlane.xlu0 %1231
      %v1233 = vsel %vm1093, %v1229, 0.0
      %1234 = vadd.xlane.f32.xlu0 %v1233
      %v1235 = vpop.xlane.xlu0 %1234
      %v1236 = vrcp.pop %v1232
      %v1237 = vrcp.pop %v1235
      %v1238 = vmul.f32 %v1227, %v1236
      %v1239 = vmul.f32 %v1229, %v1237
      %v1240 = vpack.c.bf16 %v1239, %v1238
      %1242 = vrot.lane.b32.xlu0 %v1040, 96
      %v1243 = vpop.permute.xlu0 %1242
      %v1246 = vsel %vm1093, %v1240, 0
      %1248 = vmatprep.subr.bf16.mxu0 0
      %1249 = vmatpush1.bf16.msra.mxu0 %v1243
      %1250 = vmatprep.subr.bf16.mxu0 0
      %1251 = vmatpush1.bf16.msra.mxu0 0
      %1252 = vmatprep.subr.bf16.mxu0 0
      %1253 = vmatpush1.bf16.msra.mxu0 0
      %1254 = vmatprep.subr.bf16.mxu0 0
      %1255 = vmatpush1.bf16.msra.mxu0 0
      %1256 = vmatprep.subr.bf16.mxu0 0
      %1257 = vmatpush1.bf16.msra.mxu0 0
      %1258 = vmatprep.subr.bf16.mxu0 0
      %1259 = vmatpush1.bf16.msra.mxu0 0
      %1260 = vmatprep.subr.bf16.mxu0 0
      %1261 = vmatpush1.bf16.msra.mxu0 0
      %1262 = vmatprep.subr.bf16.mxu0 0
      %1263 = vmatpush1.bf16.msra.mxu0 0
      %1264 = vmatprep.subr.bf16.mxu0 0
      %1265 = vmatpush1.bf16.msra.mxu0 0
      %1266 = vmatprep.subr.bf16.mxu0 0
      %1267 = vmatpush1.bf16.msra.mxu0 0
      %1268 = vmatprep.subr.bf16.mxu0 0
      %1269 = vmatpush1.bf16.msra.mxu0 0
      %1270 = vmatprep.subr.bf16.mxu0 0
      %1271 = vmatpush1.bf16.msra.mxu0 0
      %1272 = vmatprep.subr.bf16.mxu0 0
      %1273 = vmatpush1.bf16.msra.mxu0 0
      %1274 = vmatprep.subr.bf16.mxu0 0
      %1275 = vmatpush1.bf16.msra.mxu0 0
      %1276 = vmatprep.subr.bf16.mxu0 0
      %1277 = vmatpush1.bf16.msra.mxu0 0
      %1278 = vmatprep.subr.bf16.mxu0 0
      %1279 = vmatpush1.bf16.msra.mxu0 0
      %1280 = vmatprep.mubr.bf16.mxu0 0
      %1281 = vmatmul.mubr.bf16.gmra.mrb[0].mxu0 %v1246
      %v1282 = vpop.f32.mrb[0].mxu0
      %v1283 = vadd.f32 0.0, %v1282
      %v1284 = vpop.f32.mrb[0].mxu0
      %v1285 = vpop.f32.mrb[0].mxu0
      %v1286 = vadd.f32 0.0, %v1285
      %v1287 = vpop.f32.mrb[0].mxu0
      %1288 = vdwg.mxu0
      %1289 = vrot.lane.b32.xlu0 %v1038, 64
      %v1290 = vpop.permute.xlu0 %1289
      %1291 = vrot.lane.b32.xlu0 %v1039, 64
      %v1292 = vpop.permute.xlu0 %1291
      %v1294 = vsel %vm1041, %v1290, 0
      %v1297 = vsel %vm1041, %v1292, 0
      %1299 = vmatprep.subr.bf16.mxu0 0
      %1300 = vmatpush1.bf16.xpose.msra.mxu0 %v1297
      %1301 = vmatprep.subr.bf16.mxu0 0
      %1302 = vmatpush1.bf16.xpose.msra.mxu0 0
      %1303 = vmatprep.subr.bf16.mxu0 0
      %1304 = vmatpush1.bf16.xpose.msra.mxu0 0
      %1305 = vmatprep.subr.bf16.mxu0 0
      %1306 = vmatpush1.bf16.xpose.msra.mxu0 0
      %1307 = vmatprep.subr.bf16.mxu0 0
      %1308 = vmatpush1.bf16.xpose.msra.mxu0 0
      %1309 = vmatprep.subr.bf16.mxu0 0
      %1310 = vmatpush1.bf16.xpose.msra.mxu0 0
      %1311 = vmatprep.subr.bf16.mxu0 0
      %1312 = vmatpush1.bf16.xpose.msra.mxu0 0
      %1313 = vmatprep.subr.bf16.mxu0 0
      %1314 = vmatpush1.bf16.xpose.msra.mxu0 0
      %1315 = vmatprep.subr.bf16.mxu0 0
      %1316 = vmatpush1.bf16.xpose.msra.mxu0 0
      %1317 = vmatprep.subr.bf16.mxu0 0
      %1318 = vmatpush1.bf16.xpose.msra.mxu0 0
      %1319 = vmatprep.subr.bf16.mxu0 0
      %1320 = vmatpush1.bf16.xpose.msra.mxu0 0
      %1321 = vmatprep.subr.bf16.mxu0 0
      %1322 = vmatpush1.bf16.xpose.msra.mxu0 0
      %1323 = vmatprep.subr.bf16.mxu0 0
      %1324 = vmatpush1.bf16.xpose.msra.mxu0 0
      %1325 = vmatprep.subr.bf16.mxu0 0
      %1326 = vmatpush1.bf16.xpose.msra.mxu0 0
      %1327 = vmatprep.subr.bf16.mxu0 0
      %1328 = vmatpush1.bf16.xpose.msra.mxu0 0
      %1329 = vmatprep.subr.bf16.mxu0 0
      %1330 = vmatpush1.bf16.xpose.msra.mxu0 0
      %1331 = vmatprep.mubr.bf16.mxu0 0
      %1332 = vmatmul.mubr.bf16.gmra.mrb[0].mxu0 %v1294
      %v1333 = vpop.f32.mrb[0].mxu0
      %v1334 = vadd.f32 0.0, %v1333
      %v1335 = vpop.f32.mrb[0].mxu0
      %v1336 = vpop.f32.mrb[0].mxu0
      %v1337 = vadd.f32 0.0, %v1336
      %v1338 = vpop.f32.mrb[0].mxu0
      %1339 = vdwg.mxu0
      %v1340 = vmul.f32 %v1334, 0.17677669
      %v1341 = vmul.f32 %v1337, 0.17677669
      %v1342 = vadd.f32 %v1340, %v1027
      %v1343 = vadd.f32 %v1341, %v1027
      %v1344 = vsel %vm1093, %v1342, -inf
      %1345 = vmax.xlane.f32.xlu0 %v1344
      %v1346 = vpop.xlane.xlu0 %1345
      %v1347 = vsel %vm1093, %v1343, -inf
      %1348 = vmax.xlane.f32.xlu0 %v1347
      %v1349 = vpop.xlane.xlu0 %1348
      %v1350 = vsub.f32 %v1342, %v1346
      %v1351 = vsub.f32 %v1343, %v1349
      %v1352 = vmul.f32 %v1350, 1.442695
      %v1353 = vpow.pop %v1352
      %v1354 = vmul.f32 %v1351, 1.442695
      %v1355 = vpow.pop %v1354
      %v1356 = vsel %vm1093, %v1353, 0.0
      %1357 = vadd.xlane.f32.xlu0 %v1356
      %v1358 = vpop.xlane.xlu0 %1357
      %v1359 = vsel %vm1093, %v1355, 0.0
      %1360 = vadd.xlane.f32.xlu0 %v1359
      %v1361 = vpop.xlane.xlu0 %1360
      %v1362 = vrcp.pop %v1358
      %v1363 = vrcp.pop %v1361
      %v1364 = vmul.f32 %v1353, %v1362
      %v1365 = vmul.f32 %v1355, %v1363
      %v1366 = vpack.c.bf16 %v1365, %v1364
      %1367 = vrot.lane.b32.xlu0 %v1040, 64
      %v1368 = vpop.permute.xlu0 %1367
      %v1371 = vsel %vm1093, %v1366, 0
      %1373 = vmatprep.subr.bf16.mxu0 0
      %1374 = vmatpush1.bf16.msra.mxu0 %v1368
      %1375 = vmatprep.subr.bf16.mxu0 0
      %1376 = vmatpush1.bf16.msra.mxu0 0
      %1377 = vmatprep.subr.bf16.mxu0 0
      %1378 = vmatpush1.bf16.msra.mxu0 0
      %1379 = vmatprep.subr.bf16.mxu0 0
      %1380 = vmatpush1.bf16.msra.mxu0 0
      %1381 = vmatprep.subr.bf16.mxu0 0
      %1382 = vmatpush1.bf16.msra.mxu0 0
      %1383 = vmatprep.subr.bf16.mxu0 0
      %1384 = vmatpush1.bf16.msra.mxu0 0
      %1385 = vmatprep.subr.bf16.mxu0 0
      %1386 = vmatpush1.bf16.msra.mxu0 0
      %1387 = vmatprep.subr.bf16.mxu0 0
      %1388 = vmatpush1.bf16.msra.mxu0 0
      %1389 = vmatprep.subr.bf16.mxu0 0
      %1390 = vmatpush1.bf16.msra.mxu0 0
      %1391 = vmatprep.subr.bf16.mxu0 0
      %1392 = vmatpush1.bf16.msra.mxu0 0
      %1393 = vmatprep.subr.bf16.mxu0 0
      %1394 = vmatpush1.bf16.msra.mxu0 0
      %1395 = vmatprep.subr.bf16.mxu0 0
      %1396 = vmatpush1.bf16.msra.mxu0 0
      %1397 = vmatprep.subr.bf16.mxu0 0
      %1398 = vmatpush1.bf16.msra.mxu0 0
      %1399 = vmatprep.subr.bf16.mxu0 0
      %1400 = vmatpush1.bf16.msra.mxu0 0
      %1401 = vmatprep.subr.bf16.mxu0 0
      %1402 = vmatpush1.bf16.msra.mxu0 0
      %1403 = vmatprep.subr.bf16.mxu0 0
      %1404 = vmatpush1.bf16.msra.mxu0 0
      %1405 = vmatprep.mubr.bf16.mxu0 0
      %1406 = vmatmul.mubr.bf16.gmra.mrb[0].mxu0 %v1371
      %v1407 = vpop.f32.mrb[0].mxu0
      %v1408 = vadd.f32 0.0, %v1407
      %v1409 = vpop.f32.mrb[0].mxu0
      %v1410 = vpop.f32.mrb[0].mxu0
      %v1411 = vadd.f32 0.0, %v1410
      %v1412 = vpop.f32.mrb[0].mxu0
      %1413 = vdwg.mxu0
      %1414 = vrot.lane.b32.xlu0 %v1038, 32
      %v1415 = vpop.permute.xlu0 %1414
      %1416 = vrot.lane.b32.xlu0 %v1039, 32
      %v1417 = vpop.permute.xlu0 %1416
      %v1419 = vsel %vm1041, %v1415, 0
      %v1422 = vsel %vm1041, %v1417, 0
      %1424 = vmatprep.subr.bf16.mxu0 0
      %1425 = vmatpush1.bf16.xpose.msra.mxu0 %v1422
      %1426 = vmatprep.subr.bf16.mxu0 0
      %1427 = vmatpush1.bf16.xpose.msra.mxu0 0
      %1428 = vmatprep.subr.bf16.mxu0 0
      %1429 = vmatpush1.bf16.xpose.msra.mxu0 0
      %1430 = vmatprep.subr.bf16.mxu0 0
      %1431 = vmatpush1.bf16.xpose.msra.mxu0 0
      %1432 = vmatprep.subr.bf16.mxu0 0
      %1433 = vmatpush1.bf16.xpose.msra.mxu0 0
      %1434 = vmatprep.subr.bf16.mxu0 0
      %1435 = vmatpush1.bf16.xpose.msra.mxu0 0
      %1436 = vmatprep.subr.bf16.mxu0 0
      %1437 = vmatpush1.bf16.xpose.msra.mxu0 0
      %1438 = vmatprep.subr.bf16.mxu0 0
      %1439 = vmatpush1.bf16.xpose.msra.mxu0 0
      %1440 = vmatprep.subr.bf16.mxu0 0
      %1441 = vmatpush1.bf16.xpose.msra.mxu0 0
      %1442 = vmatprep.subr.bf16.mxu0 0
      %1443 = vmatpush1.bf16.xpose.msra.mxu0 0
      %1444 = vmatprep.subr.bf16.mxu0 0
      %1445 = vmatpush1.bf16.xpose.msra.mxu0 0
      %1446 = vmatprep.subr.bf16.mxu0 0
      %1447 = vmatpush1.bf16.xpose.msra.mxu0 0
      %1448 = vmatprep.subr.bf16.mxu0 0
      %1449 = vmatpush1.bf16.xpose.msra.mxu0 0
      %1450 = vmatprep.subr.bf16.mxu0 0
      %1451 = vmatpush1.bf16.xpose.msra.mxu0 0
      %1452 = vmatprep.subr.bf16.mxu0 0
      %1453 = vmatpush1.bf16.xpose.msra.mxu0 0
      %1454 = vmatprep.subr.bf16.mxu0 0
      %1455 = vmatpush1.bf16.xpose.msra.mxu0 0
      %1456 = vmatprep.mubr.bf16.mxu0 0
      %1457 = vmatmul.mubr.bf16.gmra.mrb[0].mxu0 %v1419
      %v1458 = vpop.f32.mrb[0].mxu0
      %v1459 = vadd.f32 0.0, %v1458
      %v1460 = vpop.f32.mrb[0].mxu0
      %v1461 = vpop.f32.mrb[0].mxu0
      %v1462 = vadd.f32 0.0, %v1461
      %v1463 = vpop.f32.mrb[0].mxu0
      %1464 = vdwg.mxu0
      %v1465 = vmul.f32 %v1459, 0.17677669
      %v1466 = vmul.f32 %v1462, 0.17677669
      %v1467 = vadd.f32 %v1465, %v1027
      %v1468 = vadd.f32 %v1466, %v1027
      %v1469 = vsel %vm1093, %v1467, -inf
      %1470 = vmax.xlane.f32.xlu0 %v1469
      %v1471 = vpop.xlane.xlu0 %1470
      %v1472 = vsel %vm1093, %v1468, -inf
      %1473 = vmax.xlane.f32.xlu0 %v1472
      %v1474 = vpop.xlane.xlu0 %1473
      %v1475 = vsub.f32 %v1467, %v1471
      %v1476 = vsub.f32 %v1468, %v1474
      %v1477 = vmul.f32 %v1475, 1.442695
      %v1478 = vpow.pop %v1477
      %v1479 = vmul.f32 %v1476, 1.442695
      %v1480 = vpow.pop %v1479
      %v1481 = vsel %vm1093, %v1478, 0.0
      %1482 = vadd.xlane.f32.xlu0 %v1481
      %v1483 = vpop.xlane.xlu0 %1482
      %v1484 = vsel %vm1093, %v1480, 0.0
      %1485 = vadd.xlane.f32.xlu0 %v1484
      %v1486 = vpop.xlane.xlu0 %1485
      %v1487 = vrcp.pop %v1483
      %v1488 = vrcp.pop %v1486
      %v1489 = vmul.f32 %v1478, %v1487
      %v1490 = vmul.f32 %v1480, %v1488
      %v1491 = vpack.c.bf16 %v1490, %v1489
      %1492 = vrot.lane.b32.xlu0 %v1040, 32
      %v1493 = vpop.permute.xlu0 %1492
      %v1496 = vsel %vm1093, %v1491, 0
      %1498 = vmatprep.subr.bf16.mxu0 0
      %1499 = vmatpush1.bf16.msra.mxu0 %v1493
      %1500 = vmatprep.subr.bf16.mxu0 0
      %1501 = vmatpush1.bf16.msra.mxu0 0
      %1502 = vmatprep.subr.bf16.mxu0 0
      %1503 = vmatpush1.bf16.msra.mxu0 0
      %1504 = vmatprep.subr.bf16.mxu0 0
      %1505 = vmatpush1.bf16.msra.mxu0 0
      %1506 = vmatprep.subr.bf16.mxu0 0
      %1507 = vmatpush1.bf16.msra.mxu0 0
      %1508 = vmatprep.subr.bf16.mxu0 0
      %1509 = vmatpush1.bf16.msra.mxu0 0
      %1510 = vmatprep.subr.bf16.mxu0 0
      %1511 = vmatpush1.bf16.msra.mxu0 0
      %1512 = vmatprep.subr.bf16.mxu0 0
      %1513 = vmatpush1.bf16.msra.mxu0 0
      %1514 = vmatprep.subr.bf16.mxu0 0
      %1515 = vmatpush1.bf16.msra.mxu0 0
      %1516 = vmatprep.subr.bf16.mxu0 0
      %1517 = vmatpush1.bf16.msra.mxu0 0
      %1518 = vmatprep.subr.bf16.mxu0 0
      %1519 = vmatpush1.bf16.msra.mxu0 0
      %1520 = vmatprep.subr.bf16.mxu0 0
      %1521 = vmatpush1.bf16.msra.mxu0 0
      %1522 = vmatprep.subr.bf16.mxu0 0
      %1523 = vmatpush1.bf16.msra.mxu0 0
      %1524 = vmatprep.subr.bf16.mxu0 0
      %1525 = vmatpush1.bf16.msra.mxu0 0
      %1526 = vmatprep.subr.bf16.mxu0 0
      %1527 = vmatpush1.bf16.msra.mxu0 0
      %1528 = vmatprep.subr.bf16.mxu0 0
      %1529 = vmatpush1.bf16.msra.mxu0 0
      %1530 = vmatprep.mubr.bf16.mxu0 0
      %1531 = vmatmul.mubr.bf16.gmra.mrb[0].mxu0 %v1496
      %v1532 = vpop.f32.mrb[0].mxu0
      %v1533 = vadd.f32 0.0, %v1532
      %v1534 = vpop.f32.mrb[0].mxu0
      %v1535 = vpop.f32.mrb[0].mxu0
      %v1536 = vadd.f32 0.0, %v1535
      %v1537 = vpop.f32.mrb[0].mxu0
      %1538 = vdwg.mxu0
      %1541 = vrot.lane.b32.xlu0 %v1283, 32
      %v1542 = vpop.permute.xlu0 %1541
      %1543 = vrot.lane.b32.xlu0 %v1286, 32
      %v1544 = vpop.permute.xlu0 %1543
      %1549 = vrot.lane.b32.xlu0 %v1408, 64
      %v1550 = vpop.permute.xlu0 %1549
      %1551 = vrot.lane.b32.xlu0 %v1411, 64
      %v1552 = vpop.permute.xlu0 %1551
      %1557 = vrot.lane.b32.xlu0 %v1533, 96
      %v1558 = vpop.permute.xlu0 %1557
      %1559 = vrot.lane.b32.xlu0 %v1536, 96
      %v1560 = vpop.permute.xlu0 %1559
      %v1563 = vsel %vm1041, %v1155, %v1542
      %v1564 = vsel %vm1041, %v1158, %v1544
      %vm1565 = vcmask 523264
      %v1566 = vsel %vm1565, %v1563, %v1550
      %v1567 = vsel %vm1565, %v1564, %v1552
      %vm1568 = vcmask 785408
      %v1569 = vsel %vm1568, %v1566, %v1558
      %v1570 = vsel %vm1568, %v1567, %v1560
      %v1571 = vpack.c.bf16 %v1570, %v1569
      %v1572 = vld [vmem:[%s673] sm:$0xf]
      %v1573 = vld [vmem:[%s673 + $0x4] sm:$0xf]
      %v1574 = vld [vmem:[%s673 + $0x8] sm:$0xf]
      %v1575 = vld [vmem:[%s673 + $0xc] sm:$0xf]
      %v1576 = vld [vmem:[%s673 + $0x10] sm:$0xf]
      %v1577 = vld [vmem:[%s673 + $0x14] sm:$0xf]
      %v1578 = vld [vmem:[%s673 + $0x18] sm:$0xf]
      %v1579 = vld [vmem:[%s673 + $0x1c] sm:$0xf]
      %v1580 = vld [vmem:[%s673 + $0x20] sm:$0xf]
      %v1581 = vld [vmem:[%s673 + $0x24] sm:$0xf]
      %v1582 = vld [vmem:[%s673 + $0x28] sm:$0xf]
      %v1583 = vld [vmem:[%s673 + $0x2c] sm:$0xf]
      %v1584 = vld [vmem:[%s673 + $0x30] sm:$0xf]
      %v1585 = vld [vmem:[%s673 + $0x34] sm:$0xf]
      %v1586 = vld [vmem:[%s673 + $0x38] sm:$0xf]
      %v1587 = vld [vmem:[%s673 + $0x3c] sm:$0xf]
      %v1604 = vunpack.c.l.b16 %v1572
      %v1605 = vunpack.c.l.b16 %v1573
      %v1606 = vunpack.c.l.b16 %v1574
      %v1607 = vunpack.c.l.b16 %v1575
      %v1608 = vunpack.c.l.b16 %v1576
      %v1609 = vunpack.c.l.b16 %v1577
      %v1610 = vunpack.c.l.b16 %v1578
      %v1611 = vunpack.c.l.b16 %v1579
      %v1612 = vunpack.c.l.b16 %v1580
      %v1613 = vunpack.c.l.b16 %v1581
      %v1614 = vunpack.c.l.b16 %v1582
      %v1615 = vunpack.c.l.b16 %v1583
      %v1616 = vunpack.c.l.b16 %v1584
      %v1617 = vunpack.c.l.b16 %v1585
      %v1618 = vunpack.c.l.b16 %v1586
      %v1619 = vunpack.c.l.b16 %v1587
      %v1620 = vpack.c.b16 %v1605, %v1604
      %v1621 = vpack.c.b16 %v1607, %v1606
      %v1622 = vpack.c.b16 %v1609, %v1608
      %v1623 = vpack.c.b16 %v1611, %v1610
      %v1624 = vpack.c.b16 %v1613, %v1612
      %v1625 = vpack.c.b16 %v1615, %v1614
      %v1626 = vpack.c.b16 %v1617, %v1616
      %v1627 = vpack.c.b16 %v1619, %v1618
      %1636 = vmatprep.subr.bf16.mxu0 0
      %1637 = vmatpush1.bf16.msra.mxu0 %v1620
      %1638 = vmatprep.subr.bf16.mxu0 0
      %1639 = vmatpush1.bf16.msra.mxu0 %v1621
      %1640 = vmatprep.subr.bf16.mxu0 0
      %1641 = vmatpush1.bf16.msra.mxu0 %v1622
      %1642 = vmatprep.subr.bf16.mxu0 0
      %1643 = vmatpush1.bf16.msra.mxu0 %v1623
      %1644 = vmatprep.subr.bf16.mxu0 0
      %1645 = vmatpush1.bf16.msra.mxu0 %v1624
      %1646 = vmatprep.subr.bf16.mxu0 0
      %1647 = vmatpush1.bf16.msra.mxu0 %v1625
      %1648 = vmatprep.subr.bf16.mxu0 0
      %1649 = vmatpush1.bf16.msra.mxu0 %v1626
      %1650 = vmatprep.subr.bf16.mxu0 0
      %1651 = vmatpush1.bf16.msra.mxu0 %v1627
      %1652 = vmatprep.subr.bf16.mxu0 0
      %1653 = vmatpush1.bf16.msra.mxu0 0
      %1654 = vmatprep.subr.bf16.mxu0 0
      %1655 = vmatpush1.bf16.msra.mxu0 0
      %1656 = vmatprep.subr.bf16.mxu0 0
      %1657 = vmatpush1.bf16.msra.mxu0 0
      %1658 = vmatprep.subr.bf16.mxu0 0
      %1659 = vmatpush1.bf16.msra.mxu0 0
      %1660 = vmatprep.subr.bf16.mxu0 0
      %1661 = vmatpush1.bf16.msra.mxu0 0
      %1662 = vmatprep.subr.bf16.mxu0 0
      %1663 = vmatpush1.bf16.msra.mxu0 0
      %1664 = vmatprep.subr.bf16.mxu0 0
      %1665 = vmatpush1.bf16.msra.mxu0 0
      %1666 = vmatprep.subr.bf16.mxu0 0
      %1667 = vmatpush1.bf16.msra.mxu0 0
      %1668 = vmatprep.mubr.bf16.mxu0 0
      %1669 = vmatmul.mubr.bf16.gmra.mrb[0].mxu0 %v1571
      %v1670 = vpop.f32.mrb[0].mxu0
      %v1671 = vadd.f32 0.0, %v1670
      %v1672 = vpop.f32.mrb[0].mxu0
      %v1673 = vpop.f32.mrb[0].mxu0
      %v1674 = vadd.f32 0.0, %v1673
      %v1675 = vpop.f32.mrb[0].mxu0
      %1676 = vdwg.mxu0
      %v1677 = vadd.f32 %v716, %v1671
      %v1678 = vadd.f32 %v717, %v1674
      %v1679 = vld [vmem:[%s676] sm:$0x1]
      %v1681 = vlaneseq
      %v1682 = vshrl.u32 %v1681, 7
      %v1683 = vsub.s32 0, %v1682
      %v1684 = vrot.slane %v1679, %v1683
      %v1686 = vadd.f32 %v1677, %v1684
      %v1687 = vadd.f32 %v1678, %v1684
      %v1688 = vld [vmem:[%s679] sm:$0x1]
      %v1689 = vld [vmem:[%s682] sm:$0x1]
      %1690 = vadd.xlane.f32.xlu0 %v1686
      %v1691 = vpop.xlane.xlu0 %1690
      %1692 = vadd.xlane.f32.xlu0 %v1687
      %v1693 = vpop.xlane.xlu0 %1692
      %v1694 = vmul.f32 %v1691, %v724
      %v1695 = vmul.f32 %v1693, %v724
      %v1696 = vsub.f32 %v1686, %v1694
      %v1697 = vsub.f32 %v1687, %v1695
      %v1698 = vmul.f32 %v1696, %v1696
      %v1699 = vmul.f32 %v1697, %v1697
      %1700 = vadd.xlane.f32.xlu0 %v1698
      %v1701 = vpop.xlane.xlu0 %1700
      %1702 = vadd.xlane.f32.xlu0 %v1699
      %v1703 = vpop.xlane.xlu0 %1702
      %v1704 = vmul.f32 %v1701, %v724
      %v1705 = vmul.f32 %v1703, %v724
      %v1706 = vadd.f32 %v1704, 1e-06
      %v1707 = vadd.f32 %v1705, 1e-06
      %v1708 = vrsqrt.pop %v1706
      %v1709 = vrsqrt.pop %v1707
      %v1710 = vmul.f32 %v1696, %v1708
      %v1711 = vmul.f32 %v1697, %v1709
      %v1713 = vlaneseq
      %v1714 = vshrl.u32 %v1713, 7
      %v1715 = vsub.s32 0, %v1714
      %v1716 = vrot.slane %v1688, %v1715
      %v1718 = vmul.f32 %v1710, %v1716
      %v1719 = vmul.f32 %v1711, %v1716
      %v1721 = vlaneseq
      %v1722 = vshrl.u32 %v1721, 7
      %v1723 = vsub.s32 0, %v1722
      %v1724 = vrot.slane %v1689, %v1723
      %v1726 = vadd.f32 %v1718, %v1724
      %v1727 = vadd.f32 %v1719, %v1724
      %v1728 = vpack.c.bf16 %v1727, %v1726
      %v1729 = vld [vmem:[%s687] sm:$0xff]
      %v1730 = vld [vmem:[%s687 + $0x8] sm:$0xff]
      %v1731 = vld [vmem:[%s687 + $0x10] sm:$0xff]
      %v1732 = vld [vmem:[%s687 + $0x18] sm:$0xff]
      %v1733 = vld [vmem:[%s687 + $0x20] sm:$0xff]
      %v1734 = vld [vmem:[%s687 + $0x28] sm:$0xff]
      %v1735 = vld [vmem:[%s687 + $0x30] sm:$0xff]
      %v1736 = vld [vmem:[%s687 + $0x38] sm:$0xff]
      %v1737 = vld [vmem:[%s687 + $0x40] sm:$0xff]
      %v1738 = vld [vmem:[%s687 + $0x48] sm:$0xff]
      %v1739 = vld [vmem:[%s687 + $0x50] sm:$0xff]
      %v1740 = vld [vmem:[%s687 + $0x58] sm:$0xff]
      %v1741 = vld [vmem:[%s687 + $0x60] sm:$0xff]
      %v1742 = vld [vmem:[%s687 + $0x68] sm:$0xff]
      %v1743 = vld [vmem:[%s687 + $0x70] sm:$0xff]
      %v1744 = vld [vmem:[%s687 + $0x78] sm:$0xff]
      %v1745 = vld [vmem:[%s687 + $0x80] sm:$0xff]
      %v1746 = vld [vmem:[%s687 + $0x88] sm:$0xff]
      %v1747 = vld [vmem:[%s687 + $0x90] sm:$0xff]
      %v1748 = vld [vmem:[%s687 + $0x98] sm:$0xff]
      %v1749 = vld [vmem:[%s687 + $0xa0] sm:$0xff]
      %v1750 = vld [vmem:[%s687 + $0xa8] sm:$0xff]
      %v1751 = vld [vmem:[%s687 + $0xb0] sm:$0xff]
      %v1752 = vld [vmem:[%s687 + $0xb8] sm:$0xff]
      %v1753 = vld [vmem:[%s687 + $0xc0] sm:$0xff]
      %v1754 = vld [vmem:[%s687 + $0xc8] sm:$0xff]
      %v1755 = vld [vmem:[%s687 + $0xd0] sm:$0xff]
      %v1756 = vld [vmem:[%s687 + $0xd8] sm:$0xff]
      %v1757 = vld [vmem:[%s687 + $0xe0] sm:$0xff]
      %v1758 = vld [vmem:[%s687 + $0xe8] sm:$0xff]
      %v1759 = vld [vmem:[%s687 + $0xf0] sm:$0xff]
      %v1760 = vld [vmem:[%s687 + $0xf8] sm:$0xff]
      %v1761 = vld [vmem:[%s691] sm:$0xf]
      %v1763 = vlaneseq
      %v1764 = vshrl.u32 %v1763, 7
      %v1765 = vsub.s32 0, %v1764
      %v1766 = vrot.slane %v1761, %v1765
      %v1767 = vlaneseq
      %v1768 = vshrl.u32 %v1767, 7
      %v1769 = vsub.s32 1, %v1768
      %v1770 = vrot.slane %v1761, %v1769
      %v1771 = vlaneseq
      %v1772 = vshrl.u32 %v1771, 7
      %v1773 = vsub.s32 2, %v1772
      %v1774 = vrot.slane %v1761, %v1773
      %v1775 = vlaneseq
      %v1776 = vshrl.u32 %v1775, 7
      %v1777 = vsub.s32 3, %v1776
      %v1778 = vrot.slane %v1761, %v1777
      %v1815 = vunpack.c.l.b16 %v1729
      %v1816 = vunpack.c.h.b16 %v1729
      %v1817 = vunpack.c.l.b16 %v1730
      %v1818 = vunpack.c.h.b16 %v1730
      %v1819 = vunpack.c.l.b16 %v1731
      %v1820 = vunpack.c.h.b16 %v1731
      %v1821 = vunpack.c.l.b16 %v1732
      %v1822 = vunpack.c.h.b16 %v1732
      %v1823 = vunpack.c.l.b16 %v1733
      %v1824 = vunpack.c.h.b16 %v1733
      %v1825 = vunpack.c.l.b16 %v1734
      %v1826 = vunpack.c.h.b16 %v1734
      %v1827 = vunpack.c.l.b16 %v1735
      %v1828 = vunpack.c.h.b16 %v1735
      %v1829 = vunpack.c.l.b16 %v1736
      %v1830 = vunpack.c.h.b16 %v1736
      %v1831 = vunpack.c.l.b16 %v1737
      %v1832 = vunpack.c.h.b16 %v1737
      %v1833 = vunpack.c.l.b16 %v1738
      %v1834 = vunpack.c.h.b16 %v1738
      %v1835 = vunpack.c.l.b16 %v1739
      %v1836 = vunpack.c.h.b16 %v1739
      %v1837 = vunpack.c.l.b16 %v1740
      %v1838 = vunpack.c.h.b16 %v1740
      %v1839 = vunpack.c.l.b16 %v1741
      %v1840 = vunpack.c.h.b16 %v1741
      %v1841 = vunpack.c.l.b16 %v1742
      %v1842 = vunpack.c.h.b16 %v1742
      %v1843 = vunpack.c.l.b16 %v1743
      %v1844 = vunpack.c.h.b16 %v1743
      %v1845 = vunpack.c.l.b16 %v1744
      %v1846 = vunpack.c.h.b16 %v1744
      %v1847 = vunpack.c.l.b16 %v1745
      %v1848 = vunpack.c.h.b16 %v1745
      %v1849 = vunpack.c.l.b16 %v1746
      %v1850 = vunpack.c.h.b16 %v1746
      %v1851 = vunpack.c.l.b16 %v1747
      %v1852 = vunpack.c.h.b16 %v1747
      %v1853 = vunpack.c.l.b16 %v1748
      %v1854 = vunpack.c.h.b16 %v1748
      %v1855 = vunpack.c.l.b16 %v1749
      %v1856 = vunpack.c.h.b16 %v1749
      %v1857 = vunpack.c.l.b16 %v1750
      %v1858 = vunpack.c.h.b16 %v1750
      %v1859 = vunpack.c.l.b16 %v1751
      %v1860 = vunpack.c.h.b16 %v1751
      %v1861 = vunpack.c.l.b16 %v1752
      %v1862 = vunpack.c.h.b16 %v1752
      %v1863 = vunpack.c.l.b16 %v1753
      %v1864 = vunpack.c.h.b16 %v1753
      %v1865 = vunpack.c.l.b16 %v1754
      %v1866 = vunpack.c.h.b16 %v1754
      %v1867 = vunpack.c.l.b16 %v1755
      %v1868 = vunpack.c.h.b16 %v1755
      %v1869 = vunpack.c.l.b16 %v1756
      %v1870 = vunpack.c.h.b16 %v1756
      %v1871 = vunpack.c.l.b16 %v1757
      %v1872 = vunpack.c.h.b16 %v1757
      %v1873 = vunpack.c.l.b16 %v1758
      %v1874 = vunpack.c.h.b16 %v1758
      %v1875 = vunpack.c.l.b16 %v1759
      %v1876 = vunpack.c.h.b16 %v1759
      %v1877 = vunpack.c.l.b16 %v1760
      %v1878 = vunpack.c.h.b16 %v1760
      %v1879 = vpack.c.b16 %v1819, %v1815
      %v1880 = vpack.c.b16 %v1820, %v1816
      %v1881 = vpack.c.b16 %v1821, %v1817
      %v1882 = vpack.c.b16 %v1822, %v1818
      %v1883 = vpack.c.b16 %v1827, %v1823
      %v1884 = vpack.c.b16 %v1828, %v1824
      %v1885 = vpack.c.b16 %v1829, %v1825
      %v1886 = vpack.c.b16 %v1830, %v1826
      %v1887 = vpack.c.b16 %v1835, %v1831
      %v1888 = vpack.c.b16 %v1836, %v1832
      %v1889 = vpack.c.b16 %v1837, %v1833
      %v1890 = vpack.c.b16 %v1838, %v1834
      %v1891 = vpack.c.b16 %v1843, %v1839
      %v1892 = vpack.c.b16 %v1844, %v1840
      %v1893 = vpack.c.b16 %v1845, %v1841
      %v1894 = vpack.c.b16 %v1846, %v1842
      %v1895 = vpack.c.b16 %v1851, %v1847
      %v1896 = vpack.c.b16 %v1852, %v1848
      %v1897 = vpack.c.b16 %v1853, %v1849
      %v1898 = vpack.c.b16 %v1854, %v1850
      %v1899 = vpack.c.b16 %v1859, %v1855
      %v1900 = vpack.c.b16 %v1860, %v1856
      %v1901 = vpack.c.b16 %v1861, %v1857
      %v1902 = vpack.c.b16 %v1862, %v1858
      %v1903 = vpack.c.b16 %v1867, %v1863
      %v1904 = vpack.c.b16 %v1868, %v1864
      %v1905 = vpack.c.b16 %v1869, %v1865
      %v1906 = vpack.c.b16 %v1870, %v1866
      %v1907 = vpack.c.b16 %v1875, %v1871
      %v1908 = vpack.c.b16 %v1876, %v1872
      %v1909 = vpack.c.b16 %v1877, %v1873
      %v1910 = vpack.c.b16 %v1878, %v1874
      %1943 = vmatprep.subr.bf16.mxu0 %v1880
      %1944 = vmatpush1.bf16.msra.mxu0 %v1879
      %1945 = vmatprep.subr.bf16.mxu0 %v1884
      %1946 = vmatpush1.bf16.msra.mxu0 %v1883
      %1947 = vmatprep.subr.bf16.mxu0 %v1888
      %1948 = vmatpush1.bf16.msra.mxu0 %v1887
      %1949 = vmatprep.subr.bf16.mxu0 %v1892
      %1950 = vmatpush1.bf16.msra.mxu0 %v1891
      %1951 = vmatprep.subr.bf16.mxu0 %v1896
      %1952 = vmatpush1.bf16.msra.mxu0 %v1895
      %1953 = vmatprep.subr.bf16.mxu0 %v1900
      %1954 = vmatpush1.bf16.msra.mxu0 %v1899
      %1955 = vmatprep.subr.bf16.mxu0 %v1904
      %1956 = vmatpush1.bf16.msra.mxu0 %v1903
      %1957 = vmatprep.subr.bf16.mxu0 %v1908
      %1958 = vmatpush1.bf16.msra.mxu0 %v1907
      %1959 = vmatprep.subr.bf16.mxu0 0
      %1960 = vmatpush1.bf16.msra.mxu0 0
      %1961 = vmatprep.subr.bf16.mxu0 0
      %1962 = vmatpush1.bf16.msra.mxu0 0
      %1963 = vmatprep.subr.bf16.mxu0 0
      %1964 = vmatpush1.bf16.msra.mxu0 0
      %1965 = vmatprep.subr.bf16.mxu0 0
      %1966 = vmatpush1.bf16.msra.mxu0 0
      %1967 = vmatprep.subr.bf16.mxu0 0
      %1968 = vmatpush1.bf16.msra.mxu0 0
      %1969 = vmatprep.subr.bf16.mxu0 0
      %1970 = vmatpush1.bf16.msra.mxu0 0
      %1971 = vmatprep.subr.bf16.mxu0 0
      %1972 = vmatpush1.bf16.msra.mxu0 0
      %1973 = vmatprep.subr.bf16.mxu0 0
      %1974 = vmatpush1.bf16.msra.mxu0 0
      %1975 = vmatprep.mubr.bf16.mxu0 0
      %1976 = vmatmul.mubr.bf16.gmra.mrb[0].mxu0 %v1728
      %v1977 = vpop.f32.mrb[0].mxu0
      %v1978 = vadd.f32 %v1766, %v1977
      %v1979 = vpop.f32.mrb[0].mxu0
      %v1980 = vadd.f32 %v1770, %v1979
      %v1981 = vpop.f32.mrb[0].mxu0
      %v1982 = vadd.f32 %v1766, %v1981
      %v1983 = vpop.f32.mrb[0].mxu0
      %v1984 = vadd.f32 %v1770, %v1983
      %1985 = vdwg.mxu0
      %1986 = vmatprep.subr.bf16.mxu0 %v1882
      %1987 = vmatpush1.bf16.msra.mxu0 %v1881
      %1988 = vmatprep.subr.bf16.mxu0 %v1886
      %1989 = vmatpush1.bf16.msra.mxu0 %v1885
      %1990 = vmatprep.subr.bf16.mxu0 %v1890
      %1991 = vmatpush1.bf16.msra.mxu0 %v1889
      %1992 = vmatprep.subr.bf16.mxu0 %v1894
      %1993 = vmatpush1.bf16.msra.mxu0 %v1893
      %1994 = vmatprep.subr.bf16.mxu0 %v1898
      %1995 = vmatpush1.bf16.msra.mxu0 %v1897
      %1996 = vmatprep.subr.bf16.mxu0 %v1902
      %1997 = vmatpush1.bf16.msra.mxu0 %v1901
      %1998 = vmatprep.subr.bf16.mxu0 %v1906
      %1999 = vmatpush1.bf16.msra.mxu0 %v1905
      %2000 = vmatprep.subr.bf16.mxu0 %v1910
      %2001 = vmatpush1.bf16.msra.mxu0 %v1909
      %2002 = vmatprep.subr.bf16.mxu0 0
      %2003 = vmatpush1.bf16.msra.mxu0 0
      %2004 = vmatprep.subr.bf16.mxu0 0
      %2005 = vmatpush1.bf16.msra.mxu0 0
      %2006 = vmatprep.subr.bf16.mxu0 0
      %2007 = vmatpush1.bf16.msra.mxu0 0
      %2008 = vmatprep.subr.bf16.mxu0 0
      %2009 = vmatpush1.bf16.msra.mxu0 0
      %2010 = vmatprep.subr.bf16.mxu0 0
      %2011 = vmatpush1.bf16.msra.mxu0 0
      %2012 = vmatprep.subr.bf16.mxu0 0
      %2013 = vmatpush1.bf16.msra.mxu0 0
      %2014 = vmatprep.subr.bf16.mxu0 0
      %2015 = vmatpush1.bf16.msra.mxu0 0
      %2016 = vmatprep.subr.bf16.mxu0 0
      %2017 = vmatpush1.bf16.msra.mxu0 0
      %2018 = vmatprep.mubr.bf16.mxu0 0
      %2019 = vmatmul.mubr.bf16.gmra.mrb[0].mxu0 %v1728
      %v2020 = vpop.f32.mrb[0].mxu0
      %v2021 = vadd.f32 %v1774, %v2020
      %v2022 = vpop.f32.mrb[0].mxu0
      %v2023 = vadd.f32 %v1778, %v2022
      %v2024 = vpop.f32.mrb[0].mxu0
      %v2025 = vadd.f32 %v1774, %v2024
      %v2026 = vpop.f32.mrb[0].mxu0
      %v2027 = vadd.f32 %v1778, %v2026
      %2028 = vdwg.mxu0
      %v2029 = vmul.f32 %v1978, %v1978
      %v2030 = vmul.f32 %v1980, %v1980
      %v2031 = vmul.f32 %v2021, %v2021
      %v2032 = vmul.f32 %v2023, %v2023
      %v2033 = vmul.f32 %v1982, %v1982
      %v2034 = vmul.f32 %v1984, %v1984
      %v2035 = vmul.f32 %v2025, %v2025
      %v2036 = vmul.f32 %v2027, %v2027
      %v2037 = vmul.f32 %v1978, %v2029
      %v2038 = vmul.f32 %v1980, %v2030
      %v2039 = vmul.f32 %v2021, %v2031
      %v2040 = vmul.f32 %v2023, %v2032
      %v2041 = vmul.f32 %v1982, %v2033
      %v2042 = vmul.f32 %v1984, %v2034
      %v2043 = vmul.f32 %v2025, %v2035
      %v2044 = vmul.f32 %v2027, %v2036
      %v2045 = vmul.f32 %v2037, 0.044715
      %v2046 = vmul.f32 %v2038, 0.044715
      %v2047 = vmul.f32 %v2039, 0.044715
      %v2048 = vmul.f32 %v2040, 0.044715
      %v2049 = vmul.f32 %v2041, 0.044715
      %v2050 = vmul.f32 %v2042, 0.044715
      %v2051 = vmul.f32 %v2043, 0.044715
      %v2052 = vmul.f32 %v2044, 0.044715
      %v2053 = vadd.f32 %v1978, %v2045
      %v2054 = vadd.f32 %v1980, %v2046
      %v2055 = vadd.f32 %v2021, %v2047
      %v2056 = vadd.f32 %v2023, %v2048
      %v2057 = vadd.f32 %v1982, %v2049
      %v2058 = vadd.f32 %v1984, %v2050
      %v2059 = vadd.f32 %v2025, %v2051
      %v2060 = vadd.f32 %v2027, %v2052
      %v2061 = vmul.f32 %v2053, 0.7978846
      %v2062 = vmul.f32 %v2054, 0.7978846
      %v2063 = vmul.f32 %v2055, 0.7978846
      %v2064 = vmul.f32 %v2056, 0.7978846
      %v2065 = vmul.f32 %v2057, 0.7978846
      %v2066 = vmul.f32 %v2058, 0.7978846
      %v2067 = vmul.f32 %v2059, 0.7978846
      %v2068 = vmul.f32 %v2060, 0.7978846
      %v2069 = vtanh.pop %v2061
      %v2070 = vtanh.pop %v2062
      %v2071 = vtanh.pop %v2063
      %v2072 = vtanh.pop %v2064
      %v2073 = vtanh.pop %v2065
      %v2074 = vtanh.pop %v2066
      %v2075 = vtanh.pop %v2067
      %v2076 = vtanh.pop %v2068
      %v2077 = vadd.f32 %v2069, 1.0
      %v2078 = vadd.f32 %v2070, 1.0
      %v2079 = vadd.f32 %v2071, 1.0
      %v2080 = vadd.f32 %v2072, 1.0
      %v2081 = vadd.f32 %v2073, 1.0
      %v2082 = vadd.f32 %v2074, 1.0
      %v2083 = vadd.f32 %v2075, 1.0
      %v2084 = vadd.f32 %v2076, 1.0
      %v2085 = vmul.f32 %v2077, 0.5
      %v2086 = vmul.f32 %v2078, 0.5
      %v2087 = vmul.f32 %v2079, 0.5
      %v2088 = vmul.f32 %v2080, 0.5
      %v2089 = vmul.f32 %v2081, 0.5
      %v2090 = vmul.f32 %v2082, 0.5
      %v2091 = vmul.f32 %v2083, 0.5
      %v2092 = vmul.f32 %v2084, 0.5
      %v2093 = vmul.f32 %v1978, %v2085
      %v2094 = vmul.f32 %v1980, %v2086
      %v2095 = vmul.f32 %v2021, %v2087
      %v2096 = vmul.f32 %v2023, %v2088
      %v2097 = vmul.f32 %v1982, %v2089
      %v2098 = vmul.f32 %v1984, %v2090
      %v2099 = vmul.f32 %v2025, %v2091
      %v2100 = vmul.f32 %v2027, %v2092
      %v2101 = vpack.c.bf16 %v2097, %v2093
      %v2102 = vpack.c.bf16 %v2098, %v2094
      %v2103 = vpack.c.bf16 %v2099, %v2095
      %v2104 = vpack.c.bf16 %v2100, %v2096
      %v2105 = vld [vmem:[%s696] sm:$0xf]
      %v2106 = vld [vmem:[%s696 + $0x4] sm:$0xf]
      %v2107 = vld [vmem:[%s696 + $0x8] sm:$0xf]
      %v2108 = vld [vmem:[%s696 + $0xc] sm:$0xf]
      %v2109 = vld [vmem:[%s696 + $0x10] sm:$0xf]
      %v2110 = vld [vmem:[%s696 + $0x14] sm:$0xf]
      %v2111 = vld [vmem:[%s696 + $0x18] sm:$0xf]
      %v2112 = vld [vmem:[%s696 + $0x1c] sm:$0xf]
      %v2113 = vld [vmem:[%s696 + $0x20] sm:$0xf]
      %v2114 = vld [vmem:[%s696 + $0x24] sm:$0xf]
      %v2115 = vld [vmem:[%s696 + $0x28] sm:$0xf]
      %v2116 = vld [vmem:[%s696 + $0x2c] sm:$0xf]
      %v2117 = vld [vmem:[%s696 + $0x30] sm:$0xf]
      %v2118 = vld [vmem:[%s696 + $0x34] sm:$0xf]
      %v2119 = vld [vmem:[%s696 + $0x38] sm:$0xf]
      %v2120 = vld [vmem:[%s696 + $0x3c] sm:$0xf]
      %v2121 = vld [vmem:[%s696 + $0x40] sm:$0xf]
      %v2122 = vld [vmem:[%s696 + $0x44] sm:$0xf]
      %v2123 = vld [vmem:[%s696 + $0x48] sm:$0xf]
      %v2124 = vld [vmem:[%s696 + $0x4c] sm:$0xf]
      %v2125 = vld [vmem:[%s696 + $0x50] sm:$0xf]
      %v2126 = vld [vmem:[%s696 + $0x54] sm:$0xf]
      %v2127 = vld [vmem:[%s696 + $0x58] sm:$0xf]
      %v2128 = vld [vmem:[%s696 + $0x5c] sm:$0xf]
      %v2129 = vld [vmem:[%s696 + $0x60] sm:$0xf]
      %v2130 = vld [vmem:[%s696 + $0x64] sm:$0xf]
      %v2131 = vld [vmem:[%s696 + $0x68] sm:$0xf]
      %v2132 = vld [vmem:[%s696 + $0x6c] sm:$0xf]
      %v2133 = vld [vmem:[%s696 + $0x70] sm:$0xf]
      %v2134 = vld [vmem:[%s696 + $0x74] sm:$0xf]
      %v2135 = vld [vmem:[%s696 + $0x78] sm:$0xf]
      %v2136 = vld [vmem:[%s696 + $0x7c] sm:$0xf]
      %v2137 = vld [vmem:[%s696 + $0x80] sm:$0xf]
      %v2138 = vld [vmem:[%s696 + $0x84] sm:$0xf]
      %v2139 = vld [vmem:[%s696 + $0x88] sm:$0xf]
      %v2140 = vld [vmem:[%s696 + $0x8c] sm:$0xf]
      %v2141 = vld [vmem:[%s696 + $0x90] sm:$0xf]
      %v2142 = vld [vmem:[%s696 + $0x94] sm:$0xf]
      %v2143 = vld [vmem:[%s696 + $0x98] sm:$0xf]
      %v2144 = vld [vmem:[%s696 + $0x9c] sm:$0xf]
      %v2145 = vld [vmem:[%s696 + $0xa0] sm:$0xf]
      %v2146 = vld [vmem:[%s696 + $0xa4] sm:$0xf]
      %v2147 = vld [vmem:[%s696 + $0xa8] sm:$0xf]
      %v2148 = vld [vmem:[%s696 + $0xac] sm:$0xf]
      %v2149 = vld [vmem:[%s696 + $0xb0] sm:$0xf]
      %v2150 = vld [vmem:[%s696 + $0xb4] sm:$0xf]
      %v2151 = vld [vmem:[%s696 + $0xb8] sm:$0xf]
      %v2152 = vld [vmem:[%s696 + $0xbc] sm:$0xf]
      %v2153 = vld [vmem:[%s696 + $0xc0] sm:$0xf]
      %v2154 = vld [vmem:[%s696 + $0xc4] sm:$0xf]
      %v2155 = vld [vmem:[%s696 + $0xc8] sm:$0xf]
      %v2156 = vld [vmem:[%s696 + $0xcc] sm:$0xf]
      %v2157 = vld [vmem:[%s696 + $0xd0] sm:$0xf]
      %v2158 = vld [vmem:[%s696 + $0xd4] sm:$0xf]
      %v2159 = vld [vmem:[%s696 + $0xd8] sm:$0xf]
      %v2160 = vld [vmem:[%s696 + $0xdc] sm:$0xf]
      %v2161 = vld [vmem:[%s696 + $0xe0] sm:$0xf]
      %v2162 = vld [vmem:[%s696 + $0xe4] sm:$0xf]
      %v2163 = vld [vmem:[%s696 + $0xe8] sm:$0xf]
      %v2164 = vld [vmem:[%s696 + $0xec] sm:$0xf]
      %v2165 = vld [vmem:[%s696 + $0xf0] sm:$0xf]
      %v2166 = vld [vmem:[%s696 + $0xf4] sm:$0xf]
      %v2167 = vld [vmem:[%s696 + $0xf8] sm:$0xf]
      %v2168 = vld [vmem:[%s696 + $0xfc] sm:$0xf]
      %v2233 = vunpack.c.l.b16 %v2105
      %v2234 = vunpack.c.l.b16 %v2106
      %v2235 = vunpack.c.l.b16 %v2107
      %v2236 = vunpack.c.l.b16 %v2108
      %v2237 = vunpack.c.l.b16 %v2109
      %v2238 = vunpack.c.l.b16 %v2110
      %v2239 = vunpack.c.l.b16 %v2111
      %v2240 = vunpack.c.l.b16 %v2112
      %v2241 = vunpack.c.l.b16 %v2113
      %v2242 = vunpack.c.l.b16 %v2114
      %v2243 = vunpack.c.l.b16 %v2115
      %v2244 = vunpack.c.l.b16 %v2116
      %v2245 = vunpack.c.l.b16 %v2117
      %v2246 = vunpack.c.l.b16 %v2118
      %v2247 = vunpack.c.l.b16 %v2119
      %v2248 = vunpack.c.l.b16 %v2120
      %v2249 = vunpack.c.l.b16 %v2121
      %v2250 = vunpack.c.l.b16 %v2122
      %v2251 = vunpack.c.l.b16 %v2123
      %v2252 = vunpack.c.l.b16 %v2124
      %v2253 = vunpack.c.l.b16 %v2125
      %v2254 = vunpack.c.l.b16 %v2126
      %v2255 = vunpack.c.l.b16 %v2127
      %v2256 = vunpack.c.l.b16 %v2128
      %v2257 = vunpack.c.l.b16 %v2129
      %v2258 = vunpack.c.l.b16 %v2130
      %v2259 = vunpack.c.l.b16 %v2131
      %v2260 = vunpack.c.l.b16 %v2132
      %v2261 = vunpack.c.l.b16 %v2133
      %v2262 = vunpack.c.l.b16 %v2134
      %v2263 = vunpack.c.l.b16 %v2135
      %v2264 = vunpack.c.l.b16 %v2136
      %v2265 = vunpack.c.l.b16 %v2137
      %v2266 = vunpack.c.l.b16 %v2138
      %v2267 = vunpack.c.l.b16 %v2139
      %v2268 = vunpack.c.l.b16 %v2140
      %v2269 = vunpack.c.l.b16 %v2141
      %v2270 = vunpack.c.l.b16 %v2142
      %v2271 = vunpack.c.l.b16 %v2143
      %v2272 = vunpack.c.l.b16 %v2144
      %v2273 = vunpack.c.l.b16 %v2145
      %v2274 = vunpack.c.l.b16 %v2146
      %v2275 = vunpack.c.l.b16 %v2147
      %v2276 = vunpack.c.l.b16 %v2148
      %v2277 = vunpack.c.l.b16 %v2149
      %v2278 = vunpack.c.l.b16 %v2150
      %v2279 = vunpack.c.l.b16 %v2151
      %v2280 = vunpack.c.l.b16 %v2152
      %v2281 = vunpack.c.l.b16 %v2153
      %v2282 = vunpack.c.l.b16 %v2154
      %v2283 = vunpack.c.l.b16 %v2155
      %v2284 = vunpack.c.l.b16 %v2156
      %v2285 = vunpack.c.l.b16 %v2157
      %v2286 = vunpack.c.l.b16 %v2158
      %v2287 = vunpack.c.l.b16 %v2159
      %v2288 = vunpack.c.l.b16 %v2160
      %v2289 = vunpack.c.l.b16 %v2161
      %v2290 = vunpack.c.l.b16 %v2162
      %v2291 = vunpack.c.l.b16 %v2163
      %v2292 = vunpack.c.l.b16 %v2164
      %v2293 = vunpack.c.l.b16 %v2165
      %v2294 = vunpack.c.l.b16 %v2166
      %v2295 = vunpack.c.l.b16 %v2167
      %v2296 = vunpack.c.l.b16 %v2168
      %v2297 = vpack.c.b16 %v2234, %v2233
      %v2298 = vpack.c.b16 %v2236, %v2235
      %v2299 = vpack.c.b16 %v2238, %v2237
      %v2300 = vpack.c.b16 %v2240, %v2239
      %v2301 = vpack.c.b16 %v2242, %v2241
      %v2302 = vpack.c.b16 %v2244, %v2243
      %v2303 = vpack.c.b16 %v2246, %v2245
      %v2304 = vpack.c.b16 %v2248, %v2247
      %v2305 = vpack.c.b16 %v2250, %v2249
      %v2306 = vpack.c.b16 %v2252, %v2251
      %v2307 = vpack.c.b16 %v2254, %v2253
      %v2308 = vpack.c.b16 %v2256, %v2255
      %v2309 = vpack.c.b16 %v2258, %v2257
      %v2310 = vpack.c.b16 %v2260, %v2259
      %v2311 = vpack.c.b16 %v2262, %v2261
      %v2312 = vpack.c.b16 %v2264, %v2263
      %v2313 = vpack.c.b16 %v2266, %v2265
      %v2314 = vpack.c.b16 %v2268, %v2267
      %v2315 = vpack.c.b16 %v2270, %v2269
      %v2316 = vpack.c.b16 %v2272, %v2271
      %v2317 = vpack.c.b16 %v2274, %v2273
      %v2318 = vpack.c.b16 %v2276, %v2275
      %v2319 = vpack.c.b16 %v2278, %v2277
      %v2320 = vpack.c.b16 %v2280, %v2279
      %v2321 = vpack.c.b16 %v2282, %v2281
      %v2322 = vpack.c.b16 %v2284, %v2283
      %v2323 = vpack.c.b16 %v2286, %v2285
      %v2324 = vpack.c.b16 %v2288, %v2287
      %v2325 = vpack.c.b16 %v2290, %v2289
      %v2326 = vpack.c.b16 %v2292, %v2291
      %v2327 = vpack.c.b16 %v2294, %v2293
      %v2328 = vpack.c.b16 %v2296, %v2295
      %2361 = vmatprep.subr.bf16.mxu0 0
      %2362 = vmatpush1.bf16.msra.mxu0 %v2297
      %2363 = vmatprep.subr.bf16.mxu0 0
      %2364 = vmatpush1.bf16.msra.mxu0 %v2298
      %2365 = vmatprep.subr.bf16.mxu0 0
      %2366 = vmatpush1.bf16.msra.mxu0 %v2299
      %2367 = vmatprep.subr.bf16.mxu0 0
      %2368 = vmatpush1.bf16.msra.mxu0 %v2300
      %2369 = vmatprep.subr.bf16.mxu0 0
      %2370 = vmatpush1.bf16.msra.mxu0 %v2301
      %2371 = vmatprep.subr.bf16.mxu0 0
      %2372 = vmatpush1.bf16.msra.mxu0 %v2302
      %2373 = vmatprep.subr.bf16.mxu0 0
      %2374 = vmatpush1.bf16.msra.mxu0 %v2303
      %2375 = vmatprep.subr.bf16.mxu0 0
      %2376 = vmatpush1.bf16.msra.mxu0 %v2304
      %2377 = vmatprep.subr.bf16.mxu0 0
      %2378 = vmatpush1.bf16.msra.mxu0 %v2305
      %2379 = vmatprep.subr.bf16.mxu0 0
      %2380 = vmatpush1.bf16.msra.mxu0 %v2306
      %2381 = vmatprep.subr.bf16.mxu0 0
      %2382 = vmatpush1.bf16.msra.mxu0 %v2307
      %2383 = vmatprep.subr.bf16.mxu0 0
      %2384 = vmatpush1.bf16.msra.mxu0 %v2308
      %2385 = vmatprep.subr.bf16.mxu0 0
      %2386 = vmatpush1.bf16.msra.mxu0 %v2309
      %2387 = vmatprep.subr.bf16.mxu0 0
      %2388 = vmatpush1.bf16.msra.mxu0 %v2310
      %2389 = vmatprep.subr.bf16.mxu0 0
      %2390 = vmatpush1.bf16.msra.mxu0 %v2311
      %2391 = vmatprep.subr.bf16.mxu0 0
      %2392 = vmatpush1.bf16.msra.mxu0 %v2312
      %2393 = vmatprep.mubr.bf16.mxu0 %v2102
      %2394 = vmatmul.mubr.bf16.gmra.mrb[0].mxu0 %v2101
      %v2395 = vpop.f32.mrb[0].mxu0
      %v2396 = vadd.f32 0.0, %v2395
      %v2397 = vpop.f32.mrb[0].mxu0
      %v2398 = vpop.f32.mrb[0].mxu0
      %v2399 = vadd.f32 0.0, %v2398
      %v2400 = vpop.f32.mrb[0].mxu0
      %2401 = vdwg.mxu0
      %2402 = vmatprep.subr.bf16.mxu0 0
      %2403 = vmatpush1.bf16.msra.mxu0 %v2313
      %2404 = vmatprep.subr.bf16.mxu0 0
      %2405 = vmatpush1.bf16.msra.mxu0 %v2314
      %2406 = vmatprep.subr.bf16.mxu0 0
      %2407 = vmatpush1.bf16.msra.mxu0 %v2315
      %2408 = vmatprep.subr.bf16.mxu0 0
      %2409 = vmatpush1.bf16.msra.mxu0 %v2316
      %2410 = vmatprep.subr.bf16.mxu0 0
      %2411 = vmatpush1.bf16.msra.mxu0 %v2317
      %2412 = vmatprep.subr.bf16.mxu0 0
      %2413 = vmatpush1.bf16.msra.mxu0 %v2318
      %2414 = vmatprep.subr.bf16.mxu0 0
      %2415 = vmatpush1.bf16.msra.mxu0 %v2319
      %2416 = vmatprep.subr.bf16.mxu0 0
      %2417 = vmatpush1.bf16.msra.mxu0 %v2320
      %2418 = vmatprep.subr.bf16.mxu0 0
      %2419 = vmatpush1.bf16.msra.mxu0 %v2321
      %2420 = vmatprep.subr.bf16.mxu0 0
      %2421 = vmatpush1.bf16.msra.mxu0 %v2322
      %2422 = vmatprep.subr.bf16.mxu0 0
      %2423 = vmatpush1.bf16.msra.mxu0 %v2323
      %2424 = vmatprep.subr.bf16.mxu0 0
      %2425 = vmatpush1.bf16.msra.mxu0 %v2324
      %2426 = vmatprep.subr.bf16.mxu0 0
      %2427 = vmatpush1.bf16.msra.mxu0 %v2325
      %2428 = vmatprep.subr.bf16.mxu0 0
      %2429 = vmatpush1.bf16.msra.mxu0 %v2326
      %2430 = vmatprep.subr.bf16.mxu0 0
      %2431 = vmatpush1.bf16.msra.mxu0 %v2327
      %2432 = vmatprep.subr.bf16.mxu0 0
      %2433 = vmatpush1.bf16.msra.mxu0 %v2328
      %2434 = vmatprep.mubr.bf16.mxu0 %v2104
      %2435 = vmatmul.mubr.bf16.gmra.mrb[0].mxu0 %v2103
      %v2436 = vpop.f32.mrb[0].mxu0
      %v2437 = vadd.f32 %v2396, %v2436
      %v2438 = vpop.f32.mrb[0].mxu0
      %v2439 = vpop.f32.mrb[0].mxu0
      %v2440 = vadd.f32 %v2399, %v2439
      %v2441 = vpop.f32.mrb[0].mxu0
      %2442 = vdwg.mxu0
      %v2443 = vadd.f32 %v1686, %v2437
      %v2444 = vadd.f32 %v1687, %v2440
      %v2445 = vld [vmem:[%s699] sm:$0x1]
      %v2447 = vlaneseq
      %v2448 = vshrl.u32 %v2447, 7
      %v2449 = vsub.s32 0, %v2448
      %v2450 = vrot.slane %v2445, %v2449
      %v2452 = vadd.f32 %v2443, %v2450
      %v2453 = vadd.f32 %v2444, %v2450
      %p2454 = scmp.lt.s32.totalorder %s31, 1
      // Predicated region
      $region85: #{feature_vit_forward.3} parent=79 // pred_check
        %p2455 = pneg %p2454
      $region86: #{feature_vit_forward.3} parent=79 // pred_check_branch
        %2457 = sbr.rel (%p2455) target = $region88
      $region87: #{feature_vit_forward.3} parent=79 // pred_region
        %2458 = vst [vmem:[%s704] sm:$0xff] %v2452
        %2459 = vst [vmem:[%s704 + $0x8] sm:$0xff] %v2453
      $region88: #{feature_vit_forward.3} parent=79 // pred_fallthru
        _
      %p2460 = scmp.eq.s32.totalorder %s31, 1
      // Predicated region
      $region89: #{feature_vit_forward.3} parent=79 // pred_check
        %p2461 = pneg %p2460
      $region90: #{feature_vit_forward.3} parent=79 // pred_check_branch
        %2463 = sbr.rel (%p2461) target = $region92
      $region91: #{feature_vit_forward.3} parent=79 // pred_region
        %v2464 = vld [vmem:[%s13] sm:$0x1]
        %v2465 = vld [vmem:[%s14] sm:$0x1]
        %2466 = vadd.xlane.f32.xlu0 %v2452
        %v2467 = vpop.xlane.xlu0 %2466
        %2468 = vadd.xlane.f32.xlu0 %v2453
        %v2469 = vpop.xlane.xlu0 %2468
        %v2470 = vmul.f32 %v2467, %v724
        %v2471 = vmul.f32 %v2469, %v724
        %v2472 = vsub.f32 %v2452, %v2470
        %v2473 = vsub.f32 %v2453, %v2471
        %v2474 = vmul.f32 %v2472, %v2472
        %v2475 = vmul.f32 %v2473, %v2473
        %2476 = vadd.xlane.f32.xlu0 %v2474
        %v2477 = vpop.xlane.xlu0 %2476
        %2478 = vadd.xlane.f32.xlu0 %v2475
        %v2479 = vpop.xlane.xlu0 %2478
        %v2480 = vmul.f32 %v2477, %v724
        %v2481 = vmul.f32 %v2479, %v724
        %v2482 = vadd.f32 %v2480, 1e-06
        %v2483 = vadd.f32 %v2481, 1e-06
        %v2484 = vrsqrt.pop %v2482
        %v2485 = vrsqrt.pop %v2483
        %v2486 = vmul.f32 %v2472, %v2484
        %v2487 = vmul.f32 %v2473, %v2485
        %v2489 = vlaneseq
        %v2490 = vshrl.u32 %v2489, 7
        %v2491 = vsub.s32 0, %v2490
        %v2492 = vrot.slane %v2464, %v2491
        %v2494 = vmul.f32 %v2486, %v2492
        %v2495 = vmul.f32 %v2487, %v2492
        %v2497 = vlaneseq
        %v2498 = vshrl.u32 %v2497, 7
        %v2499 = vsub.s32 0, %v2498
        %v2500 = vrot.slane %v2465, %v2499
        %v2502 = vadd.f32 %v2494, %v2500
        %v2503 = vadd.f32 %v2495, %v2500
        %2504 = vst [vmem:[%s704] sm:$0xff] %v2502
        %2505 = vst [vmem:[%s704 + $0x8] sm:$0xff] %v2503
      $region92: #{feature_vit_forward.3} parent=79 // pred_fallthru
        _
      %p2506 = scmp.lt.s32.totalorder %s30, 1
      %s2507 = scalar_select %p2506, %s30, 1
      %s2508 = smul.addr %s2507, 2
      %s2509 = smul.addr %s2508, 8
      %s2510 = scalar_lea.vmem %s15, %s2509
      // Predicated region
      $region93: #{feature_vit_forward.3} parent=79 // pred_check
        %p2511 = pneg %p436
      $region94: #{feature_vit_forward.3} parent=79 // pred_check_branch
        %2513 = sbr.rel (%p2511) target = $region96
      $region95: #{feature_vit_forward.3} parent=79 // pred_region
        _
      $region96: #{feature_vit_forward.3} parent=79 // pred_fallthru
        _
    $region80: #{feature_vit_forward.3} parent=5 // pred_fallthru
      _
    %p2514 = scmp.le.s32.totalorder 2, %s21
    // Predicated region
    $region97: #{feature_vit_forward.3} parent=5 // pred_check
      %p2515 = pneg %p2514
    $region98: #{feature_vit_forward.3} parent=5 // pred_check_branch
      %2517 = sbr.rel (%p2515) target = $region100
    $region99: #{feature_vit_forward.3} parent=5 // pred_region
      %s2518 = ssub.s32 %s21, 2
      // Predicated region
      $region101: #{feature_vit_forward.3} parent=99 // pred_check
        %p2519 = pneg %p442
      $region102: #{feature_vit_forward.3} parent=99 // pred_check_branch
        %2521 = sbr.rel (%p2519) target = $region104
      $region103: #{feature_vit_forward.3} parent=99 // pred_region
        %p2522 = scmp.lt.s32.totalorder %s32, 1
        %s2523 = scalar_select %p2522, %s32, 1
        %s2524 = smul.addr %s2523, 2
        %s2525 = smul.addr %s2524, 8
        %s2526 = scalar_lea.vmem %s15, %s2525
      $region104: #{feature_vit_forward.3} parent=99 // pred_fallthru
        _
    $region100: #{feature_vit_forward.3} parent=5 // pred_fallthru
      _
  $region6: #{feature_vit_forward.3} parent=0 // loop_footer
    %s25 = sadd.s32 1, %s21
  $region7: #{feature_vit_forward.3} parent=0 // loop_footer_branch
    %20 = sbr.rel target = $region3
  $region8: #{feature_vit_forward.3} parent=0 // loop_exit
    _

</llo_original>
